<compile_context>
chip_gen: v5e
topology: v5e:2x2
jax: 0.10.0
libtpu: 0.0.40
codegen_flags: <defaults>
</compile_context>

<pallas_src>
import functools

import jax
import jax.numpy as jnp
import numpy as np
from jax import lax
from jax.experimental import pallas as pl
from jax.experimental.pallas import tpu as pltpu

NEG_SLOPE = 0.2
_BF16 = jnp.bfloat16


def _round_up(x, m):
    return (x + m - 1) // m * m


def _lrelu_f32(x, slope):
    return jnp.where(x >= 0.0, x, slope * x)


# ---------------------------------------------------------------------------
# Pallas kernels
# ---------------------------------------------------------------------------
def _stem_kernel(a_ref, w_ref, b_ref, o_ref):
    """o = a @ w + bias (bf16 operands, f32 accumulate, no activation)."""
    acc = jnp.dot(a_ref[...], w_ref[...], preferred_element_type=jnp.float32)
    o_ref[...] = (acc + b_ref[...]).astype(o_ref.dtype)


def _dual_matmul_lrelu_kernel(ah_ref, wh_ref, al_ref, wl_ref,
                              oh_ref, ol_ref, *, slope):
    """Both OctConv frequency branches fused: two no-bias matmuls + LeakyReLU."""
    h = jnp.dot(ah_ref[...], wh_ref[...], preferred_element_type=jnp.float32)
    l = jnp.dot(al_ref[...], wl_ref[...], preferred_element_type=jnp.float32)
    oh_ref[...] = _lrelu_f32(h, slope).astype(oh_ref.dtype)
    ol_ref[...] = _lrelu_f32(l, slope).astype(ol_ref.dtype)


def _depthwise_lrelu_kernel(p_ref, w_ref, o_ref, *, kk, slope):
    """o[m,c] = lrelu(sum_k p[k,m,c] * w[k,c]); hf/lf concatenated on lanes."""
    acc = jnp.zeros(o_ref.shape, jnp.float32)
    for k in range(kk):
        acc = acc + p_ref[k].astype(jnp.float32) * w_ref[k:k + 1, :]
    o_ref[...] = _lrelu_f32(acc, slope).astype(o_ref.dtype)


# ---------------------------------------------------------------------------
# Pallas wrappers
# ---------------------------------------------------------------------------
def stem_matmul_bias(a, w, b):
    """(M,K)bf16 @ (K,N)bf16 + f32 bias -> (M,N) f32, tiled/parallel over M."""
    M, K = a.shape
    N = w.shape[1]
    tm = 256 if M >= 256 else _round_up(M, 8)
    Mp = _round_up(M, tm)
    a_p = a if Mp == M else jnp.pad(a, ((0, Mp - M), (0, 0)))
    out = pl.pallas_call(
        _stem_kernel,
        out_shape=jax.ShapeDtypeStruct((Mp, N), jnp.float32),
        grid_spec=pltpu.PrefetchScalarGridSpec(
            num_scalar_prefetch=0,
            grid=(Mp // tm,),
            in_specs=[
                pl.BlockSpec((tm, K), lambda i: (i, 0)),
                pl.BlockSpec((K, N), lambda i: (0, 0)),
                pl.BlockSpec((1, N), lambda i: (0, 0)),
            ],
            out_specs=pl.BlockSpec((tm, N), lambda i: (i, 0)),
        ),
        compiler_params=pltpu.CompilerParams(dimension_semantics=("parallel",)),
    )(a_p, w, b.reshape(1, N).astype(jnp.float32))
    return out if Mp == M else out[:M]


def dual_matmul_lrelu(ah, wh, al, wl, slope=NEG_SLOPE):
    """One pallas_call computing lrelu(ah@wh) and lrelu(al@wl)."""
    Mh, Kh = ah.shape
    Ml, Kl = al.shape
    Nh, Nl = wh.shape[1], wl.shape[1]
    Mhp, Mlp = _round_up(Mh, 8), _round_up(Ml, 8)
    ah_p = ah if Mhp == Mh else jnp.pad(ah, ((0, Mhp - Mh), (0, 0)))
    al_p = al if Mlp == Ml else jnp.pad(al, ((0, Mlp - Ml), (0, 0)))
    oh, ol = pl.pallas_call(
        functools.partial(_dual_matmul_lrelu_kernel, slope=slope),
        out_shape=(jax.ShapeDtypeStruct((Mhp, Nh), jnp.float32),
                   jax.ShapeDtypeStruct((Mlp, Nl), jnp.float32)),
        grid_spec=pltpu.PrefetchScalarGridSpec(
            num_scalar_prefetch=0,
            grid=(1,),
            in_specs=[
                pl.BlockSpec((Mhp, Kh), lambda i: (0, 0)),
                pl.BlockSpec((Kh, Nh), lambda i: (0, 0)),
                pl.BlockSpec((Mlp, Kl), lambda i: (0, 0)),
                pl.BlockSpec((Kl, Nl), lambda i: (0, 0)),
            ],
            out_specs=[
                pl.BlockSpec((Mhp, Nh), lambda i: (0, 0)),
                pl.BlockSpec((Mlp, Nl), lambda i: (0, 0)),
            ],
        ),
        compiler_params=pltpu.CompilerParams(dimension_semantics=("arbitrary",)),
    )(ah_p, wh, al_p, wl)
    oh = oh if Mhp == Mh else oh[:Mh]
    ol = ol if Mlp == Ml else ol[:Ml]
    return oh, ol


def depthwise_lrelu(patches, w, slope=NEG_SLOPE):
    """patches:(KK,M,C) bf16, w:(KK,C) f32 -> lrelu(depthwise conv) (M,C) f32."""
    KK, M, C = patches.shape
    Mp = _round_up(M, 8)
    p_p = patches if Mp == M else jnp.pad(patches, ((0, 0), (0, Mp - M), (0, 0)))
    out = pl.pallas_call(
        functools.partial(_depthwise_lrelu_kernel, kk=KK, slope=slope),
        out_shape=jax.ShapeDtypeStruct((Mp, C), jnp.float32),
        grid_spec=pltpu.PrefetchScalarGridSpec(
            num_scalar_prefetch=0,
            grid=(1,),
            in_specs=[
                pl.BlockSpec((KK, Mp, C), lambda i: (0, 0, 0)),
                pl.BlockSpec((KK, C), lambda i: (0, 0)),
            ],
            out_specs=pl.BlockSpec((Mp, C), lambda i: (0, 0)),
        ),
        compiler_params=pltpu.CompilerParams(dimension_semantics=("arbitrary",)),
    )(p_p, w)
    return out if Mp == M else out[:M]


# ---------------------------------------------------------------------------
# JAX glue: im2col patch extraction, pooling, upsampling, parameter setup
# ---------------------------------------------------------------------------
def _im2col(x, kh, kw, stride, padding):
    x = jnp.pad(x, ((0, 0), (padding, padding), (padding, padding), (0, 0)))
    B, Hp, Wp, C = x.shape
    Ho = (Hp - kh) // stride + 1
    Wo = (Wp - kw) // stride + 1
    cols = []
    for i in range(kh):
        for j in range(kw):
            cols.append(x[:, i:i + Ho * stride:stride, j:j + Wo * stride:stride, :])
    return jnp.concatenate(cols, axis=-1), Ho, Wo


def _dw_patches(x, k, stride, padding):
    """Depthwise tap stack: (k*k, B*Ho*Wo, C)."""
    B, H, W, C = x.shape
    xp = jnp.pad(x, ((0, 0), (padding, padding), (padding, padding), (0, 0)))
    Ho = (H + 2 * padding - k) // stride + 1
    Wo = (W + 2 * padding - k) // stride + 1
    cols = []
    for i in range(k):
        for j in range(k):
            cols.append(
                xp[:, i:i + Ho * stride:stride, j:j + Wo * stride:stride, :]
                .reshape(B * Ho * Wo, C))
    return jnp.stack(cols, axis=0), Ho, Wo


def avg_pool2(x):
    B, H, W, C = x.shape
    return x.reshape(B, H // 2, 2, W // 2, 2, C).mean(axis=(2, 4))


def upsample2(x):
    return jnp.repeat(jnp.repeat(x, 2, axis=1), 2, axis=2)


def init_params(key, in_dim, dtype=jnp.float32):
    ks = jax.random.split(key, 14)

    def w(k, shape, fan_in):
        lim = 1.0 / np.sqrt(fan_in)
        return jax.random.uniform(k, shape, dtype, -lim, lim)

    p = {}
    p['conv_w'] = w(ks[0], (7, 7, in_dim, 64), 7 * 7 * in_dim)
    p['conv_b'] = w(ks[1], (64,), 7 * 7 * in_dim)
    p['oc11_wh'] = w(ks[2], (3, 3, 64, 32), 3 * 3 * 64)
    p['oc11_wl'] = w(ks[3], (3, 3, 64, 32), 3 * 3 * 64)
    p['oc12_h2h'] = w(ks[4], (1, 1, 32, 64), 32)
    p['oc12_l2h'] = w(ks[5], (1, 1, 32, 64), 32)
    p['oc12_l2l'] = w(ks[6], (1, 1, 32, 64), 32)
    p['oc12_h2l'] = w(ks[7], (1, 1, 32, 64), 32)
    p['oc21_wh'] = w(ks[8], (3, 3, 64), 9)   # depthwise
    p['oc21_wl'] = w(ks[9], (3, 3, 64), 9)   # depthwise
    p['oc22_h2h'] = w(ks[10], (1, 1, 64, 128), 64)
    p['oc22_l2h'] = w(ks[11], (1, 1, 64, 128), 64)
    p['oc22_l2l'] = w(ks[12], (1, 1, 64, 128), 64)
    p['oc22_h2l'] = w(ks[13], (1, 1, 64, 128), 64)
    return p


# ---------------------------------------------------------------------------
# Encoder forward (Pallas path): 5 pallas_calls total
# ---------------------------------------------------------------------------
def encoder_forward(x_nchw, p):
    x = jnp.transpose(x_nchw, (0, 2, 3, 1)).astype(jnp.float32)   # NCHW -> NHWC
    B = x.shape[0]

    # --- stem: 7x7/1 conv + bias (no activation) -------------------------
    patches, Ho, Wo = _im2col(x, 7, 7, 1, 3)
    a = patches.reshape(B * Ho * Wo, -1).astype(_BF16)
    w = p['conv_w'].reshape(-1, 64).astype(_BF16)
    out = stem_matmul_bias(a, w, p['conv_b']).reshape(B, Ho, Wo, 64)

    # --- OctConv1_1 (type='first', 3x3/2) + LeakyReLU, hf/lf in one call --
    ph, Hh, Wh = _im2col(out, 3, 3, 2, 1)
    plo, Hl, Wl = _im2col(avg_pool2(out), 3, 3, 2, 1)
    hf, lf = dual_matmul_lrelu(
        ph.reshape(B * Hh * Wh, -1).astype(_BF16),
        p['oc11_wh'].reshape(-1, 32).astype(_BF16),
        plo.reshape(B * Hl * Wl, -1).astype(_BF16),
        p['oc11_wl'].reshape(-1, 32).astype(_BF16))
    hf = hf.reshape(B, Hh, Wh, 32)
    lf = lf.reshape(B, Hl, Wl, 32)

    # --- OctConv1_2 (type='normal', 1x1): cross-frequency sums fused via
    #     channel-concatenated inputs/weights; hf/lf branches in one call. --
    w_h = jnp.concatenate([p['oc12_h2h'], p['oc12_l2h']], axis=2).reshape(64, 64).astype(_BF16)
    w_l = jnp.concatenate([p['oc12_l2l'], p['oc12_h2l']], axis=2).reshape(64, 64).astype(_BF16)
    a_h = jnp.concatenate([hf, upsample2(lf)], -1).reshape(B * Hh * Wh, 64).astype(_BF16)
    a_l = jnp.concatenate([lf, avg_pool2(hf)], -1).reshape(B * Hl * Wl, 64).astype(_BF16)
    hf2, lf2 = dual_matmul_lrelu(a_h, w_h, a_l, w_l)
    hf2 = hf2.reshape(B, Hh, Wh, 64)
    lf2 = lf2.reshape(B, Hl, Wl, 64)

    # --- OctConv2_1 (type='normal', groups==channels -> depthwise 3x3/2):
    #     both branches in one lane-dense (128-ch) call. --------------------
    ph3, Hh3, Wh3 = _dw_patches(hf2, 3, 2, 1)      # (9, B*Hh3*Wh3, 64)
    pl3, Hl3, Wl3 = _dw_patches(lf2, 3, 2, 1)      # (9, B*Hl3*Wl3, 64)
    Mh3, Ml3 = ph3.shape[1], pl3.shape[1]
    pl3 = jnp.pad(pl3, ((0, 0), (0, Mh3 - Ml3), (0, 0)))
    pcat = jnp.concatenate([ph3, pl3], axis=-1).astype(_BF16)      # (9, Mh3, 128)
    wcat = jnp.concatenate([p['oc21_wh'].reshape(9, 64),
                            p['oc21_wl'].reshape(9, 64)], axis=-1).astype(jnp.float32)
    dw = depthwise_lrelu(pcat, wcat)                                # (Mh3, 128)
    hf3 = dw[:, :64].reshape(B, Hh3, Wh3, 64)
    lf3 = dw[:Ml3, 64:].reshape(B, Hl3, Wl3, 64)

    # --- OctConv2_2 (type='normal', 1x1) + LeakyReLU ----------------------
    w_h = jnp.concatenate([p['oc22_h2h'], p['oc22_l2h']], axis=2).reshape(128, 128).astype(_BF16)
    w_l = jnp.concatenate([p['oc22_l2l'], p['oc22_h2l']], axis=2).reshape(128, 128).astype(_BF16)
    a_h = jnp.concatenate([hf3, upsample2(lf3)], -1).reshape(B * Hh3 * Wh3, 128).astype(_BF16)
    a_l = jnp.concatenate([lf3, avg_pool2(hf3)], -1).reshape(B * Hl3 * Wl3, 128).astype(_BF16)
    hf4, lf4 = dual_matmul_lrelu(a_h, w_h, a_l, w_l)
    hf4 = hf4.reshape(B, Hh3, Wh3, 128)
    lf4 = lf4.reshape(B, Hl3, Wl3, 128)

    return jnp.transpose(hf4, (0, 3, 1, 2)), jnp.transpose(lf4, (0, 3, 1, 2))


# ---------------------------------------------------------------------------
# Pure-JAX f32 reference (lax.conv) for correctness check
# ---------------------------------------------------------------------------
def _ref_conv(x, w, b, stride, padding):
    out = lax.conv_general_dilated(x, w, (stride, stride),
                                   [(padding, padding)] * 2,
                                   dimension_numbers=('NHWC', 'HWIO', 'NHWC'))
    return out if b is None else out + b


def _ref_dwconv(x, w_dw, stride, padding):
    kh, kw, C = w_dw.shape
    return lax.conv_general_dilated(x, w_dw.reshape(kh, kw, 1, C), (stride, stride),
                                    [(padding, padding)] * 2,
                                    dimension_numbers=('NHWC', 'HWIO', 'NHWC'),
                                    feature_group_count=C)


def _lrelu(x):
    return jnp.where(x >= 0, x, NEG_SLOPE * x)


def encoder_reference(x_nchw, p):
    x = jnp.transpose(x_nchw, (0, 2, 3, 1))
    out = _ref_conv(x, p['conv_w'], p['conv_b'], 1, 3)
    hf = _lrelu(_ref_conv(out, p['oc11_wh'], None, 2, 1))
    lf = _lrelu(_ref_conv(avg_pool2(out), p['oc11_wl'], None, 2, 1))
    hf2 = _lrelu(_ref_conv(hf, p['oc12_h2h'], None, 1, 0)
                 + _ref_conv(upsample2(lf), p['oc12_l2h'], None, 1, 0))
    lf2 = _lrelu(_ref_conv(lf, p['oc12_l2l'], None, 1, 0)
                 + _ref_conv(avg_pool2(hf), p['oc12_h2l'], None, 1, 0))
    hf3 = _lrelu(_ref_dwconv(hf2, p['oc21_wh'], 2, 1))
    lf3 = _lrelu(_ref_dwconv(lf2, p['oc21_wl'], 2, 1))
    hf4 = _lrelu(_ref_conv(hf3, p['oc22_h2h'], None, 1, 0)
                 + _ref_conv(upsample2(lf3), p['oc22_l2h'], None, 1, 0))
    lf4 = _lrelu(_ref_conv(lf3, p['oc22_l2l'], None, 1, 0)
                 + _ref_conv(avg_pool2(hf3), p['oc22_h2l'], None, 1, 0))
    return jnp.transpose(hf4, (0, 3, 1, 2)), jnp.transpose(lf4, (0, 3, 1, 2))


if __name__ == "__main__":
    key = jax.random.PRNGKey(0)
    k_x, k_p = jax.random.split(key)
    in_dim = 3
    x = jax.random.normal(k_x, (2, in_dim, 32, 32), jnp.float32)   # NCHW input
    params = init_params(k_p, in_dim)

    hf, lf = jax.jit(encoder_forward)(x, params)
    jax.block_until_ready((hf, lf))
    assert hf.shape == (2, 128, 8, 8), hf.shape
    assert lf.shape == (2, 128, 4, 4), lf.shape

    # f32 reference; kernels use bf16 MXU operands with f32 accumulation,
    # so compare with a bf16-appropriate tolerance.
    hf_ref, lf_ref = encoder_reference(x, params)
    np.testing.assert_allclose(np.asarray(hf), np.asarray(hf_ref), rtol=4e-2, atol=5e-3)
    np.testing.assert_allclose(np.asarray(lf), np.asarray(lf_ref), rtol=4e-2, atol=5e-3)

    print("KERNEL_OK")
</pallas_src>

<mosaic_0001>
module attributes {stable_mosaic.version = 11 : i64} {
  func.func @_stem_kernel(%arg0: i32, %arg1: memref<256x147xbf16, #tpu.memory_space<vmem>>, %arg2: memref<147x64xbf16, #tpu.memory_space<vmem>>, %arg3: memref<1x64xf32, #tpu.memory_space<vmem>>, %arg4: memref<256x64xf32, #tpu.memory_space<vmem>>) attributes {dimension_semantics = [#tpu.dimension_semantics<parallel>], iteration_bounds = array<i64: 8>, scalar_prefetch = 0 : i64, scratch_operands = 0 : i64, tpu.core_type = #tpu.core_type<tc>, window_params = [{transform_indices = @transform_0, window_bounds = array<i64: 256, 147>}, {pipeline_mode = #tpu.pipeline_mode<synchronous>, transform_indices = @transform_1, window_bounds = array<i64: 147, 64>}, {pipeline_mode = #tpu.pipeline_mode<synchronous>, transform_indices = @transform_2, window_bounds = array<i64: 1, 64>}, {transform_indices = @transform_3, window_bounds = array<i64: 256, 64>}]} {
    %c0 = arith.constant 0 : index
    %c0_0 = arith.constant 0 : index
    %0 = vector.load %arg1[%c0, %c0_0] : memref<256x147xbf16, #tpu.memory_space<vmem>>, vector<256x147xbf16>
    %c0_1 = arith.constant 0 : index
    %c0_2 = arith.constant 0 : index
    %1 = vector.load %arg2[%c0_1, %c0_2] : memref<147x64xbf16, #tpu.memory_space<vmem>>, vector<147x64xbf16>
    %cst = arith.constant dense<0.000000e+00> : vector<256x64xf32>
    %2 = tpu.matmul %0, %1, %cst {dimension_numbers = #tpu.dot_dimension_numbers<[1], [0], [0], [1], [0, 0, 1, 1], [], []>} : vector<256x147xbf16>, vector<147x64xbf16>, vector<256x64xf32> -> vector<256x64xf32>
    %c0_3 = arith.constant 0 : index
    %c0_4 = arith.constant 0 : index
    %3 = vector.load %arg3[%c0_3, %c0_4] : memref<1x64xf32, #tpu.memory_space<vmem>>, vector<1x64xf32>
    %4 = vector.broadcast %3 : vector<1x64xf32> to vector<256x64xf32>
    %5 = arith.addf %2, %4 : vector<256x64xf32>
    %c0_5 = arith.constant 0 : index
    %c0_6 = arith.constant 0 : index
    %6 = vector.load %arg4[%c0_5, %c0_6] : memref<256x64xf32, #tpu.memory_space<vmem>>, vector<256x64xf32>
    tpu.vector_store %arg4[%c0_5, %c0_6], %5 {strides = array<i32>} : memref<256x64xf32, #tpu.memory_space<vmem>>, vector<256x64xf32>,
    return
  }
  func.func @transform_0(%arg0: i32) -> (i32, i32) {
    %c0_i32 = arith.constant 0 : i32
    %c0_i32_0 = arith.constant 0 : i32
    return %arg0, %c0_i32 : i32, i32
  }
  func.func @transform_1(%arg0: i32) -> (i32, i32) {
    %c0_i32 = arith.constant 0 : i32
    %c0_i32_0 = arith.constant 0 : i32
    %c0_i32_1 = arith.constant 0 : i32
    return %c0_i32, %c0_i32_0 : i32, i32
  }
  func.func @transform_2(%arg0: i32) -> (i32, i32) {
    %c0_i32 = arith.constant 0 : i32
    %c0_i32_0 = arith.constant 0 : i32
    %c0_i32_1 = arith.constant 0 : i32
    return %c0_i32, %c0_i32_0 : i32, i32
  }
  func.func @transform_3(%arg0: i32) -> (i32, i32) {
    %c0_i32 = arith.constant 0 : i32
    %c0_i32_0 = arith.constant 0 : i32
    return %arg0, %c0_i32 : i32, i32
  }
}

module attributes {stable_mosaic.version = 11 : i64} {
  func.func @_dual_matmul_lrelu_kernel(%arg0: i32, %arg1: memref<512x576xbf16, #tpu.memory_space<vmem>>, %arg2: memref<576x32xbf16, #tpu.memory_space<vmem>>, %arg3: memref<128x576xbf16, #tpu.memory_space<vmem>>, %arg4: memref<576x32xbf16, #tpu.memory_space<vmem>>, %arg5: memref<512x32xf32, #tpu.memory_space<vmem>>, %arg6: memref<128x32xf32, #tpu.memory_space<vmem>>) attributes {dimension_semantics = [#tpu.dimension_semantics<arbitrary>], iteration_bounds = array<i64: 1>, scalar_prefetch = 0 : i64, scratch_operands = 0 : i64, tpu.core_type = #tpu.core_type<tc>, window_params = [{pipeline_mode = #tpu.pipeline_mode<synchronous>, transform_indices = @transform_0, window_bounds = array<i64: 512, 576>}, {pipeline_mode = #tpu.pipeline_mode<synchronous>, transform_indices = @transform_1, window_bounds = array<i64: 576, 32>}, {pipeline_mode = #tpu.pipeline_mode<synchronous>, transform_indices = @transform_2, window_bounds = array<i64: 128, 576>}, {pipeline_mode = #tpu.pipeline_mode<synchronous>, transform_indices = @transform_3, window_bounds = array<i64: 576, 32>}, {pipeline_mode = #tpu.pipeline_mode<synchronous>, transform_indices = @transform_4, window_bounds = array<i64: 512, 32>}, {pipeline_mode = #tpu.pipeline_mode<synchronous>, transform_indices = @transform_5, window_bounds = array<i64: 128, 32>}]} {
    %c0 = arith.constant 0 : index
    %c0_0 = arith.constant 0 : index
    %0 = vector.load %arg1[%c0, %c0_0] : memref<512x576xbf16, #tpu.memory_space<vmem>>, vector<512x576xbf16>
    %c0_1 = arith.constant 0 : index
    %c0_2 = arith.constant 0 : index
    %1 = vector.load %arg2[%c0_1, %c0_2] : memref<576x32xbf16, #tpu.memory_space<vmem>>, vector<576x32xbf16>
    %cst = arith.constant dense<0.000000e+00> : vector<512x32xf32>
    %2 = tpu.matmul %0, %1, %cst {dimension_numbers = #tpu.dot_dimension_numbers<[1], [0], [0], [1], [0, 0, 1, 1], [], []>} : vector<512x576xbf16>, vector<576x32xbf16>, vector<512x32xf32> -> vector<512x32xf32>
    %c0_3 = arith.constant 0 : index
    %c0_4 = arith.constant 0 : index
    %3 = vector.load %arg3[%c0_3, %c0_4] : memref<128x576xbf16, #tpu.memory_space<vmem>>, vector<128x576xbf16>
    %c0_5 = arith.constant 0 : index
    %c0_6 = arith.constant 0 : index
    %4 = vector.load %arg4[%c0_5, %c0_6] : memref<576x32xbf16, #tpu.memory_space<vmem>>, vector<576x32xbf16>
    %cst_7 = arith.constant dense<0.000000e+00> : vector<128x32xf32>
    %5 = tpu.matmul %3, %4, %cst_7 {dimension_numbers = #tpu.dot_dimension_numbers<[1], [0], [0], [1], [0, 0, 1, 1], [], []>} : vector<128x576xbf16>, vector<576x32xbf16>, vector<128x32xf32> -> vector<128x32xf32>
    %cst_8 = arith.constant 0.000000e+00 : f32
    %6 = vector.broadcast %cst_8 : f32 to vector<512x32xf32>
    %7 = arith.cmpf oge, %2, %6 : vector<512x32xf32>
    %cst_9 = arith.constant 2.000000e-01 : f32
    %8 = vector.broadcast %cst_9 : f32 to vector<512x32xf32>
    %9 = arith.mulf %8, %2 : vector<512x32xf32>
    %10 = arith.select %7, %2, %9 : vector<512x32xi1>, vector<512x32xf32>
    %c0_10 = arith.constant 0 : index
    %c0_11 = arith.constant 0 : index
    %11 = vector.load %arg5[%c0_10, %c0_11] : memref<512x32xf32, #tpu.memory_space<vmem>>, vector<512x32xf32>
    tpu.vector_store %arg5[%c0_10, %c0_11], %10 {strides = array<i32>} : memref<512x32xf32, #tpu.memory_space<vmem>>, vector<512x32xf32>,
    %cst_12 = arith.constant 0.000000e+00 : f32
    %12 = vector.broadcast %cst_12 : f32 to vector<128x32xf32>
    %13 = arith.cmpf oge, %5, %12 : vector<128x32xf32>
    %cst_13 = arith.constant 2.000000e-01 : f32
    %14 = vector.broadcast %cst_13 : f32 to vector<128x32xf32>
    %15 = arith.mulf %14, %5 : vector<128x32xf32>
    %16 = arith.select %13, %5, %15 : vector<128x32xi1>, vector<128x32xf32>
    %c0_14 = arith.constant 0 : index
    %c0_15 = arith.constant 0 : index
    %17 = vector.load %arg6[%c0_14, %c0_15] : memref<128x32xf32, #tpu.memory_space<vmem>>, vector<128x32xf32>
    tpu.vector_store %arg6[%c0_14, %c0_15], %16 {strides = array<i32>} : memref<128x32xf32, #tpu.memory_space<vmem>>, vector<128x32xf32>,
    return
  }
  func.func @transform_0(%arg0: i32) -> (i32, i32) {
    %c0_i32 = arith.constant 0 : i32
    %c0_i32_0 = arith.constant 0 : i32
    %c0_i32_1 = arith.constant 0 : i32
    return %c0_i32, %c0_i32_0 : i32, i32
  }
  func.func @transform_1(%arg0: i32) -> (i32, i32) {
    %c0_i32 = arith.constant 0 : i32
    %c0_i32_0 = arith.constant 0 : i32
    %c0_i32_1 = arith.constant 0 : i32
    return %c0_i32, %c0_i32_0 : i32, i32
  }
  func.func @transform_2(%arg0: i32) -> (i32, i32) {
    %c0_i32 = arith.constant 0 : i32
    %c0_i32_0 = arith.constant 0 : i32
    %c0_i32_1 = arith.constant 0 : i32
    return %c0_i32, %c0_i32_0 : i32, i32
  }
  func.func @transform_3(%arg0: i32) -> (i32, i32) {
    %c0_i32 = arith.constant 0 : i32
    %c0_i32_0 = arith.constant 0 : i32
    %c0_i32_1 = arith.constant 0 : i32
    return %c0_i32, %c0_i32_0 : i32, i32
  }
  func.func @transform_4(%arg0: i32) -> (i32, i32) {
    %c0_i32 = arith.constant 0 : i32
    %c0_i32_0 = arith.constant 0 : i32
    %c0_i32_1 = arith.constant 0 : i32
    return %c0_i32, %c0_i32_0 : i32, i32
  }
  func.func @transform_5(%arg0: i32) -> (i32, i32) {
    %c0_i32 = arith.constant 0 : i32
    %c0_i32_0 = arith.constant 0 : i32
    %c0_i32_1 = arith.constant 0 : i32
    return %c0_i32, %c0_i32_0 : i32, i32
  }
}

module attributes {stable_mosaic.version = 11 : i64} {
  func.func @_dual_matmul_lrelu_kernel(%arg0: i32, %arg1: memref<512x64xbf16, #tpu.memory_space<vmem>>, %arg2: memref<64x64xbf16, #tpu.memory_space<vmem>>, %arg3: memref<128x64xbf16, #tpu.memory_space<vmem>>, %arg4: memref<64x64xbf16, #tpu.memory_space<vmem>>, %arg5: memref<512x64xf32, #tpu.memory_space<vmem>>, %arg6: memref<128x64xf32, #tpu.memory_space<vmem>>) attributes {dimension_semantics = [#tpu.dimension_semantics<arbitrary>], iteration_bounds = array<i64: 1>, scalar_prefetch = 0 : i64, scratch_operands = 0 : i64, tpu.core_type = #tpu.core_type<tc>, window_params = [{pipeline_mode = #tpu.pipeline_mode<synchronous>, transform_indices = @transform_0, window_bounds = array<i64: 512, 64>}, {pipeline_mode = #tpu.pipeline_mode<synchronous>, transform_indices = @transform_1, window_bounds = array<i64: 64, 64>}, {pipeline_mode = #tpu.pipeline_mode<synchronous>, transform_indices = @transform_2, window_bounds = array<i64: 128, 64>}, {pipeline_mode = #tpu.pipeline_mode<synchronous>, transform_indices = @transform_3, window_bounds = array<i64: 64, 64>}, {pipeline_mode = #tpu.pipeline_mode<synchronous>, transform_indices = @transform_4, window_bounds = array<i64: 512, 64>}, {pipeline_mode = #tpu.pipeline_mode<synchronous>, transform_indices = @transform_5, window_bounds = array<i64: 128, 64>}]} {
    %c0 = arith.constant 0 : index
    %c0_0 = arith.constant 0 : index
    %0 = vector.load %arg1[%c0, %c0_0] : memref<512x64xbf16, #tpu.memory_space<vmem>>, vector<512x64xbf16>
    %c0_1 = arith.constant 0 : index
    %c0_2 = arith.constant 0 : index
    %1 = vector.load %arg2[%c0_1, %c0_2] : memref<64x64xbf16, #tpu.memory_space<vmem>>, vector<64x64xbf16>
    %cst = arith.constant dense<0.000000e+00> : vector<512x64xf32>
    %2 = tpu.matmul %0, %1, %cst {dimension_numbers = #tpu.dot_dimension_numbers<[1], [0], [0], [1], [0, 0, 1, 1], [], []>} : vector<512x64xbf16>, vector<64x64xbf16>, vector<512x64xf32> -> vector<512x64xf32>
    %c0_3 = arith.constant 0 : index
    %c0_4 = arith.constant 0 : index
    %3 = vector.load %arg3[%c0_3, %c0_4] : memref<128x64xbf16, #tpu.memory_space<vmem>>, vector<128x64xbf16>
    %c0_5 = arith.constant 0 : index
    %c0_6 = arith.constant 0 : index
    %4 = vector.load %arg4[%c0_5, %c0_6] : memref<64x64xbf16, #tpu.memory_space<vmem>>, vector<64x64xbf16>
    %cst_7 = arith.constant dense<0.000000e+00> : vector<128x64xf32>
    %5 = tpu.matmul %3, %4, %cst_7 {dimension_numbers = #tpu.dot_dimension_numbers<[1], [0], [0], [1], [0, 0, 1, 1], [], []>} : vector<128x64xbf16>, vector<64x64xbf16>, vector<128x64xf32> -> vector<128x64xf32>
    %cst_8 = arith.constant 0.000000e+00 : f32
    %6 = vector.broadcast %cst_8 : f32 to vector<512x64xf32>
    %7 = arith.cmpf oge, %2, %6 : vector<512x64xf32>
    %cst_9 = arith.constant 2.000000e-01 : f32
    %8 = vector.broadcast %cst_9 : f32 to vector<512x64xf32>
    %9 = arith.mulf %8, %2 : vector<512x64xf32>
    %10 = arith.select %7, %2, %9 : vector<512x64xi1>, vector<512x64xf32>
    %c0_10 = arith.constant 0 : index
    %c0_11 = arith.constant 0 : index
    %11 = vector.load %arg5[%c0_10, %c0_11] : memref<512x64xf32, #tpu.memory_space<vmem>>, vector<512x64xf32>
    tpu.vector_store %arg5[%c0_10, %c0_11], %10 {strides = array<i32>} : memref<512x64xf32, #tpu.memory_space<vmem>>, vector<512x64xf32>,
    %cst_12 = arith.constant 0.000000e+00 : f32
    %12 = vector.broadcast %cst_12 : f32 to vector<128x64xf32>
    %13 = arith.cmpf oge, %5, %12 : vector<128x64xf32>
    %cst_13 = arith.constant 2.000000e-01 : f32
    %14 = vector.broadcast %cst_13 : f32 to vector<128x64xf32>
    %15 = arith.mulf %14, %5 : vector<128x64xf32>
    %16 = arith.select %13, %5, %15 : vector<128x64xi1>, vector<128x64xf32>
    %c0_14 = arith.constant 0 : index
    %c0_15 = arith.constant 0 : index
    %17 = vector.load %arg6[%c0_14, %c0_15] : memref<128x64xf32, #tpu.memory_space<vmem>>, vector<128x64xf32>
    tpu.vector_store %arg6[%c0_14, %c0_15], %16 {strides = array<i32>} : memref<128x64xf32, #tpu.memory_space<vmem>>, vector<128x64xf32>,
    return
  }
  func.func @transform_0(%arg0: i32) -> (i32, i32) {
    %c0_i32 = arith.constant 0 : i32
    %c0_i32_0 = arith.constant 0 : i32
    %c0_i32_1 = arith.constant 0 : i32
    return %c0_i32, %c0_i32_0 : i32, i32
  }
  func.func @transform_1(%arg0: i32) -> (i32, i32) {
    %c0_i32 = arith.constant 0 : i32
    %c0_i32_0 = arith.constant 0 : i32
    %c0_i32_1 = arith.constant 0 : i32
    return %c0_i32, %c0_i32_0 : i32, i32
  }
  func.func @transform_2(%arg0: i32) -> (i32, i32) {
    %c0_i32 = arith.constant 0 : i32
    %c0_i32_0 = arith.constant 0 : i32
    %c0_i32_1 = arith.constant 0 : i32
    return %c0_i32, %c0_i32_0 : i32, i32
  }
  func.func @transform_3(%arg0: i32) -> (i32, i32) {
    %c0_i32 = arith.constant 0 : i32
    %c0_i32_0 = arith.constant 0 : i32
    %c0_i32_1 = arith.constant 0 : i32
    return %c0_i32, %c0_i32_0 : i32, i32
  }
  func.func @transform_4(%arg0: i32) -> (i32, i32) {
    %c0_i32 = arith.constant 0 : i32
    %c0_i32_0 = arith.constant 0 : i32
    %c0_i32_1 = arith.constant 0 : i32
    return %c0_i32, %c0_i32_0 : i32, i32
  }
  func.func @transform_5(%arg0: i32) -> (i32, i32) {
    %c0_i32 = arith.constant 0 : i32
    %c0_i32_0 = arith.constant 0 : i32
    %c0_i32_1 = arith.constant 0 : i32
    return %c0_i32, %c0_i32_0 : i32, i32
  }
}

module attributes {stable_mosaic.version = 11 : i64} {
  func.func @_depthwise_lrelu_kernel(%arg0: i32, %arg1: memref<9x128x128xbf16, #tpu.memory_space<vmem>>, %arg2: memref<9x128xf32, #tpu.memory_space<vmem>>, %arg3: memref<128x128xf32, #tpu.memory_space<vmem>>) attributes {dimension_semantics = [#tpu.dimension_semantics<arbitrary>], iteration_bounds = array<i64: 1>, scalar_prefetch = 0 : i64, scratch_operands = 0 : i64, tpu.core_type = #tpu.core_type<tc>, window_params = [{pipeline_mode = #tpu.pipeline_mode<synchronous>, transform_indices = @transform_0, window_bounds = array<i64: 9, 128, 128>}, {pipeline_mode = #tpu.pipeline_mode<synchronous>, transform_indices = @transform_1, window_bounds = array<i64: 9, 128>}, {pipeline_mode = #tpu.pipeline_mode<synchronous>, transform_indices = @transform_2, window_bounds = array<i64: 128, 128>}]} {
    %cst = arith.constant 0.000000e+00 : f32
    %0 = vector.broadcast %cst : f32 to vector<128x128xf32>
    %c0 = arith.constant 0 : index
    %c0_0 = arith.constant 0 : index
    %c0_1 = arith.constant 0 : index
    %1 = vector.load %arg1[%c0, %c0_0, %c0_1] : memref<9x128x128xbf16, #tpu.memory_space<vmem>>, vector<1x128x128xbf16>
    %2 = vector.shape_cast %1 : vector<1x128x128xbf16> to vector<128x128xbf16>
    %3 = arith.extf %2 : vector<128x128xbf16> to vector<128x128xf32>
    %c0_2 = arith.constant 0 : index
    %c0_3 = arith.constant 0 : index
    %4 = vector.load %arg2[%c0_2, %c0_3] : memref<9x128xf32, #tpu.memory_space<vmem>>, vector<1x128xf32>
    %5 = vector.broadcast %4 : vector<1x128xf32> to vector<128x128xf32>
    %6 = arith.mulf %3, %5 : vector<128x128xf32>
    %7 = arith.addf %0, %6 : vector<128x128xf32>
    %c1 = arith.constant 1 : index
    %c0_4 = arith.constant 0 : index
    %c0_5 = arith.constant 0 : index
    %8 = vector.load %arg1[%c1, %c0_4, %c0_5] : memref<9x128x128xbf16, #tpu.memory_space<vmem>>, vector<1x128x128xbf16>
    %9 = vector.shape_cast %8 : vector<1x128x128xbf16> to vector<128x128xbf16>
    %10 = arith.extf %9 : vector<128x128xbf16> to vector<128x128xf32>
    %c1_6 = arith.constant 1 : index
    %c0_7 = arith.constant 0 : index
    %11 = vector.load %arg2[%c1_6, %c0_7] : memref<9x128xf32, #tpu.memory_space<vmem>>, vector<1x128xf32>
    %12 = vector.broadcast %11 : vector<1x128xf32> to vector<128x128xf32>
    %13 = arith.mulf %10, %12 : vector<128x128xf32>
    %14 = arith.addf %7, %13 : vector<128x128xf32>
    %c2 = arith.constant 2 : index
    %c0_8 = arith.constant 0 : index
    %c0_9 = arith.constant 0 : index
    %15 = vector.load %arg1[%c2, %c0_8, %c0_9] : memref<9x128x128xbf16, #tpu.memory_space<vmem>>, vector<1x128x128xbf16>
    %16 = vector.shape_cast %15 : vector<1x128x128xbf16> to vector<128x128xbf16>
    %17 = arith.extf %16 : vector<128x128xbf16> to vector<128x128xf32>
    %c2_10 = arith.constant 2 : index
    %c0_11 = arith.constant 0 : index
    %18 = vector.load %arg2[%c2_10, %c0_11] : memref<9x128xf32, #tpu.memory_space<vmem>>, vector<1x128xf32>
    %19 = vector.broadcast %18 : vector<1x128xf32> to vector<128x128xf32>
    %20 = arith.mulf %17, %19 : vector<128x128xf32>
    %21 = arith.addf %14, %20 : vector<128x128xf32>
    %c3 = arith.constant 3 : index
    %c0_12 = arith.constant 0 : index
    %c0_13 = arith.constant 0 : index
    %22 = vector.load %arg1[%c3, %c0_12, %c0_13] : memref<9x128x128xbf16, #tpu.memory_space<vmem>>, vector<1x128x128xbf16>
    %23 = vector.shape_cast %22 : vector<1x128x128xbf16> to vector<128x128xbf16>
    %24 = arith.extf %23 : vector<128x128xbf16> to vector<128x128xf32>
    %c3_14 = arith.constant 3 : index
    %c0_15 = arith.constant 0 : index
    %25 = vector.load %arg2[%c3_14, %c0_15] : memref<9x128xf32, #tpu.memory_space<vmem>>, vector<1x128xf32>
    %26 = vector.broadcast %25 : vector<1x128xf32> to vector<128x128xf32>
    %27 = arith.mulf %24, %26 : vector<128x128xf32>
    %28 = arith.addf %21, %27 : vector<128x128xf32>
    %c4 = arith.constant 4 : index
    %c0_16 = arith.constant 0 : index
    %c0_17 = arith.constant 0 : index
    %29 = vector.load %arg1[%c4, %c0_16, %c0_17] : memref<9x128x128xbf16, #tpu.memory_space<vmem>>, vector<1x128x128xbf16>
    %30 = vector.shape_cast %29 : vector<1x128x128xbf16> to vector<128x128xbf16>
    %31 = arith.extf %30 : vector<128x128xbf16> to vector<128x128xf32>
    %c4_18 = arith.constant 4 : index
    %c0_19 = arith.constant 0 : index
    %32 = vector.load %arg2[%c4_18, %c0_19] : memref<9x128xf32, #tpu.memory_space<vmem>>, vector<1x128xf32>
    %33 = vector.broadcast %32 : vector<1x128xf32> to vector<128x128xf32>
    %34 = arith.mulf %31, %33 : vector<128x128xf32>
    %35 = arith.addf %28, %34 : vector<128x128xf32>
    %c5 = arith.constant 5 : index
    %c0_20 = arith.constant 0 : index
    %c0_21 = arith.constant 0 : index
    %36 = vector.load %arg1[%c5, %c0_20, %c0_21] : memref<9x128x128xbf16, #tpu.memory_space<vmem>>, vector<1x128x128xbf16>
    %37 = vector.shape_cast %36 : vector<1x128x128xbf16> to vector<128x128xbf16>
    %38 = arith.extf %37 : vector<128x128xbf16> to vector<128x128xf32>
    %c5_22 = arith.constant 5 : index
    %c0_23 = arith.constant 0 : index
    %39 = vector.load %arg2[%c5_22, %c0_23] : memref<9x128xf32, #tpu.memory_space<vmem>>, vector<1x128xf32>
    %40 = vector.broadcast %39 : vector<1x128xf32> to vector<128x128xf32>
    %41 = arith.mulf %38, %40 : vector<128x128xf32>
    %42 = arith.addf %35, %41 : vector<128x128xf32>
    %c6 = arith.constant 6 : index
    %c0_24 = arith.constant 0 : index
    %c0_25 = arith.constant 0 : index
    %43 = vector.load %arg1[%c6, %c0_24, %c0_25] : memref<9x128x128xbf16, #tpu.memory_space<vmem>>, vector<1x128x128xbf16>
    %44 = vector.shape_cast %43 : vector<1x128x128xbf16> to vector<128x128xbf16>
    %45 = arith.extf %44 : vector<128x128xbf16> to vector<128x128xf32>
    %c6_26 = arith.constant 6 : index
    %c0_27 = arith.constant 0 : index
    %46 = vector.load %arg2[%c6_26, %c0_27] : memref<9x128xf32, #tpu.memory_space<vmem>>, vector<1x128xf32>
    %47 = vector.broadcast %46 : vector<1x128xf32> to vector<128x128xf32>
    %48 = arith.mulf %45, %47 : vector<128x128xf32>
    %49 = arith.addf %42, %48 : vector<128x128xf32>
    %c7 = arith.constant 7 : index
    %c0_28 = arith.constant 0 : index
    %c0_29 = arith.constant 0 : index
    %50 = vector.load %arg1[%c7, %c0_28, %c0_29] : memref<9x128x128xbf16, #tpu.memory_space<vmem>>, vector<1x128x128xbf16>
    %51 = vector.shape_cast %50 : vector<1x128x128xbf16> to vector<128x128xbf16>
    %52 = arith.extf %51 : vector<128x128xbf16> to vector<128x128xf32>
    %c7_30 = arith.constant 7 : index
    %c0_31 = arith.constant 0 : index
    %53 = vector.load %arg2[%c7_30, %c0_31] : memref<9x128xf32, #tpu.memory_space<vmem>>, vector<1x128xf32>
    %54 = vector.broadcast %53 : vector<1x128xf32> to vector<128x128xf32>
    %55 = arith.mulf %52, %54 : vector<128x128xf32>
    %56 = arith.addf %49, %55 : vector<128x128xf32>
    %c8 = arith.constant 8 : index
    %c0_32 = arith.constant 0 : index
    %c0_33 = arith.constant 0 : index
    %57 = vector.load %arg1[%c8, %c0_32, %c0_33] : memref<9x128x128xbf16, #tpu.memory_space<vmem>>, vector<1x128x128xbf16>
    %58 = vector.shape_cast %57 : vector<1x128x128xbf16> to vector<128x128xbf16>
    %59 = arith.extf %58 : vector<128x128xbf16> to vector<128x128xf32>
    %c8_34 = arith.constant 8 : index
    %c0_35 = arith.constant 0 : index
    %60 = vector.load %arg2[%c8_34, %c0_35] : memref<9x128xf32, #tpu.memory_space<vmem>>, vector<1x128xf32>
    %61 = vector.broadcast %60 : vector<1x128xf32> to vector<128x128xf32>
    %62 = arith.mulf %59, %61 : vector<128x128xf32>
    %63 = arith.addf %56, %62 : vector<128x128xf32>
    %cst_36 = arith.constant 0.000000e+00 : f32
    %64 = vector.broadcast %cst_36 : f32 to vector<128x128xf32>
    %65 = arith.cmpf oge, %63, %64 : vector<128x128xf32>
    %cst_37 = arith.constant 2.000000e-01 : f32
    %66 = vector.broadcast %cst_37 : f32 to vector<128x128xf32>
    %67 = arith.mulf %66, %63 : vector<128x128xf32>
    %68 = arith.select %65, %63, %67 : vector<128x128xi1>, vector<128x128xf32>
    %c0_38 = arith.constant 0 : index
    %c0_39 = arith.constant 0 : index
    %69 = vector.load %arg3[%c0_38, %c0_39] : memref<128x128xf32, #tpu.memory_space<vmem>>, vector<128x128xf32>
    tpu.vector_store %arg3[%c0_38, %c0_39], %68 {strides = array<i32>} : memref<128x128xf32, #tpu.memory_space<vmem>>, vector<128x128xf32>,
    return
  }
  func.func @transform_0(%arg0: i32) -> (i32, i32, i32) {
    %c0_i32 = arith.constant 0 : i32
    %c0_i32_0 = arith.constant 0 : i32
    %c0_i32_1 = arith.constant 0 : i32
    %c0_i32_2 = arith.constant 0 : i32
    return %c0_i32, %c0_i32_0, %c0_i32_1 : i32, i32, i32
  }
  func.func @transform_1(%arg0: i32) -> (i32, i32) {
    %c0_i32 = arith.constant 0 : i32
    %c0_i32_0 = arith.constant 0 : i32
    %c0_i32_1 = arith.constant 0 : i32
    return %c0_i32, %c0_i32_0 : i32, i32
  }
  func.func @transform_2(%arg0: i32) -> (i32, i32) {
    %c0_i32 = arith.constant 0 : i32
    %c0_i32_0 = arith.constant 0 : i32
    %c0_i32_1 = arith.constant 0 : i32
    return %c0_i32, %c0_i32_0 : i32, i32
  }
}

module attributes {stable_mosaic.version = 11 : i64} {
  func.func @_dual_matmul_lrelu_kernel(%arg0: i32, %arg1: memref<128x128xbf16, #tpu.memory_space<vmem>>, %arg2: memref<128x128xbf16, #tpu.memory_space<vmem>>, %arg3: memref<32x128xbf16, #tpu.memory_space<vmem>>, %arg4: memref<128x128xbf16, #tpu.memory_space<vmem>>, %arg5: memref<128x128xf32, #tpu.memory_space<vmem>>, %arg6: memref<32x128xf32, #tpu.memory_space<vmem>>) attributes {dimension_semantics = [#tpu.dimension_semantics<arbitrary>], iteration_bounds = array<i64: 1>, scalar_prefetch = 0 : i64, scratch_operands = 0 : i64, tpu.core_type = #tpu.core_type<tc>, window_params = [{pipeline_mode = #tpu.pipeline_mode<synchronous>, transform_indices = @transform_0, window_bounds = array<i64: 128, 128>}, {pipeline_mode = #tpu.pipeline_mode<synchronous>, transform_indices = @transform_1, window_bounds = array<i64: 128, 128>}, {pipeline_mode = #tpu.pipeline_mode<synchronous>, transform_indices = @transform_2, window_bounds = array<i64: 32, 128>}, {pipeline_mode = #tpu.pipeline_mode<synchronous>, transform_indices = @transform_3, window_bounds = array<i64: 128, 128>}, {pipeline_mode = #tpu.pipeline_mode<synchronous>, transform_indices = @transform_4, window_bounds = array<i64: 128, 128>}, {pipeline_mode = #tpu.pipeline_mode<synchronous>, transform_indices = @transform_5, window_bounds = array<i64: 32, 128>}]} {
    %c0 = arith.constant 0 : index
    %c0_0 = arith.constant 0 : index
    %0 = vector.load %arg1[%c0, %c0_0] : memref<128x128xbf16, #tpu.memory_space<vmem>>, vector<128x128xbf16>
    %c0_1 = arith.constant 0 : index
    %c0_2 = arith.constant 0 : index
    %1 = vector.load %arg2[%c0_1, %c0_2] : memref<128x128xbf16, #tpu.memory_space<vmem>>, vector<128x128xbf16>
    %cst = arith.constant dense<0.000000e+00> : vector<128x128xf32>
    %2 = tpu.matmul %0, %1, %cst {dimension_numbers = #tpu.dot_dimension_numbers<[1], [0], [0], [1], [0, 0, 1, 1], [], []>} : vector<128x128xbf16>, vector<128x128xbf16>, vector<128x128xf32> -> vector<128x128xf32>
    %c0_3 = arith.constant 0 : index
    %c0_4 = arith.constant 0 : index
    %3 = vector.load %arg3[%c0_3, %c0_4] : memref<32x128xbf16, #tpu.memory_space<vmem>>, vector<32x128xbf16>
    %c0_5 = arith.constant 0 : index
    %c0_6 = arith.constant 0 : index
    %4 = vector.load %arg4[%c0_5, %c0_6] : memref<128x128xbf16, #tpu.memory_space<vmem>>, vector<128x128xbf16>
    %cst_7 = arith.constant dense<0.000000e+00> : vector<32x128xf32>
    %5 = tpu.matmul %3, %4, %cst_7 {dimension_numbers = #tpu.dot_dimension_numbers<[1], [0], [0], [1], [0, 0, 1, 1], [], []>} : vector<32x128xbf16>, vector<128x128xbf16>, vector<32x128xf32> -> vector<32x128xf32>
    %cst_8 = arith.constant 0.000000e+00 : f32
    %6 = vector.broadcast %cst_8 : f32 to vector<128x128xf32>
    %7 = arith.cmpf oge, %2, %6 : vector<128x128xf32>
    %cst_9 = arith.constant 2.000000e-01 : f32
    %8 = vector.broadcast %cst_9 : f32 to vector<128x128xf32>
    %9 = arith.mulf %8, %2 : vector<128x128xf32>
    %10 = arith.select %7, %2, %9 : vector<128x128xi1>, vector<128x128xf32>
    %c0_10 = arith.constant 0 : index
    %c0_11 = arith.constant 0 : index
    %11 = vector.load %arg5[%c0_10, %c0_11] : memref<128x128xf32, #tpu.memory_space<vmem>>, vector<128x128xf32>
    tpu.vector_store %arg5[%c0_10, %c0_11], %10 {strides = array<i32>} : memref<128x128xf32, #tpu.memory_space<vmem>>, vector<128x128xf32>,
    %cst_12 = arith.constant 0.000000e+00 : f32
    %12 = vector.broadcast %cst_12 : f32 to vector<32x128xf32>
    %13 = arith.cmpf oge, %5, %12 : vector<32x128xf32>
    %cst_13 = arith.constant 2.000000e-01 : f32
    %14 = vector.broadcast %cst_13 : f32 to vector<32x128xf32>
    %15 = arith.mulf %14, %5 : vector<32x128xf32>
    %16 = arith.select %13, %5, %15 : vector<32x128xi1>, vector<32x128xf32>
    %c0_14 = arith.constant 0 : index
    %c0_15 = arith.constant 0 : index
    %17 = vector.load %arg6[%c0_14, %c0_15] : memref<32x128xf32, #tpu.memory_space<vmem>>, vector<32x128xf32>
    tpu.vector_store %arg6[%c0_14, %c0_15], %16 {strides = array<i32>} : memref<32x128xf32, #tpu.memory_space<vmem>>, vector<32x128xf32>,
    return
  }
  func.func @transform_0(%arg0: i32) -> (i32, i32) {
    %c0_i32 = arith.constant 0 : i32
    %c0_i32_0 = arith.constant 0 : i32
    %c0_i32_1 = arith.constant 0 : i32
    return %c0_i32, %c0_i32_0 : i32, i32
  }
  func.func @transform_1(%arg0: i32) -> (i32, i32) {
    %c0_i32 = arith.constant 0 : i32
    %c0_i32_0 = arith.constant 0 : i32
    %c0_i32_1 = arith.constant 0 : i32
    return %c0_i32, %c0_i32_0 : i32, i32
  }
  func.func @transform_2(%arg0: i32) -> (i32, i32) {
    %c0_i32 = arith.constant 0 : i32
    %c0_i32_0 = arith.constant 0 : i32
    %c0_i32_1 = arith.constant 0 : i32
    return %c0_i32, %c0_i32_0 : i32, i32
  }
  func.func @transform_3(%arg0: i32) -> (i32, i32) {
    %c0_i32 = arith.constant 0 : i32
    %c0_i32_0 = arith.constant 0 : i32
    %c0_i32_1 = arith.constant 0 : i32
    return %c0_i32, %c0_i32_0 : i32, i32
  }
  func.func @transform_4(%arg0: i32) -> (i32, i32) {
    %c0_i32 = arith.constant 0 : i32
    %c0_i32_0 = arith.constant 0 : i32
    %c0_i32_1 = arith.constant 0 : i32
    return %c0_i32, %c0_i32_0 : i32, i32
  }
  func.func @transform_5(%arg0: i32) -> (i32, i32) {
    %c0_i32 = arith.constant 0 : i32
    %c0_i32_0 = arith.constant 0 : i32
    %c0_i32_1 = arith.constant 0 : i32
    return %c0_i32, %c0_i32_0 : i32, i32
  }
}

</mosaic_0001>

<llo_original>
// kernel: encoder_forward.5
$region0: #{encoder_forward.5}
  #allocation0 [shape = 'u32[]', space=smem, size = 0x4, offset = 0x4, fixed_abs, tag = 'smem constant byte address 0x4 - core index']
  #allocation1 [shape = 'u32[72,128]{1,0:T(1,128)}', space=vmem, size = 0x9000, scoped, tag = 'internal scratch']
  %s0 = inlined_call_operand.vmem [shape: bf16[2048,147], index: 0, kind: input, shape index: {}]
  %s1 = inlined_call_operand.vmem [shape: bf16[147,64], index: 1, kind: input, shape index: {}]
  %s2 = inlined_call_operand.vmem [shape: f32[1,64], index: 2, kind: input, shape index: {}]
  %s3 = inlined_call_operand.vmem [shape: f32[2048,64], index: 3, kind: output, shape index: {}]
  %s4 = sld [smem:[#allocation0]]
  $region45: #{encoder_forward.5} parent=0
    _
  %s6 = ssub.s32 1, %s4
  %s7 = scalar_select 0, %s6, %s4
  loop: start=0, step=1, limit=10
  $region2: #{encoder_forward.5} parent=0 // loop_pre_header
    _
  $region3: #{encoder_forward.5} parent=0 // loop_header
    %s9 = sphi 0, %s13
    %p10 = scmp.ge.s32.totalorder %s9, 10
    %s19 = sphi 0, %s21
    %s22 = sphi 0, %s19
    %s23 = sphi 0, %s22
    %s39 = sphi 0, %s23
    %s43 = sphi 0, %s43
    %s45 = sphi 0, %s43
    %s46 = sphi 0, %s45
    %s60 = sphi 0, %s46
    %s64 = sphi 0, %s64
    %s66 = sphi 0, %s64
    %s67 = sphi 0, %s66
    %s81 = sphi 0, %s67
    %s87 = sphi 0, %s89
    %s90 = sphi 0, %s87
    %s91 = sphi 0, %s90
    %s107 = sphi 0, %s91
  $region4: #{encoder_forward.5} parent=0 // loop_header_branch
    %12 = sbr.rel (%p10) target = $region8
  $region5: #{encoder_forward.5} parent=0 // loop_body
    %s14 = ssub.s32 %s9, 1
    %s15 = ssub.s32 %s9, 2
    %s16 = sadd.s32 %s9, 1
    %s17 = ssub.s32 %s9, %s16
    %p18 = scmp.eq.s32.totalorder %s17, 0
    %s20 = sadd.s32 %s19, 1
    %s21 = scalar_select %p18, %s19, %s20
    %p24 = pneg %p18
    %p25 = scmp.eq.s32.totalorder %s9, 7
    %p26 = por %p24, %p25
    %p27 = scmp.ne.s32.totalorder %s19, %s22
    %p28 = scmp.eq.s32.totalorder %s9, 0
    %p29 = por %p27, %p28
    %p30 = scmp.ne.s32.totalorder %s19, %s22
    %p31 = scmp.eq.s32.totalorder %s14, 7
    %p32 = por %p30, %p31
    %p33 = scmp.ne.s32.totalorder %s22, %s23
    %p34 = scmp.eq.s32.totalorder %s14, 0
    %p35 = por %p33, %p34
    %p36 = scmp.ne.s32.totalorder %s22, %s23
    %p37 = scmp.eq.s32.totalorder %s15, 7
    %p38 = por %p36, %p37
    %p40 = scmp.ne.s32.totalorder %s23, %s39
    %p41 = scmp.eq.s32.totalorder %s15, 0
    %p42 = por %p40, %p41
    %s44 = sadd.s32 %s43, 1
    %p47 = scmp.eq.s32.totalorder %s9, 7
    %p48 = scmp.ne.s32.totalorder %s43, %s45
    %p49 = scmp.eq.s32.totalorder %s9, 0
    %p50 = por %p48, %p49
    %p51 = scmp.ne.s32.totalorder %s43, %s45
    %p52 = scmp.eq.s32.totalorder %s14, 7
    %p53 = por %p51, %p52
    %p54 = scmp.ne.s32.totalorder %s45, %s46
    %p55 = scmp.eq.s32.totalorder %s14, 0
    %p56 = por %p54, %p55
    %p57 = scmp.ne.s32.totalorder %s45, %s46
    %p58 = scmp.eq.s32.totalorder %s15, 7
    %p59 = por %p57, %p58
    %p61 = scmp.ne.s32.totalorder %s46, %s60
    %p62 = scmp.eq.s32.totalorder %s15, 0
    %p63 = por %p61, %p62
    %s65 = sadd.s32 %s64, 1
    %p68 = scmp.eq.s32.totalorder %s9, 7
    %p69 = scmp.ne.s32.totalorder %s64, %s66
    %p70 = scmp.eq.s32.totalorder %s9, 0
    %p71 = por %p69, %p70
    %p72 = scmp.ne.s32.totalorder %s64, %s66
    %p73 = scmp.eq.s32.totalorder %s14, 7
    %p74 = por %p72, %p73
    %p75 = scmp.ne.s32.totalorder %s66, %s67
    %p76 = scmp.eq.s32.totalorder %s14, 0
    %p77 = por %p75, %p76
    %p78 = scmp.ne.s32.totalorder %s66, %s67
    %p79 = scmp.eq.s32.totalorder %s15, 7
    %p80 = por %p78, %p79
    %p82 = scmp.ne.s32.totalorder %s67, %s81
    %p83 = scmp.eq.s32.totalorder %s15, 0
    %p84 = por %p82, %p83
    %s85 = ssub.s32 %s9, %s16
    %p86 = scmp.eq.s32.totalorder %s85, 0
    %s88 = sadd.s32 %s87, 1
    %s89 = scalar_select %p86, %s87, %s88
    %p92 = pneg %p86
    %p93 = scmp.eq.s32.totalorder %s9, 7
    %p94 = por %p92, %p93
    %p95 = scmp.ne.s32.totalorder %s87, %s90
    %p96 = scmp.eq.s32.totalorder %s9, 0
    %p97 = por %p95, %p96
    %p98 = scmp.ne.s32.totalorder %s87, %s90
    %p99 = scmp.eq.s32.totalorder %s14, 7
    %p100 = por %p98, %p99
    %p101 = scmp.ne.s32.totalorder %s90, %s91
    %p102 = scmp.eq.s32.totalorder %s14, 0
    %p103 = por %p101, %p102
    %p104 = scmp.ne.s32.totalorder %s90, %s91
    %p105 = scmp.eq.s32.totalorder %s15, 7
    %p106 = por %p104, %p105
    %p108 = scmp.ne.s32.totalorder %s91, %s107
    %p109 = scmp.eq.s32.totalorder %s15, 0
    %p110 = por %p108, %p109
    %p111 = scmp.le.s32.totalorder 1, %s9
    %p112 = scmp.lt.s32.totalorder %s9, 9
    %p113 = pnand %p111, %p112
    %p114 = pneg %p113
    // Predicated region
    $region9: #{encoder_forward.5} parent=5 // pred_check
      _
    $region10: #{encoder_forward.5} parent=5 // pred_check_branch
      %116 = sbr.rel (%p113) target = $region12
    $region11: #{encoder_forward.5} parent=5 // pred_region
      %s117 = ssub.s32 %s9, 1
      // Predicated region
      $region13: #{encoder_forward.5} parent=11 // pred_check
        %p118 = pneg %p56
      $region14: #{encoder_forward.5} parent=11 // pred_check_branch
        %120 = sbr.rel (%p118) target = $region16
      $region15: #{encoder_forward.5} parent=11 // pred_region
        _
      $region16: #{encoder_forward.5} parent=11 // pred_fallthru
        _
      // Predicated region
      $region17: #{encoder_forward.5} parent=11 // pred_check
        %p121 = pneg %p77
      $region18: #{encoder_forward.5} parent=11 // pred_check_branch
        %123 = sbr.rel (%p121) target = $region20
      $region19: #{encoder_forward.5} parent=11 // pred_region
        _
      $region20: #{encoder_forward.5} parent=11 // pred_fallthru
        _
    $region12: #{encoder_forward.5} parent=5 // pred_fallthru
      _
    %p124 = scmp.lt.s32.totalorder %s9, 8
    // Predicated region
    $region21: #{encoder_forward.5} parent=5 // pred_check
      %p125 = pneg %p124
    $region22: #{encoder_forward.5} parent=5 // pred_check_branch
      %127 = sbr.rel (%p125) target = $region24
    $region23: #{encoder_forward.5} parent=5 // pred_region
      // Predicated region
      $region25: #{encoder_forward.5} parent=23 // pred_check
        %p128 = pneg %p29
      $region26: #{encoder_forward.5} parent=23 // pred_check_branch
        %130 = sbr.rel (%p128) target = $region28
      $region27: #{encoder_forward.5} parent=23 // pred_region
        %s131 = smul.u32 32, %s9
        %p132 = scmp.lt.s32.totalorder %s131, 255
        %s133 = scalar_select %p132, %s131, 255
        %s134 = smul.addr %s133, 2
        %s135 = smul.addr %s134, 4
        %s136 = scalar_lea.vmem %s0, %s135
        %s137 = smul.u32 32, %s9
      $region28: #{encoder_forward.5} parent=23 // pred_fallthru
        _
    $region24: #{encoder_forward.5} parent=5 // pred_fallthru
      _
    %p138 = scmp.le.s32.totalorder 1, %s9
    %p139 = scmp.lt.s32.totalorder %s9, 9
    %p140 = pnand %p138, %p139
    %p141 = pneg %p140
    // Predicated region
    $region29: #{encoder_forward.5} parent=5 // pred_check
      _
    $region30: #{encoder_forward.5} parent=5 // pred_check_branch
      %143 = sbr.rel (%p140) target = $region32
    $region31: #{encoder_forward.5} parent=5 // pred_region
      %s144 = ssub.s32 %s9, 1
      %s145 = smul.u32 32, %s14
      %p146 = scmp.lt.s32.totalorder %s145, 255
      %s147 = scalar_select %p146, %s145, 255
      %s148 = smul.addr %s147, 2
      %s149 = smul.addr %s148, 4
      %s150 = scalar_lea.vmem %s0, %s149
      %p151 = pneg %p35
      %p152 = pneg %p32
      %p153 = pneg %p56
      %p154 = pneg %p53
      %p155 = pneg %p77
      %p156 = pneg %p74
      %p157 = pneg %p103
      %p158 = pneg %p100
      %s159 = smul.u32 32, %s14
      %p160 = scmp.lt.s32.totalorder %s159, 255
      %s161 = scalar_select %p160, %s159, 255
      %s162 = smul.addr %s161, 8
      %s163 = scalar_lea.vmem %s3, %s162
      %s164 = smul.u32 32, %s14
      %p165 = scmp.lt.s32.totalorder %s164, 255
      %s166 = scalar_select %p165, %s164, 255
      %s167 = smul.addr %s166, 2
      %s168 = smul.addr %s167, 4
      %s169 = scalar_lea.vmem %s0, %s168
      %s170 = smul.u32 32, %s14
      %s171 = smul.u32 32, %s14
      %p172 = scmp.lt.s32.totalorder %s171, 255
      %s173 = scalar_select %p172, %s171, 255
      %s174 = smul.addr %s173, 8
      %s175 = scalar_lea.vmem %s3, %s174
      %s176 = smul.u32 32, %s14
      %v178 = vld [vmem:[%s169] sm:$0xff]
      %v179 = vld [vmem:[%s169 + $0x8] sm:$0xff]
      %v180 = vld [vmem:[%s169 + $0x10] sm:$0xff]
      %v181 = vld [vmem:[%s169 + $0x18] sm:$0xff]
      %v182 = vld [vmem:[%s169 + $0x20] sm:$0xff]
      %v183 = vld [vmem:[%s169 + $0x28] sm:$0xff]
      %v184 = vld [vmem:[%s169 + $0x30] sm:$0xff]
      %v185 = vld [vmem:[%s169 + $0x38] sm:$0xff]
      %v186 = vld [vmem:[%s169 + $0x40] sm:$0xff]
      %v187 = vld [vmem:[%s169 + $0x48] sm:$0xff]
      %v188 = vld [vmem:[%s169 + $0x50] sm:$0xff]
      %v189 = vld [vmem:[%s169 + $0x58] sm:$0xff]
      %v190 = vld [vmem:[%s169 + $0x60] sm:$0xff]
      %v191 = vld [vmem:[%s169 + $0x68] sm:$0xff]
      %v192 = vld [vmem:[%s169 + $0x70] sm:$0xff]
      %v193 = vld [vmem:[%s169 + $0x78] sm:$0xff]
      %v194 = vld [vmem:[%s169 + $0x80] sm:$0xff]
      %v195 = vld [vmem:[%s169 + $0x88] sm:$0xff]
      %v196 = vld [vmem:[%s169 + $0x90] sm:$0xff]
      %v197 = vld [vmem:[%s169 + $0x98] sm:$0xff]
      %v198 = vld [vmem:[%s169 + $0xa0] sm:$0xff]
      %v199 = vld [vmem:[%s169 + $0xa8] sm:$0xff]
      %v200 = vld [vmem:[%s169 + $0xb0] sm:$0xff]
      %v201 = vld [vmem:[%s169 + $0xb8] sm:$0xff]
      %v202 = vld [vmem:[%s169 + $0xc0] sm:$0xff]
      %v203 = vld [vmem:[%s169 + $0xc8] sm:$0xff]
      %v204 = vld [vmem:[%s169 + $0xd0] sm:$0xff]
      %v205 = vld [vmem:[%s169 + $0xd8] sm:$0xff]
      %v206 = vld [vmem:[%s169 + $0xe0] sm:$0xff]
      %v207 = vld [vmem:[%s169 + $0xe8] sm:$0xff]
      %v208 = vld [vmem:[%s169 + $0xf0] sm:$0xff]
      %v209 = vld [vmem:[%s169 + $0xf8] sm:$0xff]
      %v210 = vld [vmem:[%s1] sm:$0xf]
      %v211 = vld [vmem:[%s1 + $0x4] sm:$0xf]
      %v212 = vld [vmem:[%s1 + $0x8] sm:$0xf]
      %v213 = vld [vmem:[%s1 + $0xc] sm:$0xf]
      %v214 = vld [vmem:[%s1 + $0x10] sm:$0xf]
      %v215 = vld [vmem:[%s1 + $0x14] sm:$0xf]
      %v216 = vld [vmem:[%s1 + $0x18] sm:$0xf]
      %v217 = vld [vmem:[%s1 + $0x1c] sm:$0xf]
      %v218 = vld [vmem:[%s1 + $0x20] sm:$0xf]
      %v219 = vld [vmem:[%s1 + $0x24] sm:$0xf]
      %v220 = vld [vmem:[%s1 + $0x28] sm:$0xf]
      %v221 = vld [vmem:[%s1 + $0x2c] sm:$0xf]
      %v222 = vld [vmem:[%s1 + $0x30] sm:$0xf]
      %v223 = vld [vmem:[%s1 + $0x34] sm:$0xf]
      %v224 = vld [vmem:[%s1 + $0x38] sm:$0xf]
      %v225 = vld [vmem:[%s1 + $0x3c] sm:$0xf]
      %v226 = vld [vmem:[%s1 + $0x40] sm:$0xf]
      %v227 = vld [vmem:[%s1 + $0x44] sm:$0xf]
      %v228 = vld [vmem:[%s1 + $0x48] sm:$0x3]
      %v229 = vld [vmem:[%s2] sm:$0x1]
      %v231 = vperm.slane %v229, 0
      %v265 = vunpack.c.l.b16 %v178
      %v266 = vunpack.c.h.b16 %v178
      %v267 = vunpack.c.l.b16 %v179
      %v268 = vunpack.c.h.b16 %v179
      %v269 = vunpack.c.l.b16 %v180
      %v270 = vunpack.c.h.b16 %v180
      %v271 = vunpack.c.l.b16 %v181
      %v272 = vunpack.c.h.b16 %v181
      %v273 = vunpack.c.l.b16 %v182
      %v274 = vunpack.c.h.b16 %v182
      %v275 = vunpack.c.l.b16 %v183
      %v276 = vunpack.c.h.b16 %v183
      %v277 = vunpack.c.l.b16 %v184
      %v278 = vunpack.c.h.b16 %v184
      %v279 = vunpack.c.l.b16 %v185
      %v280 = vunpack.c.h.b16 %v185
      %v281 = vunpack.c.l.b16 %v186
      %v282 = vunpack.c.h.b16 %v186
      %v283 = vunpack.c.l.b16 %v187
      %v284 = vunpack.c.h.b16 %v187
      %v285 = vunpack.c.l.b16 %v188
      %v286 = vunpack.c.h.b16 %v188
      %v287 = vunpack.c.l.b16 %v189
      %v288 = vunpack.c.h.b16 %v189
      %v289 = vunpack.c.l.b16 %v190
      %v290 = vunpack.c.h.b16 %v190
      %v291 = vunpack.c.l.b16 %v191
      %v292 = vunpack.c.h.b16 %v191
      %v293 = vunpack.c.l.b16 %v192
      %v294 = vunpack.c.h.b16 %v192
      %v295 = vunpack.c.l.b16 %v193
      %v296 = vunpack.c.h.b16 %v193
      %v297 = vunpack.c.l.b16 %v194
      %v298 = vunpack.c.h.b16 %v194
      %v299 = vunpack.c.l.b16 %v195
      %v300 = vunpack.c.h.b16 %v195
      %v301 = vunpack.c.l.b16 %v196
      %v302 = vunpack.c.h.b16 %v196
      %v303 = vunpack.c.l.b16 %v197
      %v304 = vunpack.c.h.b16 %v197
      %v305 = vunpack.c.l.b16 %v198
      %v306 = vunpack.c.h.b16 %v198
      %v307 = vunpack.c.l.b16 %v199
      %v308 = vunpack.c.h.b16 %v199
      %v309 = vunpack.c.l.b16 %v200
      %v310 = vunpack.c.h.b16 %v200
      %v311 = vunpack.c.l.b16 %v201
      %v312 = vunpack.c.h.b16 %v201
      %v313 = vunpack.c.l.b16 %v202
      %v314 = vunpack.c.h.b16 %v202
      %v315 = vunpack.c.l.b16 %v203
      %v316 = vunpack.c.h.b16 %v203
      %v317 = vunpack.c.l.b16 %v204
      %v318 = vunpack.c.h.b16 %v204
      %v319 = vunpack.c.l.b16 %v205
      %v320 = vunpack.c.h.b16 %v205
      %v321 = vunpack.c.l.b16 %v206
      %v322 = vunpack.c.h.b16 %v206
      %v323 = vunpack.c.l.b16 %v207
      %v324 = vunpack.c.h.b16 %v207
      %v325 = vunpack.c.l.b16 %v208
      %v326 = vunpack.c.h.b16 %v208
      %v327 = vunpack.c.l.b16 %v209
      %v328 = vunpack.c.h.b16 %v209
      %v329 = vpack.c.b16 %v267, %v265
      %v330 = vpack.c.b16 %v268, %v266
      %v331 = vpack.c.b16 %v271, %v269
      %v332 = vpack.c.b16 %v272, %v270
      %v333 = vpack.c.b16 %v275, %v273
      %v334 = vpack.c.b16 %v276, %v274
      %v335 = vpack.c.b16 %v279, %v277
      %v336 = vpack.c.b16 %v280, %v278
      %v337 = vpack.c.b16 %v283, %v281
      %v338 = vpack.c.b16 %v284, %v282
      %v339 = vpack.c.b16 %v287, %v285
      %v340 = vpack.c.b16 %v288, %v286
      %v341 = vpack.c.b16 %v291, %v289
      %v342 = vpack.c.b16 %v292, %v290
      %v343 = vpack.c.b16 %v295, %v293
      %v344 = vpack.c.b16 %v296, %v294
      %v345 = vpack.c.b16 %v299, %v297
      %v346 = vpack.c.b16 %v300, %v298
      %v347 = vpack.c.b16 %v303, %v301
      %v348 = vpack.c.b16 %v304, %v302
      %v349 = vpack.c.b16 %v307, %v305
      %v350 = vpack.c.b16 %v308, %v306
      %v351 = vpack.c.b16 %v311, %v309
      %v352 = vpack.c.b16 %v312, %v310
      %v353 = vpack.c.b16 %v315, %v313
      %v354 = vpack.c.b16 %v316, %v314
      %v355 = vpack.c.b16 %v319, %v317
      %v356 = vpack.c.b16 %v320, %v318
      %v357 = vpack.c.b16 %v323, %v321
      %v358 = vpack.c.b16 %v324, %v322
      %v359 = vpack.c.b16 %v327, %v325
      %v360 = vpack.c.b16 %v328, %v326
      %v396 = vunpack.c.l.b16 %v210
      %v397 = vunpack.c.l.b16 %v211
      %v398 = vunpack.c.l.b16 %v212
      %v399 = vunpack.c.l.b16 %v213
      %v400 = vunpack.c.l.b16 %v214
      %v401 = vunpack.c.l.b16 %v215
      %v402 = vunpack.c.l.b16 %v216
      %v403 = vunpack.c.l.b16 %v217
      %v404 = vunpack.c.l.b16 %v218
      %v405 = vunpack.c.l.b16 %v219
      %v406 = vunpack.c.l.b16 %v220
      %v407 = vunpack.c.l.b16 %v221
      %v408 = vunpack.c.l.b16 %v222
      %v409 = vunpack.c.l.b16 %v223
      %v410 = vunpack.c.l.b16 %v224
      %v411 = vunpack.c.l.b16 %v225
      %v412 = vunpack.c.l.b16 %v226
      %v413 = vunpack.c.l.b16 %v227
      %v414 = vunpack.c.l.b16 %v228
      %v415 = vpack.c.b16 %v397, %v396
      %v416 = vpack.c.b16 %v399, %v398
      %v417 = vpack.c.b16 %v401, %v400
      %v418 = vpack.c.b16 %v403, %v402
      %v419 = vpack.c.b16 %v405, %v404
      %v420 = vpack.c.b16 %v407, %v406
      %v421 = vpack.c.b16 %v409, %v408
      %v422 = vpack.c.b16 %v411, %v410
      %v423 = vpack.c.b16 %v413, %v412
      %v424 = vpack.c.b16 %v414, %v414
      %vm434 = vcmask 154624
      %v436 = vsel %vm434, %v330, 0
      %v439 = vsel %vm434, %v332, 0
      %v442 = vsel %vm434, %v334, 0
      %v445 = vsel %vm434, %v336, 0
      %v448 = vsel %vm434, %v338, 0
      %v451 = vsel %vm434, %v340, 0
      %v454 = vsel %vm434, %v342, 0
      %v457 = vsel %vm434, %v344, 0
      %v460 = vsel %vm434, %v346, 0
      %v463 = vsel %vm434, %v348, 0
      %v466 = vsel %vm434, %v350, 0
      %v469 = vsel %vm434, %v352, 0
      %v472 = vsel %vm434, %v354, 0
      %v475 = vsel %vm434, %v356, 0
      %v478 = vsel %vm434, %v358, 0
      %v481 = vsel %vm434, %v360, 0
      %vm483 = vcmask 1040384
      %vm484 = vcmask 1041408
      %v485 = vsel %vm483, 4294967295, 65535
      %v486 = vsel %vm484, %v485, 0
      %v488 = vand.u32 %v424, %v486
      %490 = vmatpush.bf16.msra.mxu0 %v422
      %491 = vmatpush.bf16.msra.mxu0 %v421
      %492 = vmatpush.bf16.msra.mxu0 %v420
      %493 = vmatpush.bf16.msra.mxu0 %v419
      %494 = vmatpush.bf16.msra.mxu0 %v418
      %495 = vmatpush.bf16.msra.mxu0 %v417
      %496 = vmatpush.bf16.msra.mxu0 %v416
      %497 = vmatpush.bf16.msra.mxu0 %v415
      %498 = vmatmul.bf16.gmra.mxu0 %v329
      %v499 = vpop.f32.mrf.mxu0
      %v500 = vadd.f32 %v231, %v499
      %v501 = vpop.f32.mrf.mxu0
      %v502 = vadd.f32 %v231, %v501
      %503 = vmatmul.bf16.gmra.mxu0 %v331
      %v504 = vpop.f32.mrf.mxu0
      %v505 = vadd.f32 %v231, %v504
      %v506 = vpop.f32.mrf.mxu0
      %v507 = vadd.f32 %v231, %v506
      %508 = vmatmul.bf16.gmra.mxu0 %v333
      %v509 = vpop.f32.mrf.mxu0
      %v510 = vadd.f32 %v231, %v509
      %v511 = vpop.f32.mrf.mxu0
      %v512 = vadd.f32 %v231, %v511
      %513 = vmatmul.bf16.gmra.mxu0 %v335
      %v514 = vpop.f32.mrf.mxu0
      %v515 = vadd.f32 %v231, %v514
      %v516 = vpop.f32.mrf.mxu0
      %v517 = vadd.f32 %v231, %v516
      %518 = vmatmul.bf16.gmra.mxu0 %v337
      %v519 = vpop.f32.mrf.mxu0
      %v520 = vadd.f32 %v231, %v519
      %v521 = vpop.f32.mrf.mxu0
      %v522 = vadd.f32 %v231, %v521
      %523 = vmatmul.bf16.gmra.mxu0 %v339
      %v524 = vpop.f32.mrf.mxu0
      %v525 = vadd.f32 %v231, %v524
      %v526 = vpop.f32.mrf.mxu0
      %v527 = vadd.f32 %v231, %v526
      %528 = vmatmul.bf16.gmra.mxu0 %v341
      %v529 = vpop.f32.mrf.mxu0
      %v530 = vadd.f32 %v231, %v529
      %v531 = vpop.f32.mrf.mxu0
      %v532 = vadd.f32 %v231, %v531
      %533 = vmatmul.bf16.gmra.mxu0 %v343
      %v534 = vpop.f32.mrf.mxu0
      %v535 = vadd.f32 %v231, %v534
      %v536 = vpop.f32.mrf.mxu0
      %v537 = vadd.f32 %v231, %v536
      %538 = vmatmul.bf16.gmra.mxu0 %v345
      %v539 = vpop.f32.mrf.mxu0
      %v540 = vadd.f32 %v231, %v539
      %v541 = vpop.f32.mrf.mxu0
      %v542 = vadd.f32 %v231, %v541
      %543 = vmatmul.bf16.gmra.mxu0 %v347
      %v544 = vpop.f32.mrf.mxu0
      %v545 = vadd.f32 %v231, %v544
      %v546 = vpop.f32.mrf.mxu0
      %v547 = vadd.f32 %v231, %v546
      %548 = vmatmul.bf16.gmra.mxu0 %v349
      %v549 = vpop.f32.mrf.mxu0
      %v550 = vadd.f32 %v231, %v549
      %v551 = vpop.f32.mrf.mxu0
      %v552 = vadd.f32 %v231, %v551
      %553 = vmatmul.bf16.gmra.mxu0 %v351
      %v554 = vpop.f32.mrf.mxu0
      %v555 = vadd.f32 %v231, %v554
      %v556 = vpop.f32.mrf.mxu0
      %v557 = vadd.f32 %v231, %v556
      %558 = vmatmul.bf16.gmra.mxu0 %v353
      %v559 = vpop.f32.mrf.mxu0
      %v560 = vadd.f32 %v231, %v559
      %v561 = vpop.f32.mrf.mxu0
      %v562 = vadd.f32 %v231, %v561
      %563 = vmatmul.bf16.gmra.mxu0 %v355
      %v564 = vpop.f32.mrf.mxu0
      %v565 = vadd.f32 %v231, %v564
      %v566 = vpop.f32.mrf.mxu0
      %v567 = vadd.f32 %v231, %v566
      %568 = vmatmul.bf16.gmra.mxu0 %v357
      %v569 = vpop.f32.mrf.mxu0
      %v570 = vadd.f32 %v231, %v569
      %v571 = vpop.f32.mrf.mxu0
      %v572 = vadd.f32 %v231, %v571
      %573 = vmatmul.bf16.gmra.mxu0 %v359
      %v574 = vpop.f32.mrf.mxu0
      %v575 = vadd.f32 %v231, %v574
      %v576 = vpop.f32.mrf.mxu0
      %v577 = vadd.f32 %v231, %v576
      %578 = vdwg.mxu0
      %579 = vmatpush.bf16.msra.mxu0 0
      %580 = vmatpush.bf16.msra.mxu0 0
      %581 = vmatpush.bf16.msra.mxu0 0
      %582 = vmatpush.bf16.msra.mxu0 0
      %583 = vmatpush.bf16.msra.mxu0 0
      %584 = vmatpush.bf16.msra.mxu0 0
      %585 = vmatpush.bf16.msra.mxu0 %v488
      %586 = vmatpush.bf16.msra.mxu0 %v423
      %587 = vmatmul.bf16.gmra.mxu0 %v436
      %v588 = vpop.f32.mrf.mxu0
      %v589 = vadd.f32 %v500, %v588
      %v590 = vpop.f32.mrf.mxu0
      %v591 = vadd.f32 %v502, %v590
      %592 = vmatmul.bf16.gmra.mxu0 %v439
      %v593 = vpop.f32.mrf.mxu0
      %v594 = vadd.f32 %v505, %v593
      %v595 = vpop.f32.mrf.mxu0
      %v596 = vadd.f32 %v507, %v595
      %597 = vmatmul.bf16.gmra.mxu0 %v442
      %v598 = vpop.f32.mrf.mxu0
      %v599 = vadd.f32 %v510, %v598
      %v600 = vpop.f32.mrf.mxu0
      %v601 = vadd.f32 %v512, %v600
      %602 = vmatmul.bf16.gmra.mxu0 %v445
      %v603 = vpop.f32.mrf.mxu0
      %v604 = vadd.f32 %v515, %v603
      %v605 = vpop.f32.mrf.mxu0
      %v606 = vadd.f32 %v517, %v605
      %607 = vmatmul.bf16.gmra.mxu0 %v448
      %v608 = vpop.f32.mrf.mxu0
      %v609 = vadd.f32 %v520, %v608
      %v610 = vpop.f32.mrf.mxu0
      %v611 = vadd.f32 %v522, %v610
      %612 = vmatmul.bf16.gmra.mxu0 %v451
      %v613 = vpop.f32.mrf.mxu0
      %v614 = vadd.f32 %v525, %v613
      %v615 = vpop.f32.mrf.mxu0
      %v616 = vadd.f32 %v527, %v615
      %617 = vmatmul.bf16.gmra.mxu0 %v454
      %v618 = vpop.f32.mrf.mxu0
      %v619 = vadd.f32 %v530, %v618
      %v620 = vpop.f32.mrf.mxu0
      %v621 = vadd.f32 %v532, %v620
      %622 = vmatmul.bf16.gmra.mxu0 %v457
      %v623 = vpop.f32.mrf.mxu0
      %v624 = vadd.f32 %v535, %v623
      %v625 = vpop.f32.mrf.mxu0
      %v626 = vadd.f32 %v537, %v625
      %627 = vmatmul.bf16.gmra.mxu0 %v460
      %v628 = vpop.f32.mrf.mxu0
      %v629 = vadd.f32 %v540, %v628
      %v630 = vpop.f32.mrf.mxu0
      %v631 = vadd.f32 %v542, %v630
      %632 = vmatmul.bf16.gmra.mxu0 %v463
      %v633 = vpop.f32.mrf.mxu0
      %v634 = vadd.f32 %v545, %v633
      %v635 = vpop.f32.mrf.mxu0
      %v636 = vadd.f32 %v547, %v635
      %637 = vmatmul.bf16.gmra.mxu0 %v466
      %v638 = vpop.f32.mrf.mxu0
      %v639 = vadd.f32 %v550, %v638
      %v640 = vpop.f32.mrf.mxu0
      %v641 = vadd.f32 %v552, %v640
      %642 = vmatmul.bf16.gmra.mxu0 %v469
      %v643 = vpop.f32.mrf.mxu0
      %v644 = vadd.f32 %v555, %v643
      %v645 = vpop.f32.mrf.mxu0
      %v646 = vadd.f32 %v557, %v645
      %647 = vmatmul.bf16.gmra.mxu0 %v472
      %v648 = vpop.f32.mrf.mxu0
      %v649 = vadd.f32 %v560, %v648
      %v650 = vpop.f32.mrf.mxu0
      %v651 = vadd.f32 %v562, %v650
      %652 = vmatmul.bf16.gmra.mxu0 %v475
      %v653 = vpop.f32.mrf.mxu0
      %v654 = vadd.f32 %v565, %v653
      %v655 = vpop.f32.mrf.mxu0
      %v656 = vadd.f32 %v567, %v655
      %657 = vmatmul.bf16.gmra.mxu0 %v478
      %v658 = vpop.f32.mrf.mxu0
      %v659 = vadd.f32 %v570, %v658
      %v660 = vpop.f32.mrf.mxu0
      %v661 = vadd.f32 %v572, %v660
      %662 = vmatmul.bf16.gmra.mxu0 %v481
      %v663 = vpop.f32.mrf.mxu0
      %v664 = vadd.f32 %v575, %v663
      %v665 = vpop.f32.mrf.mxu0
      %v666 = vadd.f32 %v577, %v665
      %667 = vdwg.mxu0
      %vm668 = vcmask 523264
      %669 = vst.msk [vmem:[%s175] sm:$0xff] %vm668, %v589
      %670 = vst.msk [vmem:[%s175 + $0x8] sm:$0xff] %vm668, %v591
      %671 = vst.msk [vmem:[%s175 + $0x10] sm:$0xff] %vm668, %v594
      %672 = vst.msk [vmem:[%s175 + $0x18] sm:$0xff] %vm668, %v596
      %673 = vst.msk [vmem:[%s175 + $0x20] sm:$0xff] %vm668, %v599
      %674 = vst.msk [vmem:[%s175 + $0x28] sm:$0xff] %vm668, %v601
      %675 = vst.msk [vmem:[%s175 + $0x30] sm:$0xff] %vm668, %v604
      %676 = vst.msk [vmem:[%s175 + $0x38] sm:$0xff] %vm668, %v606
      %677 = vst.msk [vmem:[%s175 + $0x40] sm:$0xff] %vm668, %v609
      %678 = vst.msk [vmem:[%s175 + $0x48] sm:$0xff] %vm668, %v611
      %679 = vst.msk [vmem:[%s175 + $0x50] sm:$0xff] %vm668, %v614
      %680 = vst.msk [vmem:[%s175 + $0x58] sm:$0xff] %vm668, %v616
      %681 = vst.msk [vmem:[%s175 + $0x60] sm:$0xff] %vm668, %v619
      %682 = vst.msk [vmem:[%s175 + $0x68] sm:$0xff] %vm668, %v621
      %683 = vst.msk [vmem:[%s175 + $0x70] sm:$0xff] %vm668, %v624
      %684 = vst.msk [vmem:[%s175 + $0x78] sm:$0xff] %vm668, %v626
      %685 = vst.msk [vmem:[%s175 + $0x80] sm:$0xff] %vm668, %v629
      %686 = vst.msk [vmem:[%s175 + $0x88] sm:$0xff] %vm668, %v631
      %687 = vst.msk [vmem:[%s175 + $0x90] sm:$0xff] %vm668, %v634
      %688 = vst.msk [vmem:[%s175 + $0x98] sm:$0xff] %vm668, %v636
      %689 = vst.msk [vmem:[%s175 + $0xa0] sm:$0xff] %vm668, %v639
      %690 = vst.msk [vmem:[%s175 + $0xa8] sm:$0xff] %vm668, %v641
      %691 = vst.msk [vmem:[%s175 + $0xb0] sm:$0xff] %vm668, %v644
      %692 = vst.msk [vmem:[%s175 + $0xb8] sm:$0xff] %vm668, %v646
      %693 = vst.msk [vmem:[%s175 + $0xc0] sm:$0xff] %vm668, %v649
      %694 = vst.msk [vmem:[%s175 + $0xc8] sm:$0xff] %vm668, %v651
      %695 = vst.msk [vmem:[%s175 + $0xd0] sm:$0xff] %vm668, %v654
      %696 = vst.msk [vmem:[%s175 + $0xd8] sm:$0xff] %vm668, %v656
      %697 = vst.msk [vmem:[%s175 + $0xe0] sm:$0xff] %vm668, %v659
      %698 = vst.msk [vmem:[%s175 + $0xe8] sm:$0xff] %vm668, %v661
      %699 = vst.msk [vmem:[%s175 + $0xf0] sm:$0xff] %vm668, %v664
      %700 = vst.msk [vmem:[%s175 + $0xf8] sm:$0xff] %vm668, %v666
      %s701 = smul.u32 32, %s14
      %p702 = scmp.lt.s32.totalorder %s701, 255
      %s703 = scalar_select %p702, %s701, 255
      %s704 = smul.addr %s703, 8
      %s705 = scalar_lea.vmem %s3, %s704
      // Predicated region
      $region33: #{encoder_forward.5} parent=31 // pred_check
        %p706 = pneg %p100
      $region34: #{encoder_forward.5} parent=31 // pred_check_branch
        %708 = sbr.rel (%p706) target = $region36
      $region35: #{encoder_forward.5} parent=31 // pred_region
        %s709 = smul.u32 32, %s14
      $region36: #{encoder_forward.5} parent=31 // pred_fallthru
        _
    $region32: #{encoder_forward.5} parent=5 // pred_fallthru
      _
    %p710 = scmp.le.s32.totalorder 2, %s9
    // Predicated region
    $region37: #{encoder_forward.5} parent=5 // pred_check
      %p711 = pneg %p710
    $region38: #{encoder_forward.5} parent=5 // pred_check_branch
      %713 = sbr.rel (%p711) target = $region40
    $region39: #{encoder_forward.5} parent=5 // pred_region
      %s714 = ssub.s32 %s9, 2
      // Predicated region
      $region41: #{encoder_forward.5} parent=39 // pred_check
        %p715 = pneg %p106
      $region42: #{encoder_forward.5} parent=39 // pred_check_branch
        %717 = sbr.rel (%p715) target = $region44
      $region43: #{encoder_forward.5} parent=39 // pred_region
        %s718 = smul.u32 32, %s15
        %p719 = scmp.lt.s32.totalorder %s718, 255
        %s720 = scalar_select %p719, %s718, 255
        %s721 = smul.addr %s720, 8
        %s722 = scalar_lea.vmem %s3, %s721
      $region44: #{encoder_forward.5} parent=39 // pred_fallthru
        _
    $region40: #{encoder_forward.5} parent=5 // pred_fallthru
      _
  $region6: #{encoder_forward.5} parent=0 // loop_footer
    %s13 = sadd.s32 1, %s9
  $region7: #{encoder_forward.5} parent=0 // loop_footer_branch
    %8 = sbr.rel target = $region3
  $region8: #{encoder_forward.5} parent=0 // loop_exit
    _

// kernel: encoder_forward.6
$region0: #{encoder_forward.6}
  #allocation0 [shape = 'u32[]', space=smem, size = 0x4, offset = 0x4, fixed_abs, tag = 'smem constant byte address 0x4 - core index']
  #allocation1 [shape = 'u32[72,128]{1,0:T(1,128)}', space=vmem, size = 0x9000, scoped, tag = 'internal scratch']
  %s0 = inlined_call_operand.vmem [shape: bf16[512,576], index: 0, kind: input, shape index: {}]
  %s1 = inlined_call_operand.vmem [shape: bf16[576,32], index: 1, kind: input, shape index: {}]
  %s2 = inlined_call_operand.vmem [shape: bf16[128,576], index: 2, kind: input, shape index: {}]
  %s3 = inlined_call_operand.vmem [shape: bf16[576,32], index: 3, kind: input, shape index: {}]
  %s4 = inlined_call_operand.vmem [shape: f32[512,32], index: 4, kind: output, shape index: {0}]
  %s5 = inlined_call_operand.vmem [shape: f32[128,32], index: 5, kind: output, shape index: {1}]
  %6 = xla_tuple %s4, %s5
  %s7 = sld [smem:[#allocation0]]
  $region34: #{encoder_forward.6} parent=0
    _
  %s9 = ssub.s32 1, %s7
  %s10 = scalar_select 0, %s9, %s7
  // Predicated region
  $region2: #{encoder_forward.6} parent=0 // pred_check
    _
  $region3: #{encoder_forward.6} parent=0 // pred_check_branch
    %12 = sbr.rel (0) target = $region5
  $region4: #{encoder_forward.6} parent=0 // pred_region
    _
  $region5: #{encoder_forward.6} parent=0 // pred_fallthru
    _
  // Predicated region
  $region6: #{encoder_forward.6} parent=0 // pred_check
    _
  $region7: #{encoder_forward.6} parent=0 // pred_check_branch
    %14 = sbr.rel (0) target = $region9
  $region8: #{encoder_forward.6} parent=0 // pred_region
    _
  $region9: #{encoder_forward.6} parent=0 // pred_fallthru
    _
  // Predicated region
  $region10: #{encoder_forward.6} parent=0 // pred_check
    _
  $region11: #{encoder_forward.6} parent=0 // pred_check_branch
    %16 = sbr.rel (0) target = $region13
  $region12: #{encoder_forward.6} parent=0 // pred_region
    _
  $region13: #{encoder_forward.6} parent=0 // pred_fallthru
    _
  // Predicated region
  $region14: #{encoder_forward.6} parent=0 // pred_check
    _
  $region15: #{encoder_forward.6} parent=0 // pred_check_branch
    %18 = sbr.rel (0) target = $region17
  $region16: #{encoder_forward.6} parent=0 // pred_region
    _
  $region17: #{encoder_forward.6} parent=0 // pred_fallthru
    _
  %v20 = vld [vmem:[%s0] sm:$0xff]
  %v21 = vld [vmem:[%s0 + $0x8] sm:$0xff]
  %v22 = vld [vmem:[%s0 + $0x10] sm:$0xf]
  %v23 = vld [vmem:[%s0 + $0x14] sm:$0xff]
  %v24 = vld [vmem:[%s0 + $0x1c] sm:$0xff]
  %v25 = vld [vmem:[%s0 + $0x24] sm:$0xf]
  %v26 = vld [vmem:[%s0 + $0x28] sm:$0xff]
  %v27 = vld [vmem:[%s0 + $0x30] sm:$0xff]
  %v28 = vld [vmem:[%s0 + $0x38] sm:$0xf]
  %v29 = vld [vmem:[%s0 + $0x3c] sm:$0xff]
  %v30 = vld [vmem:[%s0 + $0x44] sm:$0xff]
  %v31 = vld [vmem:[%s0 + $0x4c] sm:$0xf]
  %v32 = vld [vmem:[%s0 + $0x50] sm:$0xff]
  %v33 = vld [vmem:[%s0 + $0x58] sm:$0xff]
  %v34 = vld [vmem:[%s0 + $0x60] sm:$0xf]
  %v35 = vld [vmem:[%s0 + $0x64] sm:$0xff]
  %v36 = vld [vmem:[%s0 + $0x6c] sm:$0xff]
  %v37 = vld [vmem:[%s0 + $0x74] sm:$0xf]
  %v38 = vld [vmem:[%s0 + $0x78] sm:$0xff]
  %v39 = vld [vmem:[%s0 + $0x80] sm:$0xff]
  %v40 = vld [vmem:[%s0 + $0x88] sm:$0xf]
  %v41 = vld [vmem:[%s0 + $0x8c] sm:$0xff]
  %v42 = vld [vmem:[%s0 + $0x94] sm:$0xff]
  %v43 = vld [vmem:[%s0 + $0x9c] sm:$0xf]
  %v44 = vld [vmem:[%s0 + $0xa0] sm:$0xff]
  %v45 = vld [vmem:[%s0 + $0xa8] sm:$0xff]
  %v46 = vld [vmem:[%s0 + $0xb0] sm:$0xf]
  %v47 = vld [vmem:[%s0 + $0xb4] sm:$0xff]
  %v48 = vld [vmem:[%s0 + $0xbc] sm:$0xff]
  %v49 = vld [vmem:[%s0 + $0xc4] sm:$0xf]
  %v50 = vld [vmem:[%s0 + $0xc8] sm:$0xff]
  %v51 = vld [vmem:[%s0 + $0xd0] sm:$0xff]
  %v52 = vld [vmem:[%s0 + $0xd8] sm:$0xf]
  %v53 = vld [vmem:[%s0 + $0xdc] sm:$0xff]
  %v54 = vld [vmem:[%s0 + $0xe4] sm:$0xff]
  %v55 = vld [vmem:[%s0 + $0xec] sm:$0xf]
  %v56 = vld [vmem:[%s0 + $0xf0] sm:$0xff]
  %v57 = vld [vmem:[%s0 + $0xf8] sm:$0xff]
  %v58 = vld [vmem:[%s0 + $0x100] sm:$0xf]
  %v59 = vld [vmem:[%s0 + $0x104] sm:$0xff]
  %v60 = vld [vmem:[%s0 + $0x10c] sm:$0xff]
  %v61 = vld [vmem:[%s0 + $0x114] sm:$0xf]
  %v62 = vld [vmem:[%s0 + $0x118] sm:$0xff]
  %v63 = vld [vmem:[%s0 + $0x120] sm:$0xff]
  %v64 = vld [vmem:[%s0 + $0x128] sm:$0xf]
  %v65 = vld [vmem:[%s0 + $0x12c] sm:$0xff]
  %v66 = vld [vmem:[%s0 + $0x134] sm:$0xff]
  %v67 = vld [vmem:[%s0 + $0x13c] sm:$0xf]
  %v68 = vld [vmem:[%s0 + $0x140] sm:$0xff]
  %v69 = vld [vmem:[%s0 + $0x148] sm:$0xff]
  %v70 = vld [vmem:[%s0 + $0x150] sm:$0xf]
  %v71 = vld [vmem:[%s0 + $0x154] sm:$0xff]
  %v72 = vld [vmem:[%s0 + $0x15c] sm:$0xff]
  %v73 = vld [vmem:[%s0 + $0x164] sm:$0xf]
  %v74 = vld [vmem:[%s0 + $0x168] sm:$0xff]
  %v75 = vld [vmem:[%s0 + $0x170] sm:$0xff]
  %v76 = vld [vmem:[%s0 + $0x178] sm:$0xf]
  %v77 = vld [vmem:[%s0 + $0x17c] sm:$0xff]
  %v78 = vld [vmem:[%s0 + $0x184] sm:$0xff]
  %v79 = vld [vmem:[%s0 + $0x18c] sm:$0xf]
  %v80 = vld [vmem:[%s0 + $0x190] sm:$0xff]
  %v81 = vld [vmem:[%s0 + $0x198] sm:$0xff]
  %v82 = vld [vmem:[%s0 + $0x1a0] sm:$0xf]
  %v83 = vld [vmem:[%s0 + $0x1a4] sm:$0xff]
  %v84 = vld [vmem:[%s0 + $0x1ac] sm:$0xff]
  %v85 = vld [vmem:[%s0 + $0x1b4] sm:$0xf]
  %v86 = vld [vmem:[%s0 + $0x1b8] sm:$0xff]
  %v87 = vld [vmem:[%s0 + $0x1c0] sm:$0xff]
  %v88 = vld [vmem:[%s0 + $0x1c8] sm:$0xf]
  %v89 = vld [vmem:[%s0 + $0x1cc] sm:$0xff]
  %v90 = vld [vmem:[%s0 + $0x1d4] sm:$0xff]
  %v91 = vld [vmem:[%s0 + $0x1dc] sm:$0xf]
  %v92 = vld [vmem:[%s0 + $0x1e0] sm:$0xff]
  %v93 = vld [vmem:[%s0 + $0x1e8] sm:$0xff]
  %v94 = vld [vmem:[%s0 + $0x1f0] sm:$0xf]
  %v95 = vld [vmem:[%s0 + $0x1f4] sm:$0xff]
  %v96 = vld [vmem:[%s0 + $0x1fc] sm:$0xff]
  %v97 = vld [vmem:[%s0 + $0x204] sm:$0xf]
  %v98 = vld [vmem:[%s0 + $0x208] sm:$0xff]
  %v99 = vld [vmem:[%s0 + $0x210] sm:$0xff]
  %v100 = vld [vmem:[%s0 + $0x218] sm:$0xf]
  %v101 = vld [vmem:[%s0 + $0x21c] sm:$0xff]
  %v102 = vld [vmem:[%s0 + $0x224] sm:$0xff]
  %v103 = vld [vmem:[%s0 + $0x22c] sm:$0xf]
  %v104 = vld [vmem:[%s0 + $0x230] sm:$0xff]
  %v105 = vld [vmem:[%s0 + $0x238] sm:$0xff]
  %v106 = vld [vmem:[%s0 + $0x240] sm:$0xf]
  %v107 = vld [vmem:[%s0 + $0x244] sm:$0xff]
  %v108 = vld [vmem:[%s0 + $0x24c] sm:$0xff]
  %v109 = vld [vmem:[%s0 + $0x254] sm:$0xf]
  %v110 = vld [vmem:[%s0 + $0x258] sm:$0xff]
  %v111 = vld [vmem:[%s0 + $0x260] sm:$0xff]
  %v112 = vld [vmem:[%s0 + $0x268] sm:$0xf]
  %v113 = vld [vmem:[%s0 + $0x26c] sm:$0xff]
  %v114 = vld [vmem:[%s0 + $0x274] sm:$0xff]
  %v115 = vld [vmem:[%s0 + $0x27c] sm:$0xf]
  %v116 = vld [vmem:[%s0 + $0x280] sm:$0xff]
  %v117 = vld [vmem:[%s0 + $0x288] sm:$0xff]
  %v118 = vld [vmem:[%s0 + $0x290] sm:$0xf]
  %v119 = vld [vmem:[%s0 + $0x294] sm:$0xff]
  %v120 = vld [vmem:[%s0 + $0x29c] sm:$0xff]
  %v121 = vld [vmem:[%s0 + $0x2a4] sm:$0xf]
  %v122 = vld [vmem:[%s0 + $0x2a8] sm:$0xff]
  %v123 = vld [vmem:[%s0 + $0x2b0] sm:$0xff]
  %v124 = vld [vmem:[%s0 + $0x2b8] sm:$0xf]
  %v125 = vld [vmem:[%s0 + $0x2bc] sm:$0xff]
  %v126 = vld [vmem:[%s0 + $0x2c4] sm:$0xff]
  %v127 = vld [vmem:[%s0 + $0x2cc] sm:$0xf]
  %v128 = vld [vmem:[%s0 + $0x2d0] sm:$0xff]
  %v129 = vld [vmem:[%s0 + $0x2d8] sm:$0xff]
  %v130 = vld [vmem:[%s0 + $0x2e0] sm:$0xf]
  %v131 = vld [vmem:[%s0 + $0x2e4] sm:$0xff]
  %v132 = vld [vmem:[%s0 + $0x2ec] sm:$0xff]
  %v133 = vld [vmem:[%s0 + $0x2f4] sm:$0xf]
  %v134 = vld [vmem:[%s0 + $0x2f8] sm:$0xff]
  %v135 = vld [vmem:[%s0 + $0x300] sm:$0xff]
  %v136 = vld [vmem:[%s0 + $0x308] sm:$0xf]
  %v137 = vld [vmem:[%s0 + $0x30c] sm:$0xff]
  %v138 = vld [vmem:[%s0 + $0x314] sm:$0xff]
  %v139 = vld [vmem:[%s0 + $0x31c] sm:$0xf]
  %v140 = vld [vmem:[%s0 + $0x320] sm:$0xff]
  %v141 = vld [vmem:[%s0 + $0x328] sm:$0xff]
  %v142 = vld [vmem:[%s0 + $0x330] sm:$0xf]
  %v143 = vld [vmem:[%s0 + $0x334] sm:$0xff]
  %v144 = vld [vmem:[%s0 + $0x33c] sm:$0xff]
  %v145 = vld [vmem:[%s0 + $0x344] sm:$0xf]
  %v146 = vld [vmem:[%s0 + $0x348] sm:$0xff]
  %v147 = vld [vmem:[%s0 + $0x350] sm:$0xff]
  %v148 = vld [vmem:[%s0 + $0x358] sm:$0xf]
  %v149 = vld [vmem:[%s0 + $0x35c] sm:$0xff]
  %v150 = vld [vmem:[%s0 + $0x364] sm:$0xff]
  %v151 = vld [vmem:[%s0 + $0x36c] sm:$0xf]
  %v152 = vld [vmem:[%s0 + $0x370] sm:$0xff]
  %v153 = vld [vmem:[%s0 + $0x378] sm:$0xff]
  %v154 = vld [vmem:[%s0 + $0x380] sm:$0xf]
  %v155 = vld [vmem:[%s0 + $0x384] sm:$0xff]
  %v156 = vld [vmem:[%s0 + $0x38c] sm:$0xff]
  %v157 = vld [vmem:[%s0 + $0x394] sm:$0xf]
  %v158 = vld [vmem:[%s0 + $0x398] sm:$0xff]
  %v159 = vld [vmem:[%s0 + $0x3a0] sm:$0xff]
  %v160 = vld [vmem:[%s0 + $0x3a8] sm:$0xf]
  %v161 = vld [vmem:[%s0 + $0x3ac] sm:$0xff]
  %v162 = vld [vmem:[%s0 + $0x3b4] sm:$0xff]
  %v163 = vld [vmem:[%s0 + $0x3bc] sm:$0xf]
  %v164 = vld [vmem:[%s0 + $0x3c0] sm:$0xff]
  %v165 = vld [vmem:[%s0 + $0x3c8] sm:$0xff]
  %v166 = vld [vmem:[%s0 + $0x3d0] sm:$0xf]
  %v167 = vld [vmem:[%s0 + $0x3d4] sm:$0xff]
  %v168 = vld [vmem:[%s0 + $0x3dc] sm:$0xff]
  %v169 = vld [vmem:[%s0 + $0x3e4] sm:$0xf]
  %v170 = vld [vmem:[%s0 + $0x3e8] sm:$0xff]
  %v171 = vld [vmem:[%s0 + $0x3f0] sm:$0xff]
  %v172 = vld [vmem:[%s0 + $0x3f8] sm:$0xf]
  %v173 = vld [vmem:[%s0 + $0x3fc] sm:$0xff]
  %v174 = vld [vmem:[%s0 + $0x404] sm:$0xff]
  %v175 = vld [vmem:[%s0 + $0x40c] sm:$0xf]
  %v176 = vld [vmem:[%s0 + $0x410] sm:$0xff]
  %v177 = vld [vmem:[%s0 + $0x418] sm:$0xff]
  %v178 = vld [vmem:[%s0 + $0x420] sm:$0xf]
  %v179 = vld [vmem:[%s0 + $0x424] sm:$0xff]
  %v180 = vld [vmem:[%s0 + $0x42c] sm:$0xff]
  %v181 = vld [vmem:[%s0 + $0x434] sm:$0xf]
  %v182 = vld [vmem:[%s0 + $0x438] sm:$0xff]
  %v183 = vld [vmem:[%s0 + $0x440] sm:$0xff]
  %v184 = vld [vmem:[%s0 + $0x448] sm:$0xf]
  %v185 = vld [vmem:[%s0 + $0x44c] sm:$0xff]
  %v186 = vld [vmem:[%s0 + $0x454] sm:$0xff]
  %v187 = vld [vmem:[%s0 + $0x45c] sm:$0xf]
  %v188 = vld [vmem:[%s0 + $0x460] sm:$0xff]
  %v189 = vld [vmem:[%s0 + $0x468] sm:$0xff]
  %v190 = vld [vmem:[%s0 + $0x470] sm:$0xf]
  %v191 = vld [vmem:[%s0 + $0x474] sm:$0xff]
  %v192 = vld [vmem:[%s0 + $0x47c] sm:$0xff]
  %v193 = vld [vmem:[%s0 + $0x484] sm:$0xf]
  %v194 = vld [vmem:[%s0 + $0x488] sm:$0xff]
  %v195 = vld [vmem:[%s0 + $0x490] sm:$0xff]
  %v196 = vld [vmem:[%s0 + $0x498] sm:$0xf]
  %v197 = vld [vmem:[%s0 + $0x49c] sm:$0xff]
  %v198 = vld [vmem:[%s0 + $0x4a4] sm:$0xff]
  %v199 = vld [vmem:[%s0 + $0x4ac] sm:$0xf]
  %v200 = vld [vmem:[%s0 + $0x4b0] sm:$0xff]
  %v201 = vld [vmem:[%s0 + $0x4b8] sm:$0xff]
  %v202 = vld [vmem:[%s0 + $0x4c0] sm:$0xf]
  %v203 = vld [vmem:[%s0 + $0x4c4] sm:$0xff]
  %v204 = vld [vmem:[%s0 + $0x4cc] sm:$0xff]
  %v205 = vld [vmem:[%s0 + $0x4d4] sm:$0xf]
  %v206 = vld [vmem:[%s0 + $0x4d8] sm:$0xff]
  %v207 = vld [vmem:[%s0 + $0x4e0] sm:$0xff]
  %v208 = vld [vmem:[%s0 + $0x4e8] sm:$0xf]
  %v209 = vld [vmem:[%s0 + $0x4ec] sm:$0xff]
  %v210 = vld [vmem:[%s0 + $0x4f4] sm:$0xff]
  %v211 = vld [vmem:[%s0 + $0x4fc] sm:$0xf]
  %v212 = vld [vmem:[%s1] sm:$0xf]
  %v213 = vld [vmem:[%s1 + $0x4] sm:$0xf]
  %v214 = vld [vmem:[%s1 + $0x8] sm:$0xf]
  %v215 = vld [vmem:[%s1 + $0xc] sm:$0xf]
  %v216 = vld [vmem:[%s1 + $0x10] sm:$0xf]
  %v217 = vld [vmem:[%s1 + $0x14] sm:$0xf]
  %v218 = vld [vmem:[%s1 + $0x18] sm:$0xf]
  %v219 = vld [vmem:[%s1 + $0x1c] sm:$0xf]
  %v220 = vld [vmem:[%s1 + $0x20] sm:$0xf]
  %v221 = vld [vmem:[%s1 + $0x24] sm:$0xf]
  %v222 = vld [vmem:[%s1 + $0x28] sm:$0xf]
  %v223 = vld [vmem:[%s1 + $0x2c] sm:$0xf]
  %v224 = vld [vmem:[%s1 + $0x30] sm:$0xf]
  %v225 = vld [vmem:[%s1 + $0x34] sm:$0xf]
  %v226 = vld [vmem:[%s1 + $0x38] sm:$0xf]
  %v227 = vld [vmem:[%s1 + $0x3c] sm:$0xf]
  %v228 = vld [vmem:[%s1 + $0x40] sm:$0xf]
  %v229 = vld [vmem:[%s1 + $0x44] sm:$0xf]
  %v230 = vld [vmem:[%s1 + $0x48] sm:$0xf]
  %v231 = vld [vmem:[%s1 + $0x4c] sm:$0xf]
  %v232 = vld [vmem:[%s1 + $0x50] sm:$0xf]
  %v233 = vld [vmem:[%s1 + $0x54] sm:$0xf]
  %v234 = vld [vmem:[%s1 + $0x58] sm:$0xf]
  %v235 = vld [vmem:[%s1 + $0x5c] sm:$0xf]
  %v236 = vld [vmem:[%s1 + $0x60] sm:$0xf]
  %v237 = vld [vmem:[%s1 + $0x64] sm:$0xf]
  %v238 = vld [vmem:[%s1 + $0x68] sm:$0xf]
  %v239 = vld [vmem:[%s1 + $0x6c] sm:$0xf]
  %v240 = vld [vmem:[%s1 + $0x70] sm:$0xf]
  %v241 = vld [vmem:[%s1 + $0x74] sm:$0xf]
  %v242 = vld [vmem:[%s1 + $0x78] sm:$0xf]
  %v243 = vld [vmem:[%s1 + $0x7c] sm:$0xf]
  %v244 = vld [vmem:[%s1 + $0x80] sm:$0xf]
  %v245 = vld [vmem:[%s1 + $0x84] sm:$0xf]
  %v246 = vld [vmem:[%s1 + $0x88] sm:$0xf]
  %v247 = vld [vmem:[%s1 + $0x8c] sm:$0xf]
  %v248 = vld [vmem:[%s1 + $0x90] sm:$0xf]
  %v249 = vld [vmem:[%s1 + $0x94] sm:$0xf]
  %v250 = vld [vmem:[%s1 + $0x98] sm:$0xf]
  %v251 = vld [vmem:[%s1 + $0x9c] sm:$0xf]
  %v252 = vld [vmem:[%s1 + $0xa0] sm:$0xf]
  %v253 = vld [vmem:[%s1 + $0xa4] sm:$0xf]
  %v254 = vld [vmem:[%s1 + $0xa8] sm:$0xf]
  %v255 = vld [vmem:[%s1 + $0xac] sm:$0xf]
  %v256 = vld [vmem:[%s1 + $0xb0] sm:$0xf]
  %v257 = vld [vmem:[%s1 + $0xb4] sm:$0xf]
  %v258 = vld [vmem:[%s1 + $0xb8] sm:$0xf]
  %v259 = vld [vmem:[%s1 + $0xbc] sm:$0xf]
  %v260 = vld [vmem:[%s1 + $0xc0] sm:$0xf]
  %v261 = vld [vmem:[%s1 + $0xc4] sm:$0xf]
  %v262 = vld [vmem:[%s1 + $0xc8] sm:$0xf]
  %v263 = vld [vmem:[%s1 + $0xcc] sm:$0xf]
  %v264 = vld [vmem:[%s1 + $0xd0] sm:$0xf]
  %v265 = vld [vmem:[%s1 + $0xd4] sm:$0xf]
  %v266 = vld [vmem:[%s1 + $0xd8] sm:$0xf]
  %v267 = vld [vmem:[%s1 + $0xdc] sm:$0xf]
  %v268 = vld [vmem:[%s1 + $0xe0] sm:$0xf]
  %v269 = vld [vmem:[%s1 + $0xe4] sm:$0xf]
  %v270 = vld [vmem:[%s1 + $0xe8] sm:$0xf]
  %v271 = vld [vmem:[%s1 + $0xec] sm:$0xf]
  %v272 = vld [vmem:[%s1 + $0xf0] sm:$0xf]
  %v273 = vld [vmem:[%s1 + $0xf4] sm:$0xf]
  %v274 = vld [vmem:[%s1 + $0xf8] sm:$0xf]
  %v275 = vld [vmem:[%s1 + $0xfc] sm:$0xf]
  %v276 = vld [vmem:[%s1 + $0x100] sm:$0xf]
  %v277 = vld [vmem:[%s1 + $0x104] sm:$0xf]
  %v278 = vld [vmem:[%s1 + $0x108] sm:$0xf]
  %v279 = vld [vmem:[%s1 + $0x10c] sm:$0xf]
  %v280 = vld [vmem:[%s1 + $0x110] sm:$0xf]
  %v281 = vld [vmem:[%s1 + $0x114] sm:$0xf]
  %v282 = vld [vmem:[%s1 + $0x118] sm:$0xf]
  %v283 = vld [vmem:[%s1 + $0x11c] sm:$0xf]
  %v476 = vunpack.c.l.b16 %v20
  %v477 = vunpack.c.h.b16 %v20
  %v478 = vunpack.c.l.b16 %v21
  %v479 = vunpack.c.h.b16 %v21
  %v480 = vunpack.c.l.b16 %v22
  %v481 = vunpack.c.l.b16 %v23
  %v482 = vunpack.c.h.b16 %v23
  %v483 = vunpack.c.l.b16 %v24
  %v484 = vunpack.c.h.b16 %v24
  %v485 = vunpack.c.l.b16 %v25
  %v486 = vunpack.c.l.b16 %v26
  %v487 = vunpack.c.h.b16 %v26
  %v488 = vunpack.c.l.b16 %v27
  %v489 = vunpack.c.h.b16 %v27
  %v490 = vunpack.c.l.b16 %v28
  %v491 = vunpack.c.l.b16 %v29
  %v492 = vunpack.c.h.b16 %v29
  %v493 = vunpack.c.l.b16 %v30
  %v494 = vunpack.c.h.b16 %v30
  %v495 = vunpack.c.l.b16 %v31
  %v496 = vunpack.c.l.b16 %v32
  %v497 = vunpack.c.h.b16 %v32
  %v498 = vunpack.c.l.b16 %v33
  %v499 = vunpack.c.h.b16 %v33
  %v500 = vunpack.c.l.b16 %v34
  %v501 = vunpack.c.l.b16 %v35
  %v502 = vunpack.c.h.b16 %v35
  %v503 = vunpack.c.l.b16 %v36
  %v504 = vunpack.c.h.b16 %v36
  %v505 = vunpack.c.l.b16 %v37
  %v506 = vunpack.c.l.b16 %v38
  %v507 = vunpack.c.h.b16 %v38
  %v508 = vunpack.c.l.b16 %v39
  %v509 = vunpack.c.h.b16 %v39
  %v510 = vunpack.c.l.b16 %v40
  %v511 = vunpack.c.l.b16 %v41
  %v512 = vunpack.c.h.b16 %v41
  %v513 = vunpack.c.l.b16 %v42
  %v514 = vunpack.c.h.b16 %v42
  %v515 = vunpack.c.l.b16 %v43
  %v516 = vunpack.c.l.b16 %v44
  %v517 = vunpack.c.h.b16 %v44
  %v518 = vunpack.c.l.b16 %v45
  %v519 = vunpack.c.h.b16 %v45
  %v520 = vunpack.c.l.b16 %v46
  %v521 = vunpack.c.l.b16 %v47
  %v522 = vunpack.c.h.b16 %v47
  %v523 = vunpack.c.l.b16 %v48
  %v524 = vunpack.c.h.b16 %v48
  %v525 = vunpack.c.l.b16 %v49
  %v526 = vunpack.c.l.b16 %v50
  %v527 = vunpack.c.h.b16 %v50
  %v528 = vunpack.c.l.b16 %v51
  %v529 = vunpack.c.h.b16 %v51
  %v530 = vunpack.c.l.b16 %v52
  %v531 = vunpack.c.l.b16 %v53
  %v532 = vunpack.c.h.b16 %v53
  %v533 = vunpack.c.l.b16 %v54
  %v534 = vunpack.c.h.b16 %v54
  %v535 = vunpack.c.l.b16 %v55
  %v536 = vunpack.c.l.b16 %v56
  %v537 = vunpack.c.h.b16 %v56
  %v538 = vunpack.c.l.b16 %v57
  %v539 = vunpack.c.h.b16 %v57
  %v540 = vunpack.c.l.b16 %v58
  %v541 = vunpack.c.l.b16 %v59
  %v542 = vunpack.c.h.b16 %v59
  %v543 = vunpack.c.l.b16 %v60
  %v544 = vunpack.c.h.b16 %v60
  %v545 = vunpack.c.l.b16 %v61
  %v546 = vunpack.c.l.b16 %v62
  %v547 = vunpack.c.h.b16 %v62
  %v548 = vunpack.c.l.b16 %v63
  %v549 = vunpack.c.h.b16 %v63
  %v550 = vunpack.c.l.b16 %v64
  %v551 = vunpack.c.l.b16 %v65
  %v552 = vunpack.c.h.b16 %v65
  %v553 = vunpack.c.l.b16 %v66
  %v554 = vunpack.c.h.b16 %v66
  %v555 = vunpack.c.l.b16 %v67
  %v556 = vunpack.c.l.b16 %v68
  %v557 = vunpack.c.h.b16 %v68
  %v558 = vunpack.c.l.b16 %v69
  %v559 = vunpack.c.h.b16 %v69
  %v560 = vunpack.c.l.b16 %v70
  %v561 = vunpack.c.l.b16 %v71
  %v562 = vunpack.c.h.b16 %v71
  %v563 = vunpack.c.l.b16 %v72
  %v564 = vunpack.c.h.b16 %v72
  %v565 = vunpack.c.l.b16 %v73
  %v566 = vunpack.c.l.b16 %v74
  %v567 = vunpack.c.h.b16 %v74
  %v568 = vunpack.c.l.b16 %v75
  %v569 = vunpack.c.h.b16 %v75
  %v570 = vunpack.c.l.b16 %v76
  %v571 = vunpack.c.l.b16 %v77
  %v572 = vunpack.c.h.b16 %v77
  %v573 = vunpack.c.l.b16 %v78
  %v574 = vunpack.c.h.b16 %v78
  %v575 = vunpack.c.l.b16 %v79
  %v576 = vunpack.c.l.b16 %v80
  %v577 = vunpack.c.h.b16 %v80
  %v578 = vunpack.c.l.b16 %v81
  %v579 = vunpack.c.h.b16 %v81
  %v580 = vunpack.c.l.b16 %v82
  %v581 = vunpack.c.l.b16 %v83
  %v582 = vunpack.c.h.b16 %v83
  %v583 = vunpack.c.l.b16 %v84
  %v584 = vunpack.c.h.b16 %v84
  %v585 = vunpack.c.l.b16 %v85
  %v586 = vunpack.c.l.b16 %v86
  %v587 = vunpack.c.h.b16 %v86
  %v588 = vunpack.c.l.b16 %v87
  %v589 = vunpack.c.h.b16 %v87
  %v590 = vunpack.c.l.b16 %v88
  %v591 = vunpack.c.l.b16 %v89
  %v592 = vunpack.c.h.b16 %v89
  %v593 = vunpack.c.l.b16 %v90
  %v594 = vunpack.c.h.b16 %v90
  %v595 = vunpack.c.l.b16 %v91
  %v596 = vunpack.c.l.b16 %v92
  %v597 = vunpack.c.h.b16 %v92
  %v598 = vunpack.c.l.b16 %v93
  %v599 = vunpack.c.h.b16 %v93
  %v600 = vunpack.c.l.b16 %v94
  %v601 = vunpack.c.l.b16 %v95
  %v602 = vunpack.c.h.b16 %v95
  %v603 = vunpack.c.l.b16 %v96
  %v604 = vunpack.c.h.b16 %v96
  %v605 = vunpack.c.l.b16 %v97
  %v606 = vunpack.c.l.b16 %v98
  %v607 = vunpack.c.h.b16 %v98
  %v608 = vunpack.c.l.b16 %v99
  %v609 = vunpack.c.h.b16 %v99
  %v610 = vunpack.c.l.b16 %v100
  %v611 = vunpack.c.l.b16 %v101
  %v612 = vunpack.c.h.b16 %v101
  %v613 = vunpack.c.l.b16 %v102
  %v614 = vunpack.c.h.b16 %v102
  %v615 = vunpack.c.l.b16 %v103
  %v616 = vunpack.c.l.b16 %v104
  %v617 = vunpack.c.h.b16 %v104
  %v618 = vunpack.c.l.b16 %v105
  %v619 = vunpack.c.h.b16 %v105
  %v620 = vunpack.c.l.b16 %v106
  %v621 = vunpack.c.l.b16 %v107
  %v622 = vunpack.c.h.b16 %v107
  %v623 = vunpack.c.l.b16 %v108
  %v624 = vunpack.c.h.b16 %v108
  %v625 = vunpack.c.l.b16 %v109
  %v626 = vunpack.c.l.b16 %v110
  %v627 = vunpack.c.h.b16 %v110
  %v628 = vunpack.c.l.b16 %v111
  %v629 = vunpack.c.h.b16 %v111
  %v630 = vunpack.c.l.b16 %v112
  %v631 = vunpack.c.l.b16 %v113
  %v632 = vunpack.c.h.b16 %v113
  %v633 = vunpack.c.l.b16 %v114
  %v634 = vunpack.c.h.b16 %v114
  %v635 = vunpack.c.l.b16 %v115
  %v636 = vunpack.c.l.b16 %v116
  %v637 = vunpack.c.h.b16 %v116
  %v638 = vunpack.c.l.b16 %v117
  %v639 = vunpack.c.h.b16 %v117
  %v640 = vunpack.c.l.b16 %v118
  %v641 = vunpack.c.l.b16 %v119
  %v642 = vunpack.c.h.b16 %v119
  %v643 = vunpack.c.l.b16 %v120
  %v644 = vunpack.c.h.b16 %v120
  %v645 = vunpack.c.l.b16 %v121
  %v646 = vunpack.c.l.b16 %v122
  %v647 = vunpack.c.h.b16 %v122
  %v648 = vunpack.c.l.b16 %v123
  %v649 = vunpack.c.h.b16 %v123
  %v650 = vunpack.c.l.b16 %v124
  %v651 = vunpack.c.l.b16 %v125
  %v652 = vunpack.c.h.b16 %v125
  %v653 = vunpack.c.l.b16 %v126
  %v654 = vunpack.c.h.b16 %v126
  %v655 = vunpack.c.l.b16 %v127
  %v656 = vunpack.c.l.b16 %v128
  %v657 = vunpack.c.h.b16 %v128
  %v658 = vunpack.c.l.b16 %v129
  %v659 = vunpack.c.h.b16 %v129
  %v660 = vunpack.c.l.b16 %v130
  %v661 = vunpack.c.l.b16 %v131
  %v662 = vunpack.c.h.b16 %v131
  %v663 = vunpack.c.l.b16 %v132
  %v664 = vunpack.c.h.b16 %v132
  %v665 = vunpack.c.l.b16 %v133
  %v666 = vunpack.c.l.b16 %v134
  %v667 = vunpack.c.h.b16 %v134
  %v668 = vunpack.c.l.b16 %v135
  %v669 = vunpack.c.h.b16 %v135
  %v670 = vunpack.c.l.b16 %v136
  %v671 = vunpack.c.l.b16 %v137
  %v672 = vunpack.c.h.b16 %v137
  %v673 = vunpack.c.l.b16 %v138
  %v674 = vunpack.c.h.b16 %v138
  %v675 = vunpack.c.l.b16 %v139
  %v676 = vunpack.c.l.b16 %v140
  %v677 = vunpack.c.h.b16 %v140
  %v678 = vunpack.c.l.b16 %v141
  %v679 = vunpack.c.h.b16 %v141
  %v680 = vunpack.c.l.b16 %v142
  %v681 = vunpack.c.l.b16 %v143
  %v682 = vunpack.c.h.b16 %v143
  %v683 = vunpack.c.l.b16 %v144
  %v684 = vunpack.c.h.b16 %v144
  %v685 = vunpack.c.l.b16 %v145
  %v686 = vunpack.c.l.b16 %v146
  %v687 = vunpack.c.h.b16 %v146
  %v688 = vunpack.c.l.b16 %v147
  %v689 = vunpack.c.h.b16 %v147
  %v690 = vunpack.c.l.b16 %v148
  %v691 = vunpack.c.l.b16 %v149
  %v692 = vunpack.c.h.b16 %v149
  %v693 = vunpack.c.l.b16 %v150
  %v694 = vunpack.c.h.b16 %v150
  %v695 = vunpack.c.l.b16 %v151
  %v696 = vunpack.c.l.b16 %v152
  %v697 = vunpack.c.h.b16 %v152
  %v698 = vunpack.c.l.b16 %v153
  %v699 = vunpack.c.h.b16 %v153
  %v700 = vunpack.c.l.b16 %v154
  %v701 = vunpack.c.l.b16 %v155
  %v702 = vunpack.c.h.b16 %v155
  %v703 = vunpack.c.l.b16 %v156
  %v704 = vunpack.c.h.b16 %v156
  %v705 = vunpack.c.l.b16 %v157
  %v706 = vunpack.c.l.b16 %v158
  %v707 = vunpack.c.h.b16 %v158
  %v708 = vunpack.c.l.b16 %v159
  %v709 = vunpack.c.h.b16 %v159
  %v710 = vunpack.c.l.b16 %v160
  %v711 = vunpack.c.l.b16 %v161
  %v712 = vunpack.c.h.b16 %v161
  %v713 = vunpack.c.l.b16 %v162
  %v714 = vunpack.c.h.b16 %v162
  %v715 = vunpack.c.l.b16 %v163
  %v716 = vunpack.c.l.b16 %v164
  %v717 = vunpack.c.h.b16 %v164
  %v718 = vunpack.c.l.b16 %v165
  %v719 = vunpack.c.h.b16 %v165
  %v720 = vunpack.c.l.b16 %v166
  %v721 = vunpack.c.l.b16 %v167
  %v722 = vunpack.c.h.b16 %v167
  %v723 = vunpack.c.l.b16 %v168
  %v724 = vunpack.c.h.b16 %v168
  %v725 = vunpack.c.l.b16 %v169
  %v726 = vunpack.c.l.b16 %v170
  %v727 = vunpack.c.h.b16 %v170
  %v728 = vunpack.c.l.b16 %v171
  %v729 = vunpack.c.h.b16 %v171
  %v730 = vunpack.c.l.b16 %v172
  %v731 = vunpack.c.l.b16 %v173
  %v732 = vunpack.c.h.b16 %v173
  %v733 = vunpack.c.l.b16 %v174
  %v734 = vunpack.c.h.b16 %v174
  %v735 = vunpack.c.l.b16 %v175
  %v736 = vunpack.c.l.b16 %v176
  %v737 = vunpack.c.h.b16 %v176
  %v738 = vunpack.c.l.b16 %v177
  %v739 = vunpack.c.h.b16 %v177
  %v740 = vunpack.c.l.b16 %v178
  %v741 = vunpack.c.l.b16 %v179
  %v742 = vunpack.c.h.b16 %v179
  %v743 = vunpack.c.l.b16 %v180
  %v744 = vunpack.c.h.b16 %v180
  %v745 = vunpack.c.l.b16 %v181
  %v746 = vunpack.c.l.b16 %v182
  %v747 = vunpack.c.h.b16 %v182
  %v748 = vunpack.c.l.b16 %v183
  %v749 = vunpack.c.h.b16 %v183
  %v750 = vunpack.c.l.b16 %v184
  %v751 = vunpack.c.l.b16 %v185
  %v752 = vunpack.c.h.b16 %v185
  %v753 = vunpack.c.l.b16 %v186
  %v754 = vunpack.c.h.b16 %v186
  %v755 = vunpack.c.l.b16 %v187
  %v756 = vunpack.c.l.b16 %v188
  %v757 = vunpack.c.h.b16 %v188
  %v758 = vunpack.c.l.b16 %v189
  %v759 = vunpack.c.h.b16 %v189
  %v760 = vunpack.c.l.b16 %v190
  %v761 = vunpack.c.l.b16 %v191
  %v762 = vunpack.c.h.b16 %v191
  %v763 = vunpack.c.l.b16 %v192
  %v764 = vunpack.c.h.b16 %v192
  %v765 = vunpack.c.l.b16 %v193
  %v766 = vunpack.c.l.b16 %v194
  %v767 = vunpack.c.h.b16 %v194
  %v768 = vunpack.c.l.b16 %v195
  %v769 = vunpack.c.h.b16 %v195
  %v770 = vunpack.c.l.b16 %v196
  %v771 = vunpack.c.l.b16 %v197
  %v772 = vunpack.c.h.b16 %v197
  %v773 = vunpack.c.l.b16 %v198
  %v774 = vunpack.c.h.b16 %v198
  %v775 = vunpack.c.l.b16 %v199
  %v776 = vunpack.c.l.b16 %v200
  %v777 = vunpack.c.h.b16 %v200
  %v778 = vunpack.c.l.b16 %v201
  %v779 = vunpack.c.h.b16 %v201
  %v780 = vunpack.c.l.b16 %v202
  %v781 = vunpack.c.l.b16 %v203
  %v782 = vunpack.c.h.b16 %v203
  %v783 = vunpack.c.l.b16 %v204
  %v784 = vunpack.c.h.b16 %v204
  %v785 = vunpack.c.l.b16 %v205
  %v786 = vunpack.c.l.b16 %v206
  %v787 = vunpack.c.h.b16 %v206
  %v788 = vunpack.c.l.b16 %v207
  %v789 = vunpack.c.h.b16 %v207
  %v790 = vunpack.c.l.b16 %v208
  %v791 = vunpack.c.l.b16 %v209
  %v792 = vunpack.c.h.b16 %v209
  %v793 = vunpack.c.l.b16 %v210
  %v794 = vunpack.c.h.b16 %v210
  %v795 = vunpack.c.l.b16 %v211
  %v796 = vpack.c.b16 %v481, %v476
  %v797 = vpack.c.b16 %v482, %v477
  %v798 = vpack.c.b16 %v483, %v478
  %v799 = vpack.c.b16 %v484, %v479
  %v800 = vpack.c.b16 %v485, %v480
  %v801 = vpack.c.b16 %v491, %v486
  %v802 = vpack.c.b16 %v492, %v487
  %v803 = vpack.c.b16 %v493, %v488
  %v804 = vpack.c.b16 %v494, %v489
  %v805 = vpack.c.b16 %v495, %v490
  %v806 = vpack.c.b16 %v501, %v496
  %v807 = vpack.c.b16 %v502, %v497
  %v808 = vpack.c.b16 %v503, %v498
  %v809 = vpack.c.b16 %v504, %v499
  %v810 = vpack.c.b16 %v505, %v500
  %v811 = vpack.c.b16 %v511, %v506
  %v812 = vpack.c.b16 %v512, %v507
  %v813 = vpack.c.b16 %v513, %v508
  %v814 = vpack.c.b16 %v514, %v509
  %v815 = vpack.c.b16 %v515, %v510
  %v816 = vpack.c.b16 %v521, %v516
  %v817 = vpack.c.b16 %v522, %v517
  %v818 = vpack.c.b16 %v523, %v518
  %v819 = vpack.c.b16 %v524, %v519
  %v820 = vpack.c.b16 %v525, %v520
  %v821 = vpack.c.b16 %v531, %v526
  %v822 = vpack.c.b16 %v532, %v527
  %v823 = vpack.c.b16 %v533, %v528
  %v824 = vpack.c.b16 %v534, %v529
  %v825 = vpack.c.b16 %v535, %v530
  %v826 = vpack.c.b16 %v541, %v536
  %v827 = vpack.c.b16 %v542, %v537
  %v828 = vpack.c.b16 %v543, %v538
  %v829 = vpack.c.b16 %v544, %v539
  %v830 = vpack.c.b16 %v545, %v540
  %v831 = vpack.c.b16 %v551, %v546
  %v832 = vpack.c.b16 %v552, %v547
  %v833 = vpack.c.b16 %v553, %v548
  %v834 = vpack.c.b16 %v554, %v549
  %v835 = vpack.c.b16 %v555, %v550
  %v836 = vpack.c.b16 %v561, %v556
  %v837 = vpack.c.b16 %v562, %v557
  %v838 = vpack.c.b16 %v563, %v558
  %v839 = vpack.c.b16 %v564, %v559
  %v840 = vpack.c.b16 %v565, %v560
  %v841 = vpack.c.b16 %v571, %v566
  %v842 = vpack.c.b16 %v572, %v567
  %v843 = vpack.c.b16 %v573, %v568
  %v844 = vpack.c.b16 %v574, %v569
  %v845 = vpack.c.b16 %v575, %v570
  %v846 = vpack.c.b16 %v581, %v576
  %v847 = vpack.c.b16 %v582, %v577
  %v848 = vpack.c.b16 %v583, %v578
  %v849 = vpack.c.b16 %v584, %v579
  %v850 = vpack.c.b16 %v585, %v580
  %v851 = vpack.c.b16 %v591, %v586
  %v852 = vpack.c.b16 %v592, %v587
  %v853 = vpack.c.b16 %v593, %v588
  %v854 = vpack.c.b16 %v594, %v589
  %v855 = vpack.c.b16 %v595, %v590
  %v856 = vpack.c.b16 %v601, %v596
  %v857 = vpack.c.b16 %v602, %v597
  %v858 = vpack.c.b16 %v603, %v598
  %v859 = vpack.c.b16 %v604, %v599
  %v860 = vpack.c.b16 %v605, %v600
  %v861 = vpack.c.b16 %v611, %v606
  %v862 = vpack.c.b16 %v612, %v607
  %v863 = vpack.c.b16 %v613, %v608
  %v864 = vpack.c.b16 %v614, %v609
  %v865 = vpack.c.b16 %v615, %v610
  %v866 = vpack.c.b16 %v621, %v616
  %v867 = vpack.c.b16 %v622, %v617
  %v868 = vpack.c.b16 %v623, %v618
  %v869 = vpack.c.b16 %v624, %v619
  %v870 = vpack.c.b16 %v625, %v620
  %v871 = vpack.c.b16 %v631, %v626
  %v872 = vpack.c.b16 %v632, %v627
  %v873 = vpack.c.b16 %v633, %v628
  %v874 = vpack.c.b16 %v634, %v629
  %v875 = vpack.c.b16 %v635, %v630
  %v876 = vpack.c.b16 %v641, %v636
  %v877 = vpack.c.b16 %v642, %v637
  %v878 = vpack.c.b16 %v643, %v638
  %v879 = vpack.c.b16 %v644, %v639
  %v880 = vpack.c.b16 %v645, %v640
  %v881 = vpack.c.b16 %v651, %v646
  %v882 = vpack.c.b16 %v652, %v647
  %v883 = vpack.c.b16 %v653, %v648
  %v884 = vpack.c.b16 %v654, %v649
  %v885 = vpack.c.b16 %v655, %v650
  %v886 = vpack.c.b16 %v661, %v656
  %v887 = vpack.c.b16 %v662, %v657
  %v888 = vpack.c.b16 %v663, %v658
  %v889 = vpack.c.b16 %v664, %v659
  %v890 = vpack.c.b16 %v665, %v660
  %v891 = vpack.c.b16 %v671, %v666
  %v892 = vpack.c.b16 %v672, %v667
  %v893 = vpack.c.b16 %v673, %v668
  %v894 = vpack.c.b16 %v674, %v669
  %v895 = vpack.c.b16 %v675, %v670
  %v896 = vpack.c.b16 %v681, %v676
  %v897 = vpack.c.b16 %v682, %v677
  %v898 = vpack.c.b16 %v683, %v678
  %v899 = vpack.c.b16 %v684, %v679
  %v900 = vpack.c.b16 %v685, %v680
  %v901 = vpack.c.b16 %v691, %v686
  %v902 = vpack.c.b16 %v692, %v687
  %v903 = vpack.c.b16 %v693, %v688
  %v904 = vpack.c.b16 %v694, %v689
  %v905 = vpack.c.b16 %v695, %v690
  %v906 = vpack.c.b16 %v701, %v696
  %v907 = vpack.c.b16 %v702, %v697
  %v908 = vpack.c.b16 %v703, %v698
  %v909 = vpack.c.b16 %v704, %v699
  %v910 = vpack.c.b16 %v705, %v700
  %v911 = vpack.c.b16 %v711, %v706
  %v912 = vpack.c.b16 %v712, %v707
  %v913 = vpack.c.b16 %v713, %v708
  %v914 = vpack.c.b16 %v714, %v709
  %v915 = vpack.c.b16 %v715, %v710
  %v916 = vpack.c.b16 %v721, %v716
  %v917 = vpack.c.b16 %v722, %v717
  %v918 = vpack.c.b16 %v723, %v718
  %v919 = vpack.c.b16 %v724, %v719
  %v920 = vpack.c.b16 %v725, %v720
  %v921 = vpack.c.b16 %v731, %v726
  %v922 = vpack.c.b16 %v732, %v727
  %v923 = vpack.c.b16 %v733, %v728
  %v924 = vpack.c.b16 %v734, %v729
  %v925 = vpack.c.b16 %v735, %v730
  %v926 = vpack.c.b16 %v741, %v736
  %v927 = vpack.c.b16 %v742, %v737
  %v928 = vpack.c.b16 %v743, %v738
  %v929 = vpack.c.b16 %v744, %v739
  %v930 = vpack.c.b16 %v745, %v740
  %v931 = vpack.c.b16 %v751, %v746
  %v932 = vpack.c.b16 %v752, %v747
  %v933 = vpack.c.b16 %v753, %v748
  %v934 = vpack.c.b16 %v754, %v749
  %v935 = vpack.c.b16 %v755, %v750
  %v936 = vpack.c.b16 %v761, %v756
  %v937 = vpack.c.b16 %v762, %v757
  %v938 = vpack.c.b16 %v763, %v758
  %v939 = vpack.c.b16 %v764, %v759
  %v940 = vpack.c.b16 %v765, %v760
  %v941 = vpack.c.b16 %v771, %v766
  %v942 = vpack.c.b16 %v772, %v767
  %v943 = vpack.c.b16 %v773, %v768
  %v944 = vpack.c.b16 %v774, %v769
  %v945 = vpack.c.b16 %v775, %v770
  %v946 = vpack.c.b16 %v781, %v776
  %v947 = vpack.c.b16 %v782, %v777
  %v948 = vpack.c.b16 %v783, %v778
  %v949 = vpack.c.b16 %v784, %v779
  %v950 = vpack.c.b16 %v785, %v780
  %v951 = vpack.c.b16 %v791, %v786
  %v952 = vpack.c.b16 %v792, %v787
  %v953 = vpack.c.b16 %v793, %v788
  %v954 = vpack.c.b16 %v794, %v789
  %v955 = vpack.c.b16 %v795, %v790
  %v1156 = vunpack.c.l.b16 %v212
  %v1157 = vunpack.c.l.b16 %v213
  %v1158 = vunpack.c.l.b16 %v214
  %v1159 = vunpack.c.l.b16 %v215
  %v1160 = vunpack.c.l.b16 %v216
  %v1161 = vunpack.c.l.b16 %v217
  %v1162 = vunpack.c.l.b16 %v218
  %v1163 = vunpack.c.l.b16 %v219
  %v1164 = vunpack.c.l.b16 %v220
  %v1165 = vunpack.c.l.b16 %v221
  %v1166 = vunpack.c.l.b16 %v222
  %v1167 = vunpack.c.l.b16 %v223
  %v1168 = vunpack.c.l.b16 %v224
  %v1169 = vunpack.c.l.b16 %v225
  %v1170 = vunpack.c.l.b16 %v226
  %v1171 = vunpack.c.l.b16 %v227
  %v1172 = vunpack.c.l.b16 %v228
  %v1173 = vunpack.c.l.b16 %v229
  %v1174 = vunpack.c.l.b16 %v230
  %v1175 = vunpack.c.l.b16 %v231
  %v1176 = vunpack.c.l.b16 %v232
  %v1177 = vunpack.c.l.b16 %v233
  %v1178 = vunpack.c.l.b16 %v234
  %v1179 = vunpack.c.l.b16 %v235
  %v1180 = vunpack.c.l.b16 %v236
  %v1181 = vunpack.c.l.b16 %v237
  %v1182 = vunpack.c.l.b16 %v238
  %v1183 = vunpack.c.l.b16 %v239
  %v1184 = vunpack.c.l.b16 %v240
  %v1185 = vunpack.c.l.b16 %v241
  %v1186 = vunpack.c.l.b16 %v242
  %v1187 = vunpack.c.l.b16 %v243
  %v1188 = vunpack.c.l.b16 %v244
  %v1189 = vunpack.c.l.b16 %v245
  %v1190 = vunpack.c.l.b16 %v246
  %v1191 = vunpack.c.l.b16 %v247
  %v1192 = vunpack.c.l.b16 %v248
  %v1193 = vunpack.c.l.b16 %v249
  %v1194 = vunpack.c.l.b16 %v250
  %v1195 = vunpack.c.l.b16 %v251
  %v1196 = vunpack.c.l.b16 %v252
  %v1197 = vunpack.c.l.b16 %v253
  %v1198 = vunpack.c.l.b16 %v254
  %v1199 = vunpack.c.l.b16 %v255
  %v1200 = vunpack.c.l.b16 %v256
  %v1201 = vunpack.c.l.b16 %v257
  %v1202 = vunpack.c.l.b16 %v258
  %v1203 = vunpack.c.l.b16 %v259
  %v1204 = vunpack.c.l.b16 %v260
  %v1205 = vunpack.c.l.b16 %v261
  %v1206 = vunpack.c.l.b16 %v262
  %v1207 = vunpack.c.l.b16 %v263
  %v1208 = vunpack.c.l.b16 %v264
  %v1209 = vunpack.c.l.b16 %v265
  %v1210 = vunpack.c.l.b16 %v266
  %v1211 = vunpack.c.l.b16 %v267
  %v1212 = vunpack.c.l.b16 %v268
  %v1213 = vunpack.c.l.b16 %v269
  %v1214 = vunpack.c.l.b16 %v270
  %v1215 = vunpack.c.l.b16 %v271
  %v1216 = vunpack.c.l.b16 %v272
  %v1217 = vunpack.c.l.b16 %v273
  %v1218 = vunpack.c.l.b16 %v274
  %v1219 = vunpack.c.l.b16 %v275
  %v1220 = vunpack.c.l.b16 %v276
  %v1221 = vunpack.c.l.b16 %v277
  %v1222 = vunpack.c.l.b16 %v278
  %v1223 = vunpack.c.l.b16 %v279
  %v1224 = vunpack.c.l.b16 %v280
  %v1225 = vunpack.c.l.b16 %v281
  %v1226 = vunpack.c.l.b16 %v282
  %v1227 = vunpack.c.l.b16 %v283
  %v1228 = vpack.c.b16 %v1157, %v1156
  %v1229 = vpack.c.b16 %v1159, %v1158
  %v1230 = vpack.c.b16 %v1161, %v1160
  %v1231 = vpack.c.b16 %v1163, %v1162
  %v1232 = vpack.c.b16 %v1165, %v1164
  %v1233 = vpack.c.b16 %v1167, %v1166
  %v1234 = vpack.c.b16 %v1169, %v1168
  %v1235 = vpack.c.b16 %v1171, %v1170
  %v1236 = vpack.c.b16 %v1173, %v1172
  %v1237 = vpack.c.b16 %v1175, %v1174
  %v1238 = vpack.c.b16 %v1177, %v1176
  %v1239 = vpack.c.b16 %v1179, %v1178
  %v1240 = vpack.c.b16 %v1181, %v1180
  %v1241 = vpack.c.b16 %v1183, %v1182
  %v1242 = vpack.c.b16 %v1185, %v1184
  %v1243 = vpack.c.b16 %v1187, %v1186
  %v1244 = vpack.c.b16 %v1189, %v1188
  %v1245 = vpack.c.b16 %v1191, %v1190
  %v1246 = vpack.c.b16 %v1193, %v1192
  %v1247 = vpack.c.b16 %v1195, %v1194
  %v1248 = vpack.c.b16 %v1197, %v1196
  %v1249 = vpack.c.b16 %v1199, %v1198
  %v1250 = vpack.c.b16 %v1201, %v1200
  %v1251 = vpack.c.b16 %v1203, %v1202
  %v1252 = vpack.c.b16 %v1205, %v1204
  %v1253 = vpack.c.b16 %v1207, %v1206
  %v1254 = vpack.c.b16 %v1209, %v1208
  %v1255 = vpack.c.b16 %v1211, %v1210
  %v1256 = vpack.c.b16 %v1213, %v1212
  %v1257 = vpack.c.b16 %v1215, %v1214
  %v1258 = vpack.c.b16 %v1217, %v1216
  %v1259 = vpack.c.b16 %v1219, %v1218
  %v1260 = vpack.c.b16 %v1221, %v1220
  %v1261 = vpack.c.b16 %v1223, %v1222
  %v1262 = vpack.c.b16 %v1225, %v1224
  %v1263 = vpack.c.b16 %v1227, %v1226
  %vm1300 = vcmask 523264
  %v1302 = vsel %vm1300, %v800, 0
  %v1305 = vsel %vm1300, %v805, 0
  %v1308 = vsel %vm1300, %v810, 0
  %v1311 = vsel %vm1300, %v815, 0
  %v1314 = vsel %vm1300, %v820, 0
  %v1317 = vsel %vm1300, %v825, 0
  %v1320 = vsel %vm1300, %v830, 0
  %v1323 = vsel %vm1300, %v835, 0
  %v1326 = vsel %vm1300, %v840, 0
  %v1329 = vsel %vm1300, %v845, 0
  %v1332 = vsel %vm1300, %v850, 0
  %v1335 = vsel %vm1300, %v855, 0
  %v1338 = vsel %vm1300, %v860, 0
  %v1341 = vsel %vm1300, %v865, 0
  %v1344 = vsel %vm1300, %v870, 0
  %v1347 = vsel %vm1300, %v875, 0
  %v1350 = vsel %vm1300, %v880, 0
  %v1353 = vsel %vm1300, %v885, 0
  %v1356 = vsel %vm1300, %v890, 0
  %v1359 = vsel %vm1300, %v895, 0
  %v1362 = vsel %vm1300, %v900, 0
  %v1365 = vsel %vm1300, %v905, 0
  %v1368 = vsel %vm1300, %v910, 0
  %v1371 = vsel %vm1300, %v915, 0
  %v1374 = vsel %vm1300, %v920, 0
  %v1377 = vsel %vm1300, %v925, 0
  %v1380 = vsel %vm1300, %v930, 0
  %v1383 = vsel %vm1300, %v935, 0
  %v1386 = vsel %vm1300, %v940, 0
  %v1389 = vsel %vm1300, %v945, 0
  %v1392 = vsel %vm1300, %v950, 0
  %v1395 = vsel %vm1300, %v955, 0
  %1397 = vmatpush.bf16.msra.mxu0 %v1235
  %1398 = vmatpush.bf16.msra.mxu0 %v1234
  %1399 = vmatpush.bf16.msra.mxu0 %v1233
  %1400 = vmatpush.bf16.msra.mxu0 %v1232
  %1401 = vmatpush.bf16.msra.mxu0 %v1231
  %1402 = vmatpush.bf16.msra.mxu0 %v1230
  %1403 = vmatpush.bf16.msra.mxu0 %v1229
  %1404 = vmatpush.bf16.msra.mxu0 %v1228
  %1405 = vmatmul.bf16.gmra.mxu0 %v796
  %v1406 = vpop.f32.mrf.mxu0
  %v1407 = vadd.f32 0.0, %v1406
  %v1408 = vpop.f32.mrf.mxu0
  %v1409 = vadd.f32 0.0, %v1408
  %1410 = vmatmul.bf16.gmra.mxu0 %v801
  %v1411 = vpop.f32.mrf.mxu0
  %v1412 = vadd.f32 0.0, %v1411
  %v1413 = vpop.f32.mrf.mxu0
  %v1414 = vadd.f32 0.0, %v1413
  %1415 = vmatmul.bf16.gmra.mxu0 %v806
  %v1416 = vpop.f32.mrf.mxu0
  %v1417 = vadd.f32 0.0, %v1416
  %v1418 = vpop.f32.mrf.mxu0
  %v1419 = vadd.f32 0.0, %v1418
  %1420 = vmatmul.bf16.gmra.mxu0 %v811
  %v1421 = vpop.f32.mrf.mxu0
  %v1422 = vadd.f32 0.0, %v1421
  %v1423 = vpop.f32.mrf.mxu0
  %v1424 = vadd.f32 0.0, %v1423
  %1425 = vmatmul.bf16.gmra.mxu0 %v816
  %v1426 = vpop.f32.mrf.mxu0
  %v1427 = vadd.f32 0.0, %v1426
  %v1428 = vpop.f32.mrf.mxu0
  %v1429 = vadd.f32 0.0, %v1428
  %1430 = vmatmul.bf16.gmra.mxu0 %v821
  %v1431 = vpop.f32.mrf.mxu0
  %v1432 = vadd.f32 0.0, %v1431
  %v1433 = vpop.f32.mrf.mxu0
  %v1434 = vadd.f32 0.0, %v1433
  %1435 = vmatmul.bf16.gmra.mxu0 %v826
  %v1436 = vpop.f32.mrf.mxu0
  %v1437 = vadd.f32 0.0, %v1436
  %v1438 = vpop.f32.mrf.mxu0
  %v1439 = vadd.f32 0.0, %v1438
  %1440 = vmatmul.bf16.gmra.mxu0 %v831
  %v1441 = vpop.f32.mrf.mxu0
  %v1442 = vadd.f32 0.0, %v1441
  %v1443 = vpop.f32.mrf.mxu0
  %v1444 = vadd.f32 0.0, %v1443
  %1445 = vmatmul.bf16.gmra.mxu0 %v836
  %v1446 = vpop.f32.mrf.mxu0
  %v1447 = vadd.f32 0.0, %v1446
  %v1448 = vpop.f32.mrf.mxu0
  %v1449 = vadd.f32 0.0, %v1448
  %1450 = vmatmul.bf16.gmra.mxu0 %v841
  %v1451 = vpop.f32.mrf.mxu0
  %v1452 = vadd.f32 0.0, %v1451
  %v1453 = vpop.f32.mrf.mxu0
  %v1454 = vadd.f32 0.0, %v1453
  %1455 = vmatmul.bf16.gmra.mxu0 %v846
  %v1456 = vpop.f32.mrf.mxu0
  %v1457 = vadd.f32 0.0, %v1456
  %v1458 = vpop.f32.mrf.mxu0
  %v1459 = vadd.f32 0.0, %v1458
  %1460 = vmatmul.bf16.gmra.mxu0 %v851
  %v1461 = vpop.f32.mrf.mxu0
  %v1462 = vadd.f32 0.0, %v1461
  %v1463 = vpop.f32.mrf.mxu0
  %v1464 = vadd.f32 0.0, %v1463
  %1465 = vmatmul.bf16.gmra.mxu0 %v856
  %v1466 = vpop.f32.mrf.mxu0
  %v1467 = vadd.f32 0.0, %v1466
  %v1468 = vpop.f32.mrf.mxu0
  %v1469 = vadd.f32 0.0, %v1468
  %1470 = vmatmul.bf16.gmra.mxu0 %v861
  %v1471 = vpop.f32.mrf.mxu0
  %v1472 = vadd.f32 0.0, %v1471
  %v1473 = vpop.f32.mrf.mxu0
  %v1474 = vadd.f32 0.0, %v1473
  %1475 = vmatmul.bf16.gmra.mxu0 %v866
  %v1476 = vpop.f32.mrf.mxu0
  %v1477 = vadd.f32 0.0, %v1476
  %v1478 = vpop.f32.mrf.mxu0
  %v1479 = vadd.f32 0.0, %v1478
  %1480 = vmatmul.bf16.gmra.mxu0 %v871
  %v1481 = vpop.f32.mrf.mxu0
  %v1482 = vadd.f32 0.0, %v1481
  %v1483 = vpop.f32.mrf.mxu0
  %v1484 = vadd.f32 0.0, %v1483
  %1485 = vmatmul.bf16.gmra.mxu0 %v876
  %v1486 = vpop.f32.mrf.mxu0
  %v1487 = vadd.f32 0.0, %v1486
  %v1488 = vpop.f32.mrf.mxu0
  %v1489 = vadd.f32 0.0, %v1488
  %1490 = vmatmul.bf16.gmra.mxu0 %v881
  %v1491 = vpop.f32.mrf.mxu0
  %v1492 = vadd.f32 0.0, %v1491
  %v1493 = vpop.f32.mrf.mxu0
  %v1494 = vadd.f32 0.0, %v1493
  %1495 = vmatmul.bf16.gmra.mxu0 %v886
  %v1496 = vpop.f32.mrf.mxu0
  %v1497 = vadd.f32 0.0, %v1496
  %v1498 = vpop.f32.mrf.mxu0
  %v1499 = vadd.f32 0.0, %v1498
  %1500 = vmatmul.bf16.gmra.mxu0 %v891
  %v1501 = vpop.f32.mrf.mxu0
  %v1502 = vadd.f32 0.0, %v1501
  %v1503 = vpop.f32.mrf.mxu0
  %v1504 = vadd.f32 0.0, %v1503
  %1505 = vmatmul.bf16.gmra.mxu0 %v896
  %v1506 = vpop.f32.mrf.mxu0
  %v1507 = vadd.f32 0.0, %v1506
  %v1508 = vpop.f32.mrf.mxu0
  %v1509 = vadd.f32 0.0, %v1508
  %1510 = vmatmul.bf16.gmra.mxu0 %v901
  %v1511 = vpop.f32.mrf.mxu0
  %v1512 = vadd.f32 0.0, %v1511
  %v1513 = vpop.f32.mrf.mxu0
  %v1514 = vadd.f32 0.0, %v1513
  %1515 = vmatmul.bf16.gmra.mxu0 %v906
  %v1516 = vpop.f32.mrf.mxu0
  %v1517 = vadd.f32 0.0, %v1516
  %v1518 = vpop.f32.mrf.mxu0
  %v1519 = vadd.f32 0.0, %v1518
  %1520 = vmatmul.bf16.gmra.mxu0 %v911
  %v1521 = vpop.f32.mrf.mxu0
  %v1522 = vadd.f32 0.0, %v1521
  %v1523 = vpop.f32.mrf.mxu0
  %v1524 = vadd.f32 0.0, %v1523
  %1525 = vmatmul.bf16.gmra.mxu0 %v916
  %v1526 = vpop.f32.mrf.mxu0
  %v1527 = vadd.f32 0.0, %v1526
  %v1528 = vpop.f32.mrf.mxu0
  %v1529 = vadd.f32 0.0, %v1528
  %1530 = vmatmul.bf16.gmra.mxu0 %v921
  %v1531 = vpop.f32.mrf.mxu0
  %v1532 = vadd.f32 0.0, %v1531
  %v1533 = vpop.f32.mrf.mxu0
  %v1534 = vadd.f32 0.0, %v1533
  %1535 = vmatmul.bf16.gmra.mxu0 %v926
  %v1536 = vpop.f32.mrf.mxu0
  %v1537 = vadd.f32 0.0, %v1536
  %v1538 = vpop.f32.mrf.mxu0
  %v1539 = vadd.f32 0.0, %v1538
  %1540 = vmatmul.bf16.gmra.mxu0 %v931
  %v1541 = vpop.f32.mrf.mxu0
  %v1542 = vadd.f32 0.0, %v1541
  %v1543 = vpop.f32.mrf.mxu0
  %v1544 = vadd.f32 0.0, %v1543
  %1545 = vmatmul.bf16.gmra.mxu0 %v936
  %v1546 = vpop.f32.mrf.mxu0
  %v1547 = vadd.f32 0.0, %v1546
  %v1548 = vpop.f32.mrf.mxu0
  %v1549 = vadd.f32 0.0, %v1548
  %1550 = vmatmul.bf16.gmra.mxu0 %v941
  %v1551 = vpop.f32.mrf.mxu0
  %v1552 = vadd.f32 0.0, %v1551
  %v1553 = vpop.f32.mrf.mxu0
  %v1554 = vadd.f32 0.0, %v1553
  %1555 = vmatmul.bf16.gmra.mxu0 %v946
  %v1556 = vpop.f32.mrf.mxu0
  %v1557 = vadd.f32 0.0, %v1556
  %v1558 = vpop.f32.mrf.mxu0
  %v1559 = vadd.f32 0.0, %v1558
  %1560 = vmatmul.bf16.gmra.mxu0 %v951
  %v1561 = vpop.f32.mrf.mxu0
  %v1562 = vadd.f32 0.0, %v1561
  %v1563 = vpop.f32.mrf.mxu0
  %v1564 = vadd.f32 0.0, %v1563
  %1565 = vdwg.mxu0
  %1566 = vmatpush.bf16.msra.mxu0 %v1243
  %1567 = vmatpush.bf16.msra.mxu0 %v1242
  %1568 = vmatpush.bf16.msra.mxu0 %v1241
  %1569 = vmatpush.bf16.msra.mxu0 %v1240
  %1570 = vmatpush.bf16.msra.mxu0 %v1239
  %1571 = vmatpush.bf16.msra.mxu0 %v1238
  %1572 = vmatpush.bf16.msra.mxu0 %v1237
  %1573 = vmatpush.bf16.msra.mxu0 %v1236
  %1574 = vmatmul.bf16.gmra.mxu0 %v797
  %v1575 = vpop.f32.mrf.mxu0
  %v1576 = vadd.f32 %v1407, %v1575
  %v1577 = vpop.f32.mrf.mxu0
  %v1578 = vadd.f32 %v1409, %v1577
  %1579 = vmatmul.bf16.gmra.mxu0 %v802
  %v1580 = vpop.f32.mrf.mxu0
  %v1581 = vadd.f32 %v1412, %v1580
  %v1582 = vpop.f32.mrf.mxu0
  %v1583 = vadd.f32 %v1414, %v1582
  %1584 = vmatmul.bf16.gmra.mxu0 %v807
  %v1585 = vpop.f32.mrf.mxu0
  %v1586 = vadd.f32 %v1417, %v1585
  %v1587 = vpop.f32.mrf.mxu0
  %v1588 = vadd.f32 %v1419, %v1587
  %1589 = vmatmul.bf16.gmra.mxu0 %v812
  %v1590 = vpop.f32.mrf.mxu0
  %v1591 = vadd.f32 %v1422, %v1590
  %v1592 = vpop.f32.mrf.mxu0
  %v1593 = vadd.f32 %v1424, %v1592
  %1594 = vmatmul.bf16.gmra.mxu0 %v817
  %v1595 = vpop.f32.mrf.mxu0
  %v1596 = vadd.f32 %v1427, %v1595
  %v1597 = vpop.f32.mrf.mxu0
  %v1598 = vadd.f32 %v1429, %v1597
  %1599 = vmatmul.bf16.gmra.mxu0 %v822
  %v1600 = vpop.f32.mrf.mxu0
  %v1601 = vadd.f32 %v1432, %v1600
  %v1602 = vpop.f32.mrf.mxu0
  %v1603 = vadd.f32 %v1434, %v1602
  %1604 = vmatmul.bf16.gmra.mxu0 %v827
  %v1605 = vpop.f32.mrf.mxu0
  %v1606 = vadd.f32 %v1437, %v1605
  %v1607 = vpop.f32.mrf.mxu0
  %v1608 = vadd.f32 %v1439, %v1607
  %1609 = vmatmul.bf16.gmra.mxu0 %v832
  %v1610 = vpop.f32.mrf.mxu0
  %v1611 = vadd.f32 %v1442, %v1610
  %v1612 = vpop.f32.mrf.mxu0
  %v1613 = vadd.f32 %v1444, %v1612
  %1614 = vmatmul.bf16.gmra.mxu0 %v837
  %v1615 = vpop.f32.mrf.mxu0
  %v1616 = vadd.f32 %v1447, %v1615
  %v1617 = vpop.f32.mrf.mxu0
  %v1618 = vadd.f32 %v1449, %v1617
  %1619 = vmatmul.bf16.gmra.mxu0 %v842
  %v1620 = vpop.f32.mrf.mxu0
  %v1621 = vadd.f32 %v1452, %v1620
  %v1622 = vpop.f32.mrf.mxu0
  %v1623 = vadd.f32 %v1454, %v1622
  %1624 = vmatmul.bf16.gmra.mxu0 %v847
  %v1625 = vpop.f32.mrf.mxu0
  %v1626 = vadd.f32 %v1457, %v1625
  %v1627 = vpop.f32.mrf.mxu0
  %v1628 = vadd.f32 %v1459, %v1627
  %1629 = vmatmul.bf16.gmra.mxu0 %v852
  %v1630 = vpop.f32.mrf.mxu0
  %v1631 = vadd.f32 %v1462, %v1630
  %v1632 = vpop.f32.mrf.mxu0
  %v1633 = vadd.f32 %v1464, %v1632
  %1634 = vmatmul.bf16.gmra.mxu0 %v857
  %v1635 = vpop.f32.mrf.mxu0
  %v1636 = vadd.f32 %v1467, %v1635
  %v1637 = vpop.f32.mrf.mxu0
  %v1638 = vadd.f32 %v1469, %v1637
  %1639 = vmatmul.bf16.gmra.mxu0 %v862
  %v1640 = vpop.f32.mrf.mxu0
  %v1641 = vadd.f32 %v1472, %v1640
  %v1642 = vpop.f32.mrf.mxu0
  %v1643 = vadd.f32 %v1474, %v1642
  %1644 = vmatmul.bf16.gmra.mxu0 %v867
  %v1645 = vpop.f32.mrf.mxu0
  %v1646 = vadd.f32 %v1477, %v1645
  %v1647 = vpop.f32.mrf.mxu0
  %v1648 = vadd.f32 %v1479, %v1647
  %1649 = vmatmul.bf16.gmra.mxu0 %v872
  %v1650 = vpop.f32.mrf.mxu0
  %v1651 = vadd.f32 %v1482, %v1650
  %v1652 = vpop.f32.mrf.mxu0
  %v1653 = vadd.f32 %v1484, %v1652
  %1654 = vmatmul.bf16.gmra.mxu0 %v877
  %v1655 = vpop.f32.mrf.mxu0
  %v1656 = vadd.f32 %v1487, %v1655
  %v1657 = vpop.f32.mrf.mxu0
  %v1658 = vadd.f32 %v1489, %v1657
  %1659 = vmatmul.bf16.gmra.mxu0 %v882
  %v1660 = vpop.f32.mrf.mxu0
  %v1661 = vadd.f32 %v1492, %v1660
  %v1662 = vpop.f32.mrf.mxu0
  %v1663 = vadd.f32 %v1494, %v1662
  %1664 = vmatmul.bf16.gmra.mxu0 %v887
  %v1665 = vpop.f32.mrf.mxu0
  %v1666 = vadd.f32 %v1497, %v1665
  %v1667 = vpop.f32.mrf.mxu0
  %v1668 = vadd.f32 %v1499, %v1667
  %1669 = vmatmul.bf16.gmra.mxu0 %v892
  %v1670 = vpop.f32.mrf.mxu0
  %v1671 = vadd.f32 %v1502, %v1670
  %v1672 = vpop.f32.mrf.mxu0
  %v1673 = vadd.f32 %v1504, %v1672
  %1674 = vmatmul.bf16.gmra.mxu0 %v897
  %v1675 = vpop.f32.mrf.mxu0
  %v1676 = vadd.f32 %v1507, %v1675
  %v1677 = vpop.f32.mrf.mxu0
  %v1678 = vadd.f32 %v1509, %v1677
  %1679 = vmatmul.bf16.gmra.mxu0 %v902
  %v1680 = vpop.f32.mrf.mxu0
  %v1681 = vadd.f32 %v1512, %v1680
  %v1682 = vpop.f32.mrf.mxu0
  %v1683 = vadd.f32 %v1514, %v1682
  %1684 = vmatmul.bf16.gmra.mxu0 %v907
  %v1685 = vpop.f32.mrf.mxu0
  %v1686 = vadd.f32 %v1517, %v1685
  %v1687 = vpop.f32.mrf.mxu0
  %v1688 = vadd.f32 %v1519, %v1687
  %1689 = vmatmul.bf16.gmra.mxu0 %v912
  %v1690 = vpop.f32.mrf.mxu0
  %v1691 = vadd.f32 %v1522, %v1690
  %v1692 = vpop.f32.mrf.mxu0
  %v1693 = vadd.f32 %v1524, %v1692
  %1694 = vmatmul.bf16.gmra.mxu0 %v917
  %v1695 = vpop.f32.mrf.mxu0
  %v1696 = vadd.f32 %v1527, %v1695
  %v1697 = vpop.f32.mrf.mxu0
  %v1698 = vadd.f32 %v1529, %v1697
  %1699 = vmatmul.bf16.gmra.mxu0 %v922
  %v1700 = vpop.f32.mrf.mxu0
  %v1701 = vadd.f32 %v1532, %v1700
  %v1702 = vpop.f32.mrf.mxu0
  %v1703 = vadd.f32 %v1534, %v1702
  %1704 = vmatmul.bf16.gmra.mxu0 %v927
  %v1705 = vpop.f32.mrf.mxu0
  %v1706 = vadd.f32 %v1537, %v1705
  %v1707 = vpop.f32.mrf.mxu0
  %v1708 = vadd.f32 %v1539, %v1707
  %1709 = vmatmul.bf16.gmra.mxu0 %v932
  %v1710 = vpop.f32.mrf.mxu0
  %v1711 = vadd.f32 %v1542, %v1710
  %v1712 = vpop.f32.mrf.mxu0
  %v1713 = vadd.f32 %v1544, %v1712
  %1714 = vmatmul.bf16.gmra.mxu0 %v937
  %v1715 = vpop.f32.mrf.mxu0
  %v1716 = vadd.f32 %v1547, %v1715
  %v1717 = vpop.f32.mrf.mxu0
  %v1718 = vadd.f32 %v1549, %v1717
  %1719 = vmatmul.bf16.gmra.mxu0 %v942
  %v1720 = vpop.f32.mrf.mxu0
  %v1721 = vadd.f32 %v1552, %v1720
  %v1722 = vpop.f32.mrf.mxu0
  %v1723 = vadd.f32 %v1554, %v1722
  %1724 = vmatmul.bf16.gmra.mxu0 %v947
  %v1725 = vpop.f32.mrf.mxu0
  %v1726 = vadd.f32 %v1557, %v1725
  %v1727 = vpop.f32.mrf.mxu0
  %v1728 = vadd.f32 %v1559, %v1727
  %1729 = vmatmul.bf16.gmra.mxu0 %v952
  %v1730 = vpop.f32.mrf.mxu0
  %v1731 = vadd.f32 %v1562, %v1730
  %v1732 = vpop.f32.mrf.mxu0
  %v1733 = vadd.f32 %v1564, %v1732
  %1734 = vdwg.mxu0
  %1735 = vmatpush.bf16.msra.mxu0 %v1251
  %1736 = vmatpush.bf16.msra.mxu0 %v1250
  %1737 = vmatpush.bf16.msra.mxu0 %v1249
  %1738 = vmatpush.bf16.msra.mxu0 %v1248
  %1739 = vmatpush.bf16.msra.mxu0 %v1247
  %1740 = vmatpush.bf16.msra.mxu0 %v1246
  %1741 = vmatpush.bf16.msra.mxu0 %v1245
  %1742 = vmatpush.bf16.msra.mxu0 %v1244
  %1743 = vmatmul.bf16.gmra.mxu0 %v798
  %v1744 = vpop.f32.mrf.mxu0
  %v1745 = vadd.f32 %v1576, %v1744
  %v1746 = vpop.f32.mrf.mxu0
  %v1747 = vadd.f32 %v1578, %v1746
  %1748 = vmatmul.bf16.gmra.mxu0 %v803
  %v1749 = vpop.f32.mrf.mxu0
  %v1750 = vadd.f32 %v1581, %v1749
  %v1751 = vpop.f32.mrf.mxu0
  %v1752 = vadd.f32 %v1583, %v1751
  %1753 = vmatmul.bf16.gmra.mxu0 %v808
  %v1754 = vpop.f32.mrf.mxu0
  %v1755 = vadd.f32 %v1586, %v1754
  %v1756 = vpop.f32.mrf.mxu0
  %v1757 = vadd.f32 %v1588, %v1756
  %1758 = vmatmul.bf16.gmra.mxu0 %v813
  %v1759 = vpop.f32.mrf.mxu0
  %v1760 = vadd.f32 %v1591, %v1759
  %v1761 = vpop.f32.mrf.mxu0
  %v1762 = vadd.f32 %v1593, %v1761
  %1763 = vmatmul.bf16.gmra.mxu0 %v818
  %v1764 = vpop.f32.mrf.mxu0
  %v1765 = vadd.f32 %v1596, %v1764
  %v1766 = vpop.f32.mrf.mxu0
  %v1767 = vadd.f32 %v1598, %v1766
  %1768 = vmatmul.bf16.gmra.mxu0 %v823
  %v1769 = vpop.f32.mrf.mxu0
  %v1770 = vadd.f32 %v1601, %v1769
  %v1771 = vpop.f32.mrf.mxu0
  %v1772 = vadd.f32 %v1603, %v1771
  %1773 = vmatmul.bf16.gmra.mxu0 %v828
  %v1774 = vpop.f32.mrf.mxu0
  %v1775 = vadd.f32 %v1606, %v1774
  %v1776 = vpop.f32.mrf.mxu0
  %v1777 = vadd.f32 %v1608, %v1776
  %1778 = vmatmul.bf16.gmra.mxu0 %v833
  %v1779 = vpop.f32.mrf.mxu0
  %v1780 = vadd.f32 %v1611, %v1779
  %v1781 = vpop.f32.mrf.mxu0
  %v1782 = vadd.f32 %v1613, %v1781
  %1783 = vmatmul.bf16.gmra.mxu0 %v838
  %v1784 = vpop.f32.mrf.mxu0
  %v1785 = vadd.f32 %v1616, %v1784
  %v1786 = vpop.f32.mrf.mxu0
  %v1787 = vadd.f32 %v1618, %v1786
  %1788 = vmatmul.bf16.gmra.mxu0 %v843
  %v1789 = vpop.f32.mrf.mxu0
  %v1790 = vadd.f32 %v1621, %v1789
  %v1791 = vpop.f32.mrf.mxu0
  %v1792 = vadd.f32 %v1623, %v1791
  %1793 = vmatmul.bf16.gmra.mxu0 %v848
  %v1794 = vpop.f32.mrf.mxu0
  %v1795 = vadd.f32 %v1626, %v1794
  %v1796 = vpop.f32.mrf.mxu0
  %v1797 = vadd.f32 %v1628, %v1796
  %1798 = vmatmul.bf16.gmra.mxu0 %v853
  %v1799 = vpop.f32.mrf.mxu0
  %v1800 = vadd.f32 %v1631, %v1799
  %v1801 = vpop.f32.mrf.mxu0
  %v1802 = vadd.f32 %v1633, %v1801
  %1803 = vmatmul.bf16.gmra.mxu0 %v858
  %v1804 = vpop.f32.mrf.mxu0
  %v1805 = vadd.f32 %v1636, %v1804
  %v1806 = vpop.f32.mrf.mxu0
  %v1807 = vadd.f32 %v1638, %v1806
  %1808 = vmatmul.bf16.gmra.mxu0 %v863
  %v1809 = vpop.f32.mrf.mxu0
  %v1810 = vadd.f32 %v1641, %v1809
  %v1811 = vpop.f32.mrf.mxu0
  %v1812 = vadd.f32 %v1643, %v1811
  %1813 = vmatmul.bf16.gmra.mxu0 %v868
  %v1814 = vpop.f32.mrf.mxu0
  %v1815 = vadd.f32 %v1646, %v1814
  %v1816 = vpop.f32.mrf.mxu0
  %v1817 = vadd.f32 %v1648, %v1816
  %1818 = vmatmul.bf16.gmra.mxu0 %v873
  %v1819 = vpop.f32.mrf.mxu0
  %v1820 = vadd.f32 %v1651, %v1819
  %v1821 = vpop.f32.mrf.mxu0
  %v1822 = vadd.f32 %v1653, %v1821
  %1823 = vmatmul.bf16.gmra.mxu0 %v878
  %v1824 = vpop.f32.mrf.mxu0
  %v1825 = vadd.f32 %v1656, %v1824
  %v1826 = vpop.f32.mrf.mxu0
  %v1827 = vadd.f32 %v1658, %v1826
  %1828 = vmatmul.bf16.gmra.mxu0 %v883
  %v1829 = vpop.f32.mrf.mxu0
  %v1830 = vadd.f32 %v1661, %v1829
  %v1831 = vpop.f32.mrf.mxu0
  %v1832 = vadd.f32 %v1663, %v1831
  %1833 = vmatmul.bf16.gmra.mxu0 %v888
  %v1834 = vpop.f32.mrf.mxu0
  %v1835 = vadd.f32 %v1666, %v1834
  %v1836 = vpop.f32.mrf.mxu0
  %v1837 = vadd.f32 %v1668, %v1836
  %1838 = vmatmul.bf16.gmra.mxu0 %v893
  %v1839 = vpop.f32.mrf.mxu0
  %v1840 = vadd.f32 %v1671, %v1839
  %v1841 = vpop.f32.mrf.mxu0
  %v1842 = vadd.f32 %v1673, %v1841
  %1843 = vmatmul.bf16.gmra.mxu0 %v898
  %v1844 = vpop.f32.mrf.mxu0
  %v1845 = vadd.f32 %v1676, %v1844
  %v1846 = vpop.f32.mrf.mxu0
  %v1847 = vadd.f32 %v1678, %v1846
  %1848 = vmatmul.bf16.gmra.mxu0 %v903
  %v1849 = vpop.f32.mrf.mxu0
  %v1850 = vadd.f32 %v1681, %v1849
  %v1851 = vpop.f32.mrf.mxu0
  %v1852 = vadd.f32 %v1683, %v1851
  %1853 = vmatmul.bf16.gmra.mxu0 %v908
  %v1854 = vpop.f32.mrf.mxu0
  %v1855 = vadd.f32 %v1686, %v1854
  %v1856 = vpop.f32.mrf.mxu0
  %v1857 = vadd.f32 %v1688, %v1856
  %1858 = vmatmul.bf16.gmra.mxu0 %v913
  %v1859 = vpop.f32.mrf.mxu0
  %v1860 = vadd.f32 %v1691, %v1859
  %v1861 = vpop.f32.mrf.mxu0
  %v1862 = vadd.f32 %v1693, %v1861
  %1863 = vmatmul.bf16.gmra.mxu0 %v918
  %v1864 = vpop.f32.mrf.mxu0
  %v1865 = vadd.f32 %v1696, %v1864
  %v1866 = vpop.f32.mrf.mxu0
  %v1867 = vadd.f32 %v1698, %v1866
  %1868 = vmatmul.bf16.gmra.mxu0 %v923
  %v1869 = vpop.f32.mrf.mxu0
  %v1870 = vadd.f32 %v1701, %v1869
  %v1871 = vpop.f32.mrf.mxu0
  %v1872 = vadd.f32 %v1703, %v1871
  %1873 = vmatmul.bf16.gmra.mxu0 %v928
  %v1874 = vpop.f32.mrf.mxu0
  %v1875 = vadd.f32 %v1706, %v1874
  %v1876 = vpop.f32.mrf.mxu0
  %v1877 = vadd.f32 %v1708, %v1876
  %1878 = vmatmul.bf16.gmra.mxu0 %v933
  %v1879 = vpop.f32.mrf.mxu0
  %v1880 = vadd.f32 %v1711, %v1879
  %v1881 = vpop.f32.mrf.mxu0
  %v1882 = vadd.f32 %v1713, %v1881
  %1883 = vmatmul.bf16.gmra.mxu0 %v938
  %v1884 = vpop.f32.mrf.mxu0
  %v1885 = vadd.f32 %v1716, %v1884
  %v1886 = vpop.f32.mrf.mxu0
  %v1887 = vadd.f32 %v1718, %v1886
  %1888 = vmatmul.bf16.gmra.mxu0 %v943
  %v1889 = vpop.f32.mrf.mxu0
  %v1890 = vadd.f32 %v1721, %v1889
  %v1891 = vpop.f32.mrf.mxu0
  %v1892 = vadd.f32 %v1723, %v1891
  %1893 = vmatmul.bf16.gmra.mxu0 %v948
  %v1894 = vpop.f32.mrf.mxu0
  %v1895 = vadd.f32 %v1726, %v1894
  %v1896 = vpop.f32.mrf.mxu0
  %v1897 = vadd.f32 %v1728, %v1896
  %1898 = vmatmul.bf16.gmra.mxu0 %v953
  %v1899 = vpop.f32.mrf.mxu0
  %v1900 = vadd.f32 %v1731, %v1899
  %v1901 = vpop.f32.mrf.mxu0
  %v1902 = vadd.f32 %v1733, %v1901
  %1903 = vdwg.mxu0
  %1904 = vmatpush.bf16.msra.mxu0 %v1259
  %1905 = vmatpush.bf16.msra.mxu0 %v1258
  %1906 = vmatpush.bf16.msra.mxu0 %v1257
  %1907 = vmatpush.bf16.msra.mxu0 %v1256
  %1908 = vmatpush.bf16.msra.mxu0 %v1255
  %1909 = vmatpush.bf16.msra.mxu0 %v1254
  %1910 = vmatpush.bf16.msra.mxu0 %v1253
  %1911 = vmatpush.bf16.msra.mxu0 %v1252
  %1912 = vmatmul.bf16.gmra.mxu0 %v799
  %v1913 = vpop.f32.mrf.mxu0
  %v1914 = vadd.f32 %v1745, %v1913
  %v1915 = vpop.f32.mrf.mxu0
  %v1916 = vadd.f32 %v1747, %v1915
  %1917 = vmatmul.bf16.gmra.mxu0 %v804
  %v1918 = vpop.f32.mrf.mxu0
  %v1919 = vadd.f32 %v1750, %v1918
  %v1920 = vpop.f32.mrf.mxu0
  %v1921 = vadd.f32 %v1752, %v1920
  %1922 = vmatmul.bf16.gmra.mxu0 %v809
  %v1923 = vpop.f32.mrf.mxu0
  %v1924 = vadd.f32 %v1755, %v1923
  %v1925 = vpop.f32.mrf.mxu0
  %v1926 = vadd.f32 %v1757, %v1925
  %1927 = vmatmul.bf16.gmra.mxu0 %v814
  %v1928 = vpop.f32.mrf.mxu0
  %v1929 = vadd.f32 %v1760, %v1928
  %v1930 = vpop.f32.mrf.mxu0
  %v1931 = vadd.f32 %v1762, %v1930
  %1932 = vmatmul.bf16.gmra.mxu0 %v819
  %v1933 = vpop.f32.mrf.mxu0
  %v1934 = vadd.f32 %v1765, %v1933
  %v1935 = vpop.f32.mrf.mxu0
  %v1936 = vadd.f32 %v1767, %v1935
  %1937 = vmatmul.bf16.gmra.mxu0 %v824
  %v1938 = vpop.f32.mrf.mxu0
  %v1939 = vadd.f32 %v1770, %v1938
  %v1940 = vpop.f32.mrf.mxu0
  %v1941 = vadd.f32 %v1772, %v1940
  %1942 = vmatmul.bf16.gmra.mxu0 %v829
  %v1943 = vpop.f32.mrf.mxu0
  %v1944 = vadd.f32 %v1775, %v1943
  %v1945 = vpop.f32.mrf.mxu0
  %v1946 = vadd.f32 %v1777, %v1945
  %1947 = vmatmul.bf16.gmra.mxu0 %v834
  %v1948 = vpop.f32.mrf.mxu0
  %v1949 = vadd.f32 %v1780, %v1948
  %v1950 = vpop.f32.mrf.mxu0
  %v1951 = vadd.f32 %v1782, %v1950
  %1952 = vmatmul.bf16.gmra.mxu0 %v839
  %v1953 = vpop.f32.mrf.mxu0
  %v1954 = vadd.f32 %v1785, %v1953
  %v1955 = vpop.f32.mrf.mxu0
  %v1956 = vadd.f32 %v1787, %v1955
  %1957 = vmatmul.bf16.gmra.mxu0 %v844
  %v1958 = vpop.f32.mrf.mxu0
  %v1959 = vadd.f32 %v1790, %v1958
  %v1960 = vpop.f32.mrf.mxu0
  %v1961 = vadd.f32 %v1792, %v1960
  %1962 = vmatmul.bf16.gmra.mxu0 %v849
  %v1963 = vpop.f32.mrf.mxu0
  %v1964 = vadd.f32 %v1795, %v1963
  %v1965 = vpop.f32.mrf.mxu0
  %v1966 = vadd.f32 %v1797, %v1965
  %1967 = vmatmul.bf16.gmra.mxu0 %v854
  %v1968 = vpop.f32.mrf.mxu0
  %v1969 = vadd.f32 %v1800, %v1968
  %v1970 = vpop.f32.mrf.mxu0
  %v1971 = vadd.f32 %v1802, %v1970
  %1972 = vmatmul.bf16.gmra.mxu0 %v859
  %v1973 = vpop.f32.mrf.mxu0
  %v1974 = vadd.f32 %v1805, %v1973
  %v1975 = vpop.f32.mrf.mxu0
  %v1976 = vadd.f32 %v1807, %v1975
  %1977 = vmatmul.bf16.gmra.mxu0 %v864
  %v1978 = vpop.f32.mrf.mxu0
  %v1979 = vadd.f32 %v1810, %v1978
  %v1980 = vpop.f32.mrf.mxu0
  %v1981 = vadd.f32 %v1812, %v1980
  %1982 = vmatmul.bf16.gmra.mxu0 %v869
  %v1983 = vpop.f32.mrf.mxu0
  %v1984 = vadd.f32 %v1815, %v1983
  %v1985 = vpop.f32.mrf.mxu0
  %v1986 = vadd.f32 %v1817, %v1985
  %1987 = vmatmul.bf16.gmra.mxu0 %v874
  %v1988 = vpop.f32.mrf.mxu0
  %v1989 = vadd.f32 %v1820, %v1988
  %v1990 = vpop.f32.mrf.mxu0
  %v1991 = vadd.f32 %v1822, %v1990
  %1992 = vmatmul.bf16.gmra.mxu0 %v879
  %v1993 = vpop.f32.mrf.mxu0
  %v1994 = vadd.f32 %v1825, %v1993
  %v1995 = vpop.f32.mrf.mxu0
  %v1996 = vadd.f32 %v1827, %v1995
  %1997 = vmatmul.bf16.gmra.mxu0 %v884
  %v1998 = vpop.f32.mrf.mxu0
  %v1999 = vadd.f32 %v1830, %v1998
  %v2000 = vpop.f32.mrf.mxu0
  %v2001 = vadd.f32 %v1832, %v2000
  %2002 = vmatmul.bf16.gmra.mxu0 %v889
  %v2003 = vpop.f32.mrf.mxu0
  %v2004 = vadd.f32 %v1835, %v2003
  %v2005 = vpop.f32.mrf.mxu0
  %v2006 = vadd.f32 %v1837, %v2005
  %2007 = vmatmul.bf16.gmra.mxu0 %v894
  %v2008 = vpop.f32.mrf.mxu0
  %v2009 = vadd.f32 %v1840, %v2008
  %v2010 = vpop.f32.mrf.mxu0
  %v2011 = vadd.f32 %v1842, %v2010
  %2012 = vmatmul.bf16.gmra.mxu0 %v899
  %v2013 = vpop.f32.mrf.mxu0
  %v2014 = vadd.f32 %v1845, %v2013
  %v2015 = vpop.f32.mrf.mxu0
  %v2016 = vadd.f32 %v1847, %v2015
  %2017 = vmatmul.bf16.gmra.mxu0 %v904
  %v2018 = vpop.f32.mrf.mxu0
  %v2019 = vadd.f32 %v1850, %v2018
  %v2020 = vpop.f32.mrf.mxu0
  %v2021 = vadd.f32 %v1852, %v2020
  %2022 = vmatmul.bf16.gmra.mxu0 %v909
  %v2023 = vpop.f32.mrf.mxu0
  %v2024 = vadd.f32 %v1855, %v2023
  %v2025 = vpop.f32.mrf.mxu0
  %v2026 = vadd.f32 %v1857, %v2025
  %2027 = vmatmul.bf16.gmra.mxu0 %v914
  %v2028 = vpop.f32.mrf.mxu0
  %v2029 = vadd.f32 %v1860, %v2028
  %v2030 = vpop.f32.mrf.mxu0
  %v2031 = vadd.f32 %v1862, %v2030
  %2032 = vmatmul.bf16.gmra.mxu0 %v919
  %v2033 = vpop.f32.mrf.mxu0
  %v2034 = vadd.f32 %v1865, %v2033
  %v2035 = vpop.f32.mrf.mxu0
  %v2036 = vadd.f32 %v1867, %v2035
  %2037 = vmatmul.bf16.gmra.mxu0 %v924
  %v2038 = vpop.f32.mrf.mxu0
  %v2039 = vadd.f32 %v1870, %v2038
  %v2040 = vpop.f32.mrf.mxu0
  %v2041 = vadd.f32 %v1872, %v2040
  %2042 = vmatmul.bf16.gmra.mxu0 %v929
  %v2043 = vpop.f32.mrf.mxu0
  %v2044 = vadd.f32 %v1875, %v2043
  %v2045 = vpop.f32.mrf.mxu0
  %v2046 = vadd.f32 %v1877, %v2045
  %2047 = vmatmul.bf16.gmra.mxu0 %v934
  %v2048 = vpop.f32.mrf.mxu0
  %v2049 = vadd.f32 %v1880, %v2048
  %v2050 = vpop.f32.mrf.mxu0
  %v2051 = vadd.f32 %v1882, %v2050
  %2052 = vmatmul.bf16.gmra.mxu0 %v939
  %v2053 = vpop.f32.mrf.mxu0
  %v2054 = vadd.f32 %v1885, %v2053
  %v2055 = vpop.f32.mrf.mxu0
  %v2056 = vadd.f32 %v1887, %v2055
  %2057 = vmatmul.bf16.gmra.mxu0 %v944
  %v2058 = vpop.f32.mrf.mxu0
  %v2059 = vadd.f32 %v1890, %v2058
  %v2060 = vpop.f32.mrf.mxu0
  %v2061 = vadd.f32 %v1892, %v2060
  %2062 = vmatmul.bf16.gmra.mxu0 %v949
  %v2063 = vpop.f32.mrf.mxu0
  %v2064 = vadd.f32 %v1895, %v2063
  %v2065 = vpop.f32.mrf.mxu0
  %v2066 = vadd.f32 %v1897, %v2065
  %2067 = vmatmul.bf16.gmra.mxu0 %v954
  %v2068 = vpop.f32.mrf.mxu0
  %v2069 = vadd.f32 %v1900, %v2068
  %v2070 = vpop.f32.mrf.mxu0
  %v2071 = vadd.f32 %v1902, %v2070
  %2072 = vdwg.mxu0
  %2073 = vmatpush.bf16.msra.mxu0 0
  %2074 = vmatpush.bf16.msra.mxu0 0
  %2075 = vmatpush.bf16.msra.mxu0 0
  %2076 = vmatpush.bf16.msra.mxu0 0
  %2077 = vmatpush.bf16.msra.mxu0 %v1263
  %2078 = vmatpush.bf16.msra.mxu0 %v1262
  %2079 = vmatpush.bf16.msra.mxu0 %v1261
  %2080 = vmatpush.bf16.msra.mxu0 %v1260
  %2081 = vmatmul.bf16.gmra.mxu0 %v1302
  %v2082 = vpop.f32.mrf.mxu0
  %v2083 = vadd.f32 %v1914, %v2082
  %v2084 = vpop.f32.mrf.mxu0
  %v2085 = vadd.f32 %v1916, %v2084
  %2086 = vmatmul.bf16.gmra.mxu0 %v1305
  %v2087 = vpop.f32.mrf.mxu0
  %v2088 = vadd.f32 %v1919, %v2087
  %v2089 = vpop.f32.mrf.mxu0
  %v2090 = vadd.f32 %v1921, %v2089
  %2091 = vmatmul.bf16.gmra.mxu0 %v1308
  %v2092 = vpop.f32.mrf.mxu0
  %v2093 = vadd.f32 %v1924, %v2092
  %v2094 = vpop.f32.mrf.mxu0
  %v2095 = vadd.f32 %v1926, %v2094
  %2096 = vmatmul.bf16.gmra.mxu0 %v1311
  %v2097 = vpop.f32.mrf.mxu0
  %v2098 = vadd.f32 %v1929, %v2097
  %v2099 = vpop.f32.mrf.mxu0
  %v2100 = vadd.f32 %v1931, %v2099
  %2101 = vmatmul.bf16.gmra.mxu0 %v1314
  %v2102 = vpop.f32.mrf.mxu0
  %v2103 = vadd.f32 %v1934, %v2102
  %v2104 = vpop.f32.mrf.mxu0
  %v2105 = vadd.f32 %v1936, %v2104
  %2106 = vmatmul.bf16.gmra.mxu0 %v1317
  %v2107 = vpop.f32.mrf.mxu0
  %v2108 = vadd.f32 %v1939, %v2107
  %v2109 = vpop.f32.mrf.mxu0
  %v2110 = vadd.f32 %v1941, %v2109
  %2111 = vmatmul.bf16.gmra.mxu0 %v1320
  %v2112 = vpop.f32.mrf.mxu0
  %v2113 = vadd.f32 %v1944, %v2112
  %v2114 = vpop.f32.mrf.mxu0
  %v2115 = vadd.f32 %v1946, %v2114
  %2116 = vmatmul.bf16.gmra.mxu0 %v1323
  %v2117 = vpop.f32.mrf.mxu0
  %v2118 = vadd.f32 %v1949, %v2117
  %v2119 = vpop.f32.mrf.mxu0
  %v2120 = vadd.f32 %v1951, %v2119
  %2121 = vmatmul.bf16.gmra.mxu0 %v1326
  %v2122 = vpop.f32.mrf.mxu0
  %v2123 = vadd.f32 %v1954, %v2122
  %v2124 = vpop.f32.mrf.mxu0
  %v2125 = vadd.f32 %v1956, %v2124
  %2126 = vmatmul.bf16.gmra.mxu0 %v1329
  %v2127 = vpop.f32.mrf.mxu0
  %v2128 = vadd.f32 %v1959, %v2127
  %v2129 = vpop.f32.mrf.mxu0
  %v2130 = vadd.f32 %v1961, %v2129
  %2131 = vmatmul.bf16.gmra.mxu0 %v1332
  %v2132 = vpop.f32.mrf.mxu0
  %v2133 = vadd.f32 %v1964, %v2132
  %v2134 = vpop.f32.mrf.mxu0
  %v2135 = vadd.f32 %v1966, %v2134
  %2136 = vmatmul.bf16.gmra.mxu0 %v1335
  %v2137 = vpop.f32.mrf.mxu0
  %v2138 = vadd.f32 %v1969, %v2137
  %v2139 = vpop.f32.mrf.mxu0
  %v2140 = vadd.f32 %v1971, %v2139
  %2141 = vmatmul.bf16.gmra.mxu0 %v1338
  %v2142 = vpop.f32.mrf.mxu0
  %v2143 = vadd.f32 %v1974, %v2142
  %v2144 = vpop.f32.mrf.mxu0
  %v2145 = vadd.f32 %v1976, %v2144
  %2146 = vmatmul.bf16.gmra.mxu0 %v1341
  %v2147 = vpop.f32.mrf.mxu0
  %v2148 = vadd.f32 %v1979, %v2147
  %v2149 = vpop.f32.mrf.mxu0
  %v2150 = vadd.f32 %v1981, %v2149
  %2151 = vmatmul.bf16.gmra.mxu0 %v1344
  %v2152 = vpop.f32.mrf.mxu0
  %v2153 = vadd.f32 %v1984, %v2152
  %v2154 = vpop.f32.mrf.mxu0
  %v2155 = vadd.f32 %v1986, %v2154
  %2156 = vmatmul.bf16.gmra.mxu0 %v1347
  %v2157 = vpop.f32.mrf.mxu0
  %v2158 = vadd.f32 %v1989, %v2157
  %v2159 = vpop.f32.mrf.mxu0
  %v2160 = vadd.f32 %v1991, %v2159
  %2161 = vmatmul.bf16.gmra.mxu0 %v1350
  %v2162 = vpop.f32.mrf.mxu0
  %v2163 = vadd.f32 %v1994, %v2162
  %v2164 = vpop.f32.mrf.mxu0
  %v2165 = vadd.f32 %v1996, %v2164
  %2166 = vmatmul.bf16.gmra.mxu0 %v1353
  %v2167 = vpop.f32.mrf.mxu0
  %v2168 = vadd.f32 %v1999, %v2167
  %v2169 = vpop.f32.mrf.mxu0
  %v2170 = vadd.f32 %v2001, %v2169
  %2171 = vmatmul.bf16.gmra.mxu0 %v1356
  %v2172 = vpop.f32.mrf.mxu0
  %v2173 = vadd.f32 %v2004, %v2172
  %v2174 = vpop.f32.mrf.mxu0
  %v2175 = vadd.f32 %v2006, %v2174
  %2176 = vmatmul.bf16.gmra.mxu0 %v1359
  %v2177 = vpop.f32.mrf.mxu0
  %v2178 = vadd.f32 %v2009, %v2177
  %v2179 = vpop.f32.mrf.mxu0
  %v2180 = vadd.f32 %v2011, %v2179
  %2181 = vmatmul.bf16.gmra.mxu0 %v1362
  %v2182 = vpop.f32.mrf.mxu0
  %v2183 = vadd.f32 %v2014, %v2182
  %v2184 = vpop.f32.mrf.mxu0
  %v2185 = vadd.f32 %v2016, %v2184
  %2186 = vmatmul.bf16.gmra.mxu0 %v1365
  %v2187 = vpop.f32.mrf.mxu0
  %v2188 = vadd.f32 %v2019, %v2187
  %v2189 = vpop.f32.mrf.mxu0
  %v2190 = vadd.f32 %v2021, %v2189
  %2191 = vmatmul.bf16.gmra.mxu0 %v1368
  %v2192 = vpop.f32.mrf.mxu0
  %v2193 = vadd.f32 %v2024, %v2192
  %v2194 = vpop.f32.mrf.mxu0
  %v2195 = vadd.f32 %v2026, %v2194
  %2196 = vmatmul.bf16.gmra.mxu0 %v1371
  %v2197 = vpop.f32.mrf.mxu0
  %v2198 = vadd.f32 %v2029, %v2197
  %v2199 = vpop.f32.mrf.mxu0
  %v2200 = vadd.f32 %v2031, %v2199
  %2201 = vmatmul.bf16.gmra.mxu0 %v1374
  %v2202 = vpop.f32.mrf.mxu0
  %v2203 = vadd.f32 %v2034, %v2202
  %v2204 = vpop.f32.mrf.mxu0
  %v2205 = vadd.f32 %v2036, %v2204
  %2206 = vmatmul.bf16.gmra.mxu0 %v1377
  %v2207 = vpop.f32.mrf.mxu0
  %v2208 = vadd.f32 %v2039, %v2207
  %v2209 = vpop.f32.mrf.mxu0
  %v2210 = vadd.f32 %v2041, %v2209
  %2211 = vmatmul.bf16.gmra.mxu0 %v1380
  %v2212 = vpop.f32.mrf.mxu0
  %v2213 = vadd.f32 %v2044, %v2212
  %v2214 = vpop.f32.mrf.mxu0
  %v2215 = vadd.f32 %v2046, %v2214
  %2216 = vmatmul.bf16.gmra.mxu0 %v1383
  %v2217 = vpop.f32.mrf.mxu0
  %v2218 = vadd.f32 %v2049, %v2217
  %v2219 = vpop.f32.mrf.mxu0
  %v2220 = vadd.f32 %v2051, %v2219
  %2221 = vmatmul.bf16.gmra.mxu0 %v1386
  %v2222 = vpop.f32.mrf.mxu0
  %v2223 = vadd.f32 %v2054, %v2222
  %v2224 = vpop.f32.mrf.mxu0
  %v2225 = vadd.f32 %v2056, %v2224
  %2226 = vmatmul.bf16.gmra.mxu0 %v1389
  %v2227 = vpop.f32.mrf.mxu0
  %v2228 = vadd.f32 %v2059, %v2227
  %v2229 = vpop.f32.mrf.mxu0
  %v2230 = vadd.f32 %v2061, %v2229
  %2231 = vmatmul.bf16.gmra.mxu0 %v1392
  %v2232 = vpop.f32.mrf.mxu0
  %v2233 = vadd.f32 %v2064, %v2232
  %v2234 = vpop.f32.mrf.mxu0
  %v2235 = vadd.f32 %v2066, %v2234
  %2236 = vmatmul.bf16.gmra.mxu0 %v1395
  %v2237 = vpop.f32.mrf.mxu0
  %v2238 = vadd.f32 %v2069, %v2237
  %v2239 = vpop.f32.mrf.mxu0
  %v2240 = vadd.f32 %v2071, %v2239
  %2241 = vdwg.mxu0
  %v2242 = vld [vmem:[%s2] sm:$0xff]
  %v2243 = vld [vmem:[%s2 + $0x8] sm:$0xff]
  %v2244 = vld [vmem:[%s2 + $0x10] sm:$0xf]
  %v2245 = vld [vmem:[%s2 + $0x14] sm:$0xff]
  %v2246 = vld [vmem:[%s2 + $0x1c] sm:$0xff]
  %v2247 = vld [vmem:[%s2 + $0x24] sm:$0xf]
  %v2248 = vld [vmem:[%s2 + $0x28] sm:$0xff]
  %v2249 = vld [vmem:[%s2 + $0x30] sm:$0xff]
  %v2250 = vld [vmem:[%s2 + $0x38] sm:$0xf]
  %v2251 = vld [vmem:[%s2 + $0x3c] sm:$0xff]
  %v2252 = vld [vmem:[%s2 + $0x44] sm:$0xff]
  %v2253 = vld [vmem:[%s2 + $0x4c] sm:$0xf]
  %v2254 = vld [vmem:[%s2 + $0x50] sm:$0xff]
  %v2255 = vld [vmem:[%s2 + $0x58] sm:$0xff]
  %v2256 = vld [vmem:[%s2 + $0x60] sm:$0xf]
  %v2257 = vld [vmem:[%s2 + $0x64] sm:$0xff]
  %v2258 = vld [vmem:[%s2 + $0x6c] sm:$0xff]
  %v2259 = vld [vmem:[%s2 + $0x74] sm:$0xf]
  %v2260 = vld [vmem:[%s2 + $0x78] sm:$0xff]
  %v2261 = vld [vmem:[%s2 + $0x80] sm:$0xff]
  %v2262 = vld [vmem:[%s2 + $0x88] sm:$0xf]
  %v2263 = vld [vmem:[%s2 + $0x8c] sm:$0xff]
  %v2264 = vld [vmem:[%s2 + $0x94] sm:$0xff]
  %v2265 = vld [vmem:[%s2 + $0x9c] sm:$0xf]
  %v2266 = vld [vmem:[%s2 + $0xa0] sm:$0xff]
  %v2267 = vld [vmem:[%s2 + $0xa8] sm:$0xff]
  %v2268 = vld [vmem:[%s2 + $0xb0] sm:$0xf]
  %v2269 = vld [vmem:[%s2 + $0xb4] sm:$0xff]
  %v2270 = vld [vmem:[%s2 + $0xbc] sm:$0xff]
  %v2271 = vld [vmem:[%s2 + $0xc4] sm:$0xf]
  %v2272 = vld [vmem:[%s2 + $0xc8] sm:$0xff]
  %v2273 = vld [vmem:[%s2 + $0xd0] sm:$0xff]
  %v2274 = vld [vmem:[%s2 + $0xd8] sm:$0xf]
  %v2275 = vld [vmem:[%s2 + $0xdc] sm:$0xff]
  %v2276 = vld [vmem:[%s2 + $0xe4] sm:$0xff]
  %v2277 = vld [vmem:[%s2 + $0xec] sm:$0xf]
  %v2278 = vld [vmem:[%s2 + $0xf0] sm:$0xff]
  %v2279 = vld [vmem:[%s2 + $0xf8] sm:$0xff]
  %v2280 = vld [vmem:[%s2 + $0x100] sm:$0xf]
  %v2281 = vld [vmem:[%s2 + $0x104] sm:$0xff]
  %v2282 = vld [vmem:[%s2 + $0x10c] sm:$0xff]
  %v2283 = vld [vmem:[%s2 + $0x114] sm:$0xf]
  %v2284 = vld [vmem:[%s2 + $0x118] sm:$0xff]
  %v2285 = vld [vmem:[%s2 + $0x120] sm:$0xff]
  %v2286 = vld [vmem:[%s2 + $0x128] sm:$0xf]
  %v2287 = vld [vmem:[%s2 + $0x12c] sm:$0xff]
  %v2288 = vld [vmem:[%s2 + $0x134] sm:$0xff]
  %v2289 = vld [vmem:[%s2 + $0x13c] sm:$0xf]
  %v2290 = vld [vmem:[%s3] sm:$0xf]
  %v2291 = vld [vmem:[%s3 + $0x4] sm:$0xf]
  %v2292 = vld [vmem:[%s3 + $0x8] sm:$0xf]
  %v2293 = vld [vmem:[%s3 + $0xc] sm:$0xf]
  %v2294 = vld [vmem:[%s3 + $0x10] sm:$0xf]
  %v2295 = vld [vmem:[%s3 + $0x14] sm:$0xf]
  %v2296 = vld [vmem:[%s3 + $0x18] sm:$0xf]
  %v2297 = vld [vmem:[%s3 + $0x1c] sm:$0xf]
  %v2298 = vld [vmem:[%s3 + $0x20] sm:$0xf]
  %v2299 = vld [vmem:[%s3 + $0x24] sm:$0xf]
  %v2300 = vld [vmem:[%s3 + $0x28] sm:$0xf]
  %v2301 = vld [vmem:[%s3 + $0x2c] sm:$0xf]
  %v2302 = vld [vmem:[%s3 + $0x30] sm:$0xf]
  %v2303 = vld [vmem:[%s3 + $0x34] sm:$0xf]
  %v2304 = vld [vmem:[%s3 + $0x38] sm:$0xf]
  %v2305 = vld [vmem:[%s3 + $0x3c] sm:$0xf]
  %v2306 = vld [vmem:[%s3 + $0x40] sm:$0xf]
  %v2307 = vld [vmem:[%s3 + $0x44] sm:$0xf]
  %v2308 = vld [vmem:[%s3 + $0x48] sm:$0xf]
  %v2309 = vld [vmem:[%s3 + $0x4c] sm:$0xf]
  %v2310 = vld [vmem:[%s3 + $0x50] sm:$0xf]
  %v2311 = vld [vmem:[%s3 + $0x54] sm:$0xf]
  %v2312 = vld [vmem:[%s3 + $0x58] sm:$0xf]
  %v2313 = vld [vmem:[%s3 + $0x5c] sm:$0xf]
  %v2314 = vld [vmem:[%s3 + $0x60] sm:$0xf]
  %v2315 = vld [vmem:[%s3 + $0x64] sm:$0xf]
  %v2316 = vld [vmem:[%s3 + $0x68] sm:$0xf]
  %v2317 = vld [vmem:[%s3 + $0x6c] sm:$0xf]
  %v2318 = vld [vmem:[%s3 + $0x70] sm:$0xf]
  %v2319 = vld [vmem:[%s3 + $0x74] sm:$0xf]
  %v2320 = vld [vmem:[%s3 + $0x78] sm:$0xf]
  %v2321 = vld [vmem:[%s3 + $0x7c] sm:$0xf]
  %v2322 = vld [vmem:[%s3 + $0x80] sm:$0xf]
  %v2323 = vld [vmem:[%s3 + $0x84] sm:$0xf]
  %v2324 = vld [vmem:[%s3 + $0x88] sm:$0xf]
  %v2325 = vld [vmem:[%s3 + $0x8c] sm:$0xf]
  %v2326 = vld [vmem:[%s3 + $0x90] sm:$0xf]
  %v2327 = vld [vmem:[%s3 + $0x94] sm:$0xf]
  %v2328 = vld [vmem:[%s3 + $0x98] sm:$0xf]
  %v2329 = vld [vmem:[%s3 + $0x9c] sm:$0xf]
  %v2330 = vld [vmem:[%s3 + $0xa0] sm:$0xf]
  %v2331 = vld [vmem:[%s3 + $0xa4] sm:$0xf]
  %v2332 = vld [vmem:[%s3 + $0xa8] sm:$0xf]
  %v2333 = vld [vmem:[%s3 + $0xac] sm:$0xf]
  %v2334 = vld [vmem:[%s3 + $0xb0] sm:$0xf]
  %v2335 = vld [vmem:[%s3 + $0xb4] sm:$0xf]
  %v2336 = vld [vmem:[%s3 + $0xb8] sm:$0xf]
  %v2337 = vld [vmem:[%s3 + $0xbc] sm:$0xf]
  %v2338 = vld [vmem:[%s3 + $0xc0] sm:$0xf]
  %v2339 = vld [vmem:[%s3 + $0xc4] sm:$0xf]
  %v2340 = vld [vmem:[%s3 + $0xc8] sm:$0xf]
  %v2341 = vld [vmem:[%s3 + $0xcc] sm:$0xf]
  %v2342 = vld [vmem:[%s3 + $0xd0] sm:$0xf]
  %v2343 = vld [vmem:[%s3 + $0xd4] sm:$0xf]
  %v2344 = vld [vmem:[%s3 + $0xd8] sm:$0xf]
  %v2345 = vld [vmem:[%s3 + $0xdc] sm:$0xf]
  %v2346 = vld [vmem:[%s3 + $0xe0] sm:$0xf]
  %v2347 = vld [vmem:[%s3 + $0xe4] sm:$0xf]
  %v2348 = vld [vmem:[%s3 + $0xe8] sm:$0xf]
  %v2349 = vld [vmem:[%s3 + $0xec] sm:$0xf]
  %v2350 = vld [vmem:[%s3 + $0xf0] sm:$0xf]
  %v2351 = vld [vmem:[%s3 + $0xf4] sm:$0xf]
  %v2352 = vld [vmem:[%s3 + $0xf8] sm:$0xf]
  %v2353 = vld [vmem:[%s3 + $0xfc] sm:$0xf]
  %v2354 = vld [vmem:[%s3 + $0x100] sm:$0xf]
  %v2355 = vld [vmem:[%s3 + $0x104] sm:$0xf]
  %v2356 = vld [vmem:[%s3 + $0x108] sm:$0xf]
  %v2357 = vld [vmem:[%s3 + $0x10c] sm:$0xf]
  %v2358 = vld [vmem:[%s3 + $0x110] sm:$0xf]
  %v2359 = vld [vmem:[%s3 + $0x114] sm:$0xf]
  %v2360 = vld [vmem:[%s3 + $0x118] sm:$0xf]
  %v2361 = vld [vmem:[%s3 + $0x11c] sm:$0xf]
  %v2410 = vunpack.c.l.b16 %v2242
  %v2411 = vunpack.c.h.b16 %v2242
  %v2412 = vunpack.c.l.b16 %v2243
  %v2413 = vunpack.c.h.b16 %v2243
  %v2414 = vunpack.c.l.b16 %v2244
  %v2415 = vunpack.c.l.b16 %v2245
  %v2416 = vunpack.c.h.b16 %v2245
  %v2417 = vunpack.c.l.b16 %v2246
  %v2418 = vunpack.c.h.b16 %v2246
  %v2419 = vunpack.c.l.b16 %v2247
  %v2420 = vunpack.c.l.b16 %v2248
  %v2421 = vunpack.c.h.b16 %v2248
  %v2422 = vunpack.c.l.b16 %v2249
  %v2423 = vunpack.c.h.b16 %v2249
  %v2424 = vunpack.c.l.b16 %v2250
  %v2425 = vunpack.c.l.b16 %v2251
  %v2426 = vunpack.c.h.b16 %v2251
  %v2427 = vunpack.c.l.b16 %v2252
  %v2428 = vunpack.c.h.b16 %v2252
  %v2429 = vunpack.c.l.b16 %v2253
  %v2430 = vunpack.c.l.b16 %v2254
  %v2431 = vunpack.c.h.b16 %v2254
  %v2432 = vunpack.c.l.b16 %v2255
  %v2433 = vunpack.c.h.b16 %v2255
  %v2434 = vunpack.c.l.b16 %v2256
  %v2435 = vunpack.c.l.b16 %v2257
  %v2436 = vunpack.c.h.b16 %v2257
  %v2437 = vunpack.c.l.b16 %v2258
  %v2438 = vunpack.c.h.b16 %v2258
  %v2439 = vunpack.c.l.b16 %v2259
  %v2440 = vunpack.c.l.b16 %v2260
  %v2441 = vunpack.c.h.b16 %v2260
  %v2442 = vunpack.c.l.b16 %v2261
  %v2443 = vunpack.c.h.b16 %v2261
  %v2444 = vunpack.c.l.b16 %v2262
  %v2445 = vunpack.c.l.b16 %v2263
  %v2446 = vunpack.c.h.b16 %v2263
  %v2447 = vunpack.c.l.b16 %v2264
  %v2448 = vunpack.c.h.b16 %v2264
  %v2449 = vunpack.c.l.b16 %v2265
  %v2450 = vunpack.c.l.b16 %v2266
  %v2451 = vunpack.c.h.b16 %v2266
  %v2452 = vunpack.c.l.b16 %v2267
  %v2453 = vunpack.c.h.b16 %v2267
  %v2454 = vunpack.c.l.b16 %v2268
  %v2455 = vunpack.c.l.b16 %v2269
  %v2456 = vunpack.c.h.b16 %v2269
  %v2457 = vunpack.c.l.b16 %v2270
  %v2458 = vunpack.c.h.b16 %v2270
  %v2459 = vunpack.c.l.b16 %v2271
  %v2460 = vunpack.c.l.b16 %v2272
  %v2461 = vunpack.c.h.b16 %v2272
  %v2462 = vunpack.c.l.b16 %v2273
  %v2463 = vunpack.c.h.b16 %v2273
  %v2464 = vunpack.c.l.b16 %v2274
  %v2465 = vunpack.c.l.b16 %v2275
  %v2466 = vunpack.c.h.b16 %v2275
  %v2467 = vunpack.c.l.b16 %v2276
  %v2468 = vunpack.c.h.b16 %v2276
  %v2469 = vunpack.c.l.b16 %v2277
  %v2470 = vunpack.c.l.b16 %v2278
  %v2471 = vunpack.c.h.b16 %v2278
  %v2472 = vunpack.c.l.b16 %v2279
  %v2473 = vunpack.c.h.b16 %v2279
  %v2474 = vunpack.c.l.b16 %v2280
  %v2475 = vunpack.c.l.b16 %v2281
  %v2476 = vunpack.c.h.b16 %v2281
  %v2477 = vunpack.c.l.b16 %v2282
  %v2478 = vunpack.c.h.b16 %v2282
  %v2479 = vunpack.c.l.b16 %v2283
  %v2480 = vunpack.c.l.b16 %v2284
  %v2481 = vunpack.c.h.b16 %v2284
  %v2482 = vunpack.c.l.b16 %v2285
  %v2483 = vunpack.c.h.b16 %v2285
  %v2484 = vunpack.c.l.b16 %v2286
  %v2485 = vunpack.c.l.b16 %v2287
  %v2486 = vunpack.c.h.b16 %v2287
  %v2487 = vunpack.c.l.b16 %v2288
  %v2488 = vunpack.c.h.b16 %v2288
  %v2489 = vunpack.c.l.b16 %v2289
  %v2490 = vpack.c.b16 %v2415, %v2410
  %v2491 = vpack.c.b16 %v2416, %v2411
  %v2492 = vpack.c.b16 %v2417, %v2412
  %v2493 = vpack.c.b16 %v2418, %v2413
  %v2494 = vpack.c.b16 %v2419, %v2414
  %v2495 = vpack.c.b16 %v2425, %v2420
  %v2496 = vpack.c.b16 %v2426, %v2421
  %v2497 = vpack.c.b16 %v2427, %v2422
  %v2498 = vpack.c.b16 %v2428, %v2423
  %v2499 = vpack.c.b16 %v2429, %v2424
  %v2500 = vpack.c.b16 %v2435, %v2430
  %v2501 = vpack.c.b16 %v2436, %v2431
  %v2502 = vpack.c.b16 %v2437, %v2432
  %v2503 = vpack.c.b16 %v2438, %v2433
  %v2504 = vpack.c.b16 %v2439, %v2434
  %v2505 = vpack.c.b16 %v2445, %v2440
  %v2506 = vpack.c.b16 %v2446, %v2441
  %v2507 = vpack.c.b16 %v2447, %v2442
  %v2508 = vpack.c.b16 %v2448, %v2443
  %v2509 = vpack.c.b16 %v2449, %v2444
  %v2510 = vpack.c.b16 %v2455, %v2450
  %v2511 = vpack.c.b16 %v2456, %v2451
  %v2512 = vpack.c.b16 %v2457, %v2452
  %v2513 = vpack.c.b16 %v2458, %v2453
  %v2514 = vpack.c.b16 %v2459, %v2454
  %v2515 = vpack.c.b16 %v2465, %v2460
  %v2516 = vpack.c.b16 %v2466, %v2461
  %v2517 = vpack.c.b16 %v2467, %v2462
  %v2518 = vpack.c.b16 %v2468, %v2463
  %v2519 = vpack.c.b16 %v2469, %v2464
  %v2520 = vpack.c.b16 %v2475, %v2470
  %v2521 = vpack.c.b16 %v2476, %v2471
  %v2522 = vpack.c.b16 %v2477, %v2472
  %v2523 = vpack.c.b16 %v2478, %v2473
  %v2524 = vpack.c.b16 %v2479, %v2474
  %v2525 = vpack.c.b16 %v2485, %v2480
  %v2526 = vpack.c.b16 %v2486, %v2481
  %v2527 = vpack.c.b16 %v2487, %v2482
  %v2528 = vpack.c.b16 %v2488, %v2483
  %v2529 = vpack.c.b16 %v2489, %v2484
  %v2634 = vunpack.c.l.b16 %v2290
  %v2635 = vunpack.c.l.b16 %v2291
  %v2636 = vunpack.c.l.b16 %v2292
  %v2637 = vunpack.c.l.b16 %v2293
  %v2638 = vunpack.c.l.b16 %v2294
  %v2639 = vunpack.c.l.b16 %v2295
  %v2640 = vunpack.c.l.b16 %v2296
  %v2641 = vunpack.c.l.b16 %v2297
  %v2642 = vunpack.c.l.b16 %v2298
  %v2643 = vunpack.c.l.b16 %v2299
  %v2644 = vunpack.c.l.b16 %v2300
  %v2645 = vunpack.c.l.b16 %v2301
  %v2646 = vunpack.c.l.b16 %v2302
  %v2647 = vunpack.c.l.b16 %v2303
  %v2648 = vunpack.c.l.b16 %v2304
  %v2649 = vunpack.c.l.b16 %v2305
  %v2650 = vunpack.c.l.b16 %v2306
  %v2651 = vunpack.c.l.b16 %v2307
  %v2652 = vunpack.c.l.b16 %v2308
  %v2653 = vunpack.c.l.b16 %v2309
  %v2654 = vunpack.c.l.b16 %v2310
  %v2655 = vunpack.c.l.b16 %v2311
  %v2656 = vunpack.c.l.b16 %v2312
  %v2657 = vunpack.c.l.b16 %v2313
  %v2658 = vunpack.c.l.b16 %v2314
  %v2659 = vunpack.c.l.b16 %v2315
  %v2660 = vunpack.c.l.b16 %v2316
  %v2661 = vunpack.c.l.b16 %v2317
  %v2662 = vunpack.c.l.b16 %v2318
  %v2663 = vunpack.c.l.b16 %v2319
  %v2664 = vunpack.c.l.b16 %v2320
  %v2665 = vunpack.c.l.b16 %v2321
  %v2666 = vunpack.c.l.b16 %v2322
  %v2667 = vunpack.c.l.b16 %v2323
  %v2668 = vunpack.c.l.b16 %v2324
  %v2669 = vunpack.c.l.b16 %v2325
  %v2670 = vunpack.c.l.b16 %v2326
  %v2671 = vunpack.c.l.b16 %v2327
  %v2672 = vunpack.c.l.b16 %v2328
  %v2673 = vunpack.c.l.b16 %v2329
  %v2674 = vunpack.c.l.b16 %v2330
  %v2675 = vunpack.c.l.b16 %v2331
  %v2676 = vunpack.c.l.b16 %v2332
  %v2677 = vunpack.c.l.b16 %v2333
  %v2678 = vunpack.c.l.b16 %v2334
  %v2679 = vunpack.c.l.b16 %v2335
  %v2680 = vunpack.c.l.b16 %v2336
  %v2681 = vunpack.c.l.b16 %v2337
  %v2682 = vunpack.c.l.b16 %v2338
  %v2683 = vunpack.c.l.b16 %v2339
  %v2684 = vunpack.c.l.b16 %v2340
  %v2685 = vunpack.c.l.b16 %v2341
  %v2686 = vunpack.c.l.b16 %v2342
  %v2687 = vunpack.c.l.b16 %v2343
  %v2688 = vunpack.c.l.b16 %v2344
  %v2689 = vunpack.c.l.b16 %v2345
  %v2690 = vunpack.c.l.b16 %v2346
  %v2691 = vunpack.c.l.b16 %v2347
  %v2692 = vunpack.c.l.b16 %v2348
  %v2693 = vunpack.c.l.b16 %v2349
  %v2694 = vunpack.c.l.b16 %v2350
  %v2695 = vunpack.c.l.b16 %v2351
  %v2696 = vunpack.c.l.b16 %v2352
  %v2697 = vunpack.c.l.b16 %v2353
  %v2698 = vunpack.c.l.b16 %v2354
  %v2699 = vunpack.c.l.b16 %v2355
  %v2700 = vunpack.c.l.b16 %v2356
  %v2701 = vunpack.c.l.b16 %v2357
  %v2702 = vunpack.c.l.b16 %v2358
  %v2703 = vunpack.c.l.b16 %v2359
  %v2704 = vunpack.c.l.b16 %v2360
  %v2705 = vunpack.c.l.b16 %v2361
  %v2706 = vpack.c.b16 %v2635, %v2634
  %v2707 = vpack.c.b16 %v2637, %v2636
  %v2708 = vpack.c.b16 %v2639, %v2638
  %v2709 = vpack.c.b16 %v2641, %v2640
  %v2710 = vpack.c.b16 %v2643, %v2642
  %v2711 = vpack.c.b16 %v2645, %v2644
  %v2712 = vpack.c.b16 %v2647, %v2646
  %v2713 = vpack.c.b16 %v2649, %v2648
  %v2714 = vpack.c.b16 %v2651, %v2650
  %v2715 = vpack.c.b16 %v2653, %v2652
  %v2716 = vpack.c.b16 %v2655, %v2654
  %v2717 = vpack.c.b16 %v2657, %v2656
  %v2718 = vpack.c.b16 %v2659, %v2658
  %v2719 = vpack.c.b16 %v2661, %v2660
  %v2720 = vpack.c.b16 %v2663, %v2662
  %v2721 = vpack.c.b16 %v2665, %v2664
  %v2722 = vpack.c.b16 %v2667, %v2666
  %v2723 = vpack.c.b16 %v2669, %v2668
  %v2724 = vpack.c.b16 %v2671, %v2670
  %v2725 = vpack.c.b16 %v2673, %v2672
  %v2726 = vpack.c.b16 %v2675, %v2674
  %v2727 = vpack.c.b16 %v2677, %v2676
  %v2728 = vpack.c.b16 %v2679, %v2678
  %v2729 = vpack.c.b16 %v2681, %v2680
  %v2730 = vpack.c.b16 %v2683, %v2682
  %v2731 = vpack.c.b16 %v2685, %v2684
  %v2732 = vpack.c.b16 %v2687, %v2686
  %v2733 = vpack.c.b16 %v2689, %v2688
  %v2734 = vpack.c.b16 %v2691, %v2690
  %v2735 = vpack.c.b16 %v2693, %v2692
  %v2736 = vpack.c.b16 %v2695, %v2694
  %v2737 = vpack.c.b16 %v2697, %v2696
  %v2738 = vpack.c.b16 %v2699, %v2698
  %v2739 = vpack.c.b16 %v2701, %v2700
  %v2740 = vpack.c.b16 %v2703, %v2702
  %v2741 = vpack.c.b16 %v2705, %v2704
  %v2779 = vsel %vm1300, %v2494, 0
  %v2782 = vsel %vm1300, %v2499, 0
  %v2785 = vsel %vm1300, %v2504, 0
  %v2788 = vsel %vm1300, %v2509, 0
  %v2791 = vsel %vm1300, %v2514, 0
  %v2794 = vsel %vm1300, %v2519, 0
  %v2797 = vsel %vm1300, %v2524, 0
  %v2800 = vsel %vm1300, %v2529, 0
  %2802 = vmatpush.bf16.msra.mxu0 %v2713
  %2803 = vmatpush.bf16.msra.mxu0 %v2712
  %2804 = vmatpush.bf16.msra.mxu0 %v2711
  %2805 = vmatpush.bf16.msra.mxu0 %v2710
  %2806 = vmatpush.bf16.msra.mxu0 %v2709
  %2807 = vmatpush.bf16.msra.mxu0 %v2708
  %2808 = vmatpush.bf16.msra.mxu0 %v2707
  %2809 = vmatpush.bf16.msra.mxu0 %v2706
  %2810 = vmatmul.bf16.gmra.mxu0 %v2490
  %v2811 = vpop.f32.mrf.mxu0
  %v2812 = vadd.f32 0.0, %v2811
  %v2813 = vpop.f32.mrf.mxu0
  %v2814 = vadd.f32 0.0, %v2813
  %2815 = vmatmul.bf16.gmra.mxu0 %v2495
  %v2816 = vpop.f32.mrf.mxu0
  %v2817 = vadd.f32 0.0, %v2816
  %v2818 = vpop.f32.mrf.mxu0
  %v2819 = vadd.f32 0.0, %v2818
  %2820 = vmatmul.bf16.gmra.mxu0 %v2500
  %v2821 = vpop.f32.mrf.mxu0
  %v2822 = vadd.f32 0.0, %v2821
  %v2823 = vpop.f32.mrf.mxu0
  %v2824 = vadd.f32 0.0, %v2823
  %2825 = vmatmul.bf16.gmra.mxu0 %v2505
  %v2826 = vpop.f32.mrf.mxu0
  %v2827 = vadd.f32 0.0, %v2826
  %v2828 = vpop.f32.mrf.mxu0
  %v2829 = vadd.f32 0.0, %v2828
  %2830 = vmatmul.bf16.gmra.mxu0 %v2510
  %v2831 = vpop.f32.mrf.mxu0
  %v2832 = vadd.f32 0.0, %v2831
  %v2833 = vpop.f32.mrf.mxu0
  %v2834 = vadd.f32 0.0, %v2833
  %2835 = vmatmul.bf16.gmra.mxu0 %v2515
  %v2836 = vpop.f32.mrf.mxu0
  %v2837 = vadd.f32 0.0, %v2836
  %v2838 = vpop.f32.mrf.mxu0
  %v2839 = vadd.f32 0.0, %v2838
  %2840 = vmatmul.bf16.gmra.mxu0 %v2520
  %v2841 = vpop.f32.mrf.mxu0
  %v2842 = vadd.f32 0.0, %v2841
  %v2843 = vpop.f32.mrf.mxu0
  %v2844 = vadd.f32 0.0, %v2843
  %2845 = vmatmul.bf16.gmra.mxu0 %v2525
  %v2846 = vpop.f32.mrf.mxu0
  %v2847 = vadd.f32 0.0, %v2846
  %v2848 = vpop.f32.mrf.mxu0
  %v2849 = vadd.f32 0.0, %v2848
  %2850 = vdwg.mxu0
  %2851 = vmatpush.bf16.msra.mxu0 %v2721
  %2852 = vmatpush.bf16.msra.mxu0 %v2720
  %2853 = vmatpush.bf16.msra.mxu0 %v2719
  %2854 = vmatpush.bf16.msra.mxu0 %v2718
  %2855 = vmatpush.bf16.msra.mxu0 %v2717
  %2856 = vmatpush.bf16.msra.mxu0 %v2716
  %2857 = vmatpush.bf16.msra.mxu0 %v2715
  %2858 = vmatpush.bf16.msra.mxu0 %v2714
  %2859 = vmatmul.bf16.gmra.mxu0 %v2491
  %v2860 = vpop.f32.mrf.mxu0
  %v2861 = vadd.f32 %v2812, %v2860
  %v2862 = vpop.f32.mrf.mxu0
  %v2863 = vadd.f32 %v2814, %v2862
  %2864 = vmatmul.bf16.gmra.mxu0 %v2496
  %v2865 = vpop.f32.mrf.mxu0
  %v2866 = vadd.f32 %v2817, %v2865
  %v2867 = vpop.f32.mrf.mxu0
  %v2868 = vadd.f32 %v2819, %v2867
  %2869 = vmatmul.bf16.gmra.mxu0 %v2501
  %v2870 = vpop.f32.mrf.mxu0
  %v2871 = vadd.f32 %v2822, %v2870
  %v2872 = vpop.f32.mrf.mxu0
  %v2873 = vadd.f32 %v2824, %v2872
  %2874 = vmatmul.bf16.gmra.mxu0 %v2506
  %v2875 = vpop.f32.mrf.mxu0
  %v2876 = vadd.f32 %v2827, %v2875
  %v2877 = vpop.f32.mrf.mxu0
  %v2878 = vadd.f32 %v2829, %v2877
  %2879 = vmatmul.bf16.gmra.mxu0 %v2511
  %v2880 = vpop.f32.mrf.mxu0
  %v2881 = vadd.f32 %v2832, %v2880
  %v2882 = vpop.f32.mrf.mxu0
  %v2883 = vadd.f32 %v2834, %v2882
  %2884 = vmatmul.bf16.gmra.mxu0 %v2516
  %v2885 = vpop.f32.mrf.mxu0
  %v2886 = vadd.f32 %v2837, %v2885
  %v2887 = vpop.f32.mrf.mxu0
  %v2888 = vadd.f32 %v2839, %v2887
  %2889 = vmatmul.bf16.gmra.mxu0 %v2521
  %v2890 = vpop.f32.mrf.mxu0
  %v2891 = vadd.f32 %v2842, %v2890
  %v2892 = vpop.f32.mrf.mxu0
  %v2893 = vadd.f32 %v2844, %v2892
  %2894 = vmatmul.bf16.gmra.mxu0 %v2526
  %v2895 = vpop.f32.mrf.mxu0
  %v2896 = vadd.f32 %v2847, %v2895
  %v2897 = vpop.f32.mrf.mxu0
  %v2898 = vadd.f32 %v2849, %v2897
  %2899 = vdwg.mxu0
  %2900 = vmatpush.bf16.msra.mxu0 %v2729
  %2901 = vmatpush.bf16.msra.mxu0 %v2728
  %2902 = vmatpush.bf16.msra.mxu0 %v2727
  %2903 = vmatpush.bf16.msra.mxu0 %v2726
  %2904 = vmatpush.bf16.msra.mxu0 %v2725
  %2905 = vmatpush.bf16.msra.mxu0 %v2724
  %2906 = vmatpush.bf16.msra.mxu0 %v2723
  %2907 = vmatpush.bf16.msra.mxu0 %v2722
  %2908 = vmatmul.bf16.gmra.mxu0 %v2492
  %v2909 = vpop.f32.mrf.mxu0
  %v2910 = vadd.f32 %v2861, %v2909
  %v2911 = vpop.f32.mrf.mxu0
  %v2912 = vadd.f32 %v2863, %v2911
  %2913 = vmatmul.bf16.gmra.mxu0 %v2497
  %v2914 = vpop.f32.mrf.mxu0
  %v2915 = vadd.f32 %v2866, %v2914
  %v2916 = vpop.f32.mrf.mxu0
  %v2917 = vadd.f32 %v2868, %v2916
  %2918 = vmatmul.bf16.gmra.mxu0 %v2502
  %v2919 = vpop.f32.mrf.mxu0
  %v2920 = vadd.f32 %v2871, %v2919
  %v2921 = vpop.f32.mrf.mxu0
  %v2922 = vadd.f32 %v2873, %v2921
  %2923 = vmatmul.bf16.gmra.mxu0 %v2507
  %v2924 = vpop.f32.mrf.mxu0
  %v2925 = vadd.f32 %v2876, %v2924
  %v2926 = vpop.f32.mrf.mxu0
  %v2927 = vadd.f32 %v2878, %v2926
  %2928 = vmatmul.bf16.gmra.mxu0 %v2512
  %v2929 = vpop.f32.mrf.mxu0
  %v2930 = vadd.f32 %v2881, %v2929
  %v2931 = vpop.f32.mrf.mxu0
  %v2932 = vadd.f32 %v2883, %v2931
  %2933 = vmatmul.bf16.gmra.mxu0 %v2517
  %v2934 = vpop.f32.mrf.mxu0
  %v2935 = vadd.f32 %v2886, %v2934
  %v2936 = vpop.f32.mrf.mxu0
  %v2937 = vadd.f32 %v2888, %v2936
  %2938 = vmatmul.bf16.gmra.mxu0 %v2522
  %v2939 = vpop.f32.mrf.mxu0
  %v2940 = vadd.f32 %v2891, %v2939
  %v2941 = vpop.f32.mrf.mxu0
  %v2942 = vadd.f32 %v2893, %v2941
  %2943 = vmatmul.bf16.gmra.mxu0 %v2527
  %v2944 = vpop.f32.mrf.mxu0
  %v2945 = vadd.f32 %v2896, %v2944
  %v2946 = vpop.f32.mrf.mxu0
  %v2947 = vadd.f32 %v2898, %v2946
  %2948 = vdwg.mxu0
  %2949 = vmatpush.bf16.msra.mxu0 %v2737
  %2950 = vmatpush.bf16.msra.mxu0 %v2736
  %2951 = vmatpush.bf16.msra.mxu0 %v2735
  %2952 = vmatpush.bf16.msra.mxu0 %v2734
  %2953 = vmatpush.bf16.msra.mxu0 %v2733
  %2954 = vmatpush.bf16.msra.mxu0 %v2732
  %2955 = vmatpush.bf16.msra.mxu0 %v2731
  %2956 = vmatpush.bf16.msra.mxu0 %v2730
  %2957 = vmatmul.bf16.gmra.mxu0 %v2493
  %v2958 = vpop.f32.mrf.mxu0
  %v2959 = vadd.f32 %v2910, %v2958
  %v2960 = vpop.f32.mrf.mxu0
  %v2961 = vadd.f32 %v2912, %v2960
  %2962 = vmatmul.bf16.gmra.mxu0 %v2498
  %v2963 = vpop.f32.mrf.mxu0
  %v2964 = vadd.f32 %v2915, %v2963
  %v2965 = vpop.f32.mrf.mxu0
  %v2966 = vadd.f32 %v2917, %v2965
  %2967 = vmatmul.bf16.gmra.mxu0 %v2503
  %v2968 = vpop.f32.mrf.mxu0
  %v2969 = vadd.f32 %v2920, %v2968
  %v2970 = vpop.f32.mrf.mxu0
  %v2971 = vadd.f32 %v2922, %v2970
  %2972 = vmatmul.bf16.gmra.mxu0 %v2508
  %v2973 = vpop.f32.mrf.mxu0
  %v2974 = vadd.f32 %v2925, %v2973
  %v2975 = vpop.f32.mrf.mxu0
  %v2976 = vadd.f32 %v2927, %v2975
  %2977 = vmatmul.bf16.gmra.mxu0 %v2513
  %v2978 = vpop.f32.mrf.mxu0
  %v2979 = vadd.f32 %v2930, %v2978
  %v2980 = vpop.f32.mrf.mxu0
  %v2981 = vadd.f32 %v2932, %v2980
  %2982 = vmatmul.bf16.gmra.mxu0 %v2518
  %v2983 = vpop.f32.mrf.mxu0
  %v2984 = vadd.f32 %v2935, %v2983
  %v2985 = vpop.f32.mrf.mxu0
  %v2986 = vadd.f32 %v2937, %v2985
  %2987 = vmatmul.bf16.gmra.mxu0 %v2523
  %v2988 = vpop.f32.mrf.mxu0
  %v2989 = vadd.f32 %v2940, %v2988
  %v2990 = vpop.f32.mrf.mxu0
  %v2991 = vadd.f32 %v2942, %v2990
  %2992 = vmatmul.bf16.gmra.mxu0 %v2528
  %v2993 = vpop.f32.mrf.mxu0
  %v2994 = vadd.f32 %v2945, %v2993
  %v2995 = vpop.f32.mrf.mxu0
  %v2996 = vadd.f32 %v2947, %v2995
  %2997 = vdwg.mxu0
  %2998 = vmatpush.bf16.msra.mxu0 0
  %2999 = vmatpush.bf16.msra.mxu0 0
  %3000 = vmatpush.bf16.msra.mxu0 0
  %3001 = vmatpush.bf16.msra.mxu0 0
  %3002 = vmatpush.bf16.msra.mxu0 %v2741
  %3003 = vmatpush.bf16.msra.mxu0 %v2740
  %3004 = vmatpush.bf16.msra.mxu0 %v2739
  %3005 = vmatpush.bf16.msra.mxu0 %v2738
  %3006 = vmatmul.bf16.gmra.mxu0 %v2779
  %v3007 = vpop.f32.mrf.mxu0
  %v3008 = vadd.f32 %v2959, %v3007
  %v3009 = vpop.f32.mrf.mxu0
  %v3010 = vadd.f32 %v2961, %v3009
  %3011 = vmatmul.bf16.gmra.mxu0 %v2782
  %v3012 = vpop.f32.mrf.mxu0
  %v3013 = vadd.f32 %v2964, %v3012
  %v3014 = vpop.f32.mrf.mxu0
  %v3015 = vadd.f32 %v2966, %v3014
  %3016 = vmatmul.bf16.gmra.mxu0 %v2785
  %v3017 = vpop.f32.mrf.mxu0
  %v3018 = vadd.f32 %v2969, %v3017
  %v3019 = vpop.f32.mrf.mxu0
  %v3020 = vadd.f32 %v2971, %v3019
  %3021 = vmatmul.bf16.gmra.mxu0 %v2788
  %v3022 = vpop.f32.mrf.mxu0
  %v3023 = vadd.f32 %v2974, %v3022
  %v3024 = vpop.f32.mrf.mxu0
  %v3025 = vadd.f32 %v2976, %v3024
  %3026 = vmatmul.bf16.gmra.mxu0 %v2791
  %v3027 = vpop.f32.mrf.mxu0
  %v3028 = vadd.f32 %v2979, %v3027
  %v3029 = vpop.f32.mrf.mxu0
  %v3030 = vadd.f32 %v2981, %v3029
  %3031 = vmatmul.bf16.gmra.mxu0 %v2794
  %v3032 = vpop.f32.mrf.mxu0
  %v3033 = vadd.f32 %v2984, %v3032
  %v3034 = vpop.f32.mrf.mxu0
  %v3035 = vadd.f32 %v2986, %v3034
  %3036 = vmatmul.bf16.gmra.mxu0 %v2797
  %v3037 = vpop.f32.mrf.mxu0
  %v3038 = vadd.f32 %v2989, %v3037
  %v3039 = vpop.f32.mrf.mxu0
  %v3040 = vadd.f32 %v2991, %v3039
  %3041 = vmatmul.bf16.gmra.mxu0 %v2800
  %v3042 = vpop.f32.mrf.mxu0
  %v3043 = vadd.f32 %v2994, %v3042
  %v3044 = vpop.f32.mrf.mxu0
  %v3045 = vadd.f32 %v2996, %v3044
  %3046 = vdwg.mxu0
  %vm3047 = vcmp.ge.f32.partialorder %v2083, 0.0
  %vm3048 = vcmp.ge.f32.partialorder %v2085, 0.0
  %vm3049 = vcmp.ge.f32.partialorder %v2088, 0.0
  %vm3050 = vcmp.ge.f32.partialorder %v2090, 0.0
  %vm3051 = vcmp.ge.f32.partialorder %v2093, 0.0
  %vm3052 = vcmp.ge.f32.partialorder %v2095, 0.0
  %vm3053 = vcmp.ge.f32.partialorder %v2098, 0.0
  %vm3054 = vcmp.ge.f32.partialorder %v2100, 0.0
  %vm3055 = vcmp.ge.f32.partialorder %v2103, 0.0
  %vm3056 = vcmp.ge.f32.partialorder %v2105, 0.0
  %vm3057 = vcmp.ge.f32.partialorder %v2108, 0.0
  %vm3058 = vcmp.ge.f32.partialorder %v2110, 0.0
  %vm3059 = vcmp.ge.f32.partialorder %v2113, 0.0
  %vm3060 = vcmp.ge.f32.partialorder %v2115, 0.0
  %vm3061 = vcmp.ge.f32.partialorder %v2118, 0.0
  %vm3062 = vcmp.ge.f32.partialorder %v2120, 0.0
  %vm3063 = vcmp.ge.f32.partialorder %v2123, 0.0
  %vm3064 = vcmp.ge.f32.partialorder %v2125, 0.0
  %vm3065 = vcmp.ge.f32.partialorder %v2128, 0.0
  %vm3066 = vcmp.ge.f32.partialorder %v2130, 0.0
  %vm3067 = vcmp.ge.f32.partialorder %v2133, 0.0
  %vm3068 = vcmp.ge.f32.partialorder %v2135, 0.0
  %vm3069 = vcmp.ge.f32.partialorder %v2138, 0.0
  %vm3070 = vcmp.ge.f32.partialorder %v2140, 0.0
  %vm3071 = vcmp.ge.f32.partialorder %v2143, 0.0
  %vm3072 = vcmp.ge.f32.partialorder %v2145, 0.0
  %vm3073 = vcmp.ge.f32.partialorder %v2148, 0.0
  %vm3074 = vcmp.ge.f32.partialorder %v2150, 0.0
  %vm3075 = vcmp.ge.f32.partialorder %v2153, 0.0
  %vm3076 = vcmp.ge.f32.partialorder %v2155, 0.0
  %vm3077 = vcmp.ge.f32.partialorder %v2158, 0.0
  %vm3078 = vcmp.ge.f32.partialorder %v2160, 0.0
  %vm3079 = vcmp.ge.f32.partialorder %v2163, 0.0
  %vm3080 = vcmp.ge.f32.partialorder %v2165, 0.0
  %vm3081 = vcmp.ge.f32.partialorder %v2168, 0.0
  %vm3082 = vcmp.ge.f32.partialorder %v2170, 0.0
  %vm3083 = vcmp.ge.f32.partialorder %v2173, 0.0
  %vm3084 = vcmp.ge.f32.partialorder %v2175, 0.0
  %vm3085 = vcmp.ge.f32.partialorder %v2178, 0.0
  %vm3086 = vcmp.ge.f32.partialorder %v2180, 0.0
  %vm3087 = vcmp.ge.f32.partialorder %v2183, 0.0
  %vm3088 = vcmp.ge.f32.partialorder %v2185, 0.0
  %vm3089 = vcmp.ge.f32.partialorder %v2188, 0.0
  %vm3090 = vcmp.ge.f32.partialorder %v2190, 0.0
  %vm3091 = vcmp.ge.f32.partialorder %v2193, 0.0
  %vm3092 = vcmp.ge.f32.partialorder %v2195, 0.0
  %vm3093 = vcmp.ge.f32.partialorder %v2198, 0.0
  %vm3094 = vcmp.ge.f32.partialorder %v2200, 0.0
  %vm3095 = vcmp.ge.f32.partialorder %v2203, 0.0
  %vm3096 = vcmp.ge.f32.partialorder %v2205, 0.0
  %vm3097 = vcmp.ge.f32.partialorder %v2208, 0.0
  %vm3098 = vcmp.ge.f32.partialorder %v2210, 0.0
  %vm3099 = vcmp.ge.f32.partialorder %v2213, 0.0
  %vm3100 = vcmp.ge.f32.partialorder %v2215, 0.0
  %vm3101 = vcmp.ge.f32.partialorder %v2218, 0.0
  %vm3102 = vcmp.ge.f32.partialorder %v2220, 0.0
  %vm3103 = vcmp.ge.f32.partialorder %v2223, 0.0
  %vm3104 = vcmp.ge.f32.partialorder %v2225, 0.0
  %vm3105 = vcmp.ge.f32.partialorder %v2228, 0.0
  %vm3106 = vcmp.ge.f32.partialorder %v2230, 0.0
  %vm3107 = vcmp.ge.f32.partialorder %v2233, 0.0
  %vm3108 = vcmp.ge.f32.partialorder %v2235, 0.0
  %vm3109 = vcmp.ge.f32.partialorder %v2238, 0.0
  %vm3110 = vcmp.ge.f32.partialorder %v2240, 0.0
  %v3111 = vmul.f32 %v2083, 0.2
  %v3112 = vmul.f32 %v2085, 0.2
  %v3113 = vmul.f32 %v2088, 0.2
  %v3114 = vmul.f32 %v2090, 0.2
  %v3115 = vmul.f32 %v2093, 0.2
  %v3116 = vmul.f32 %v2095, 0.2
  %v3117 = vmul.f32 %v2098, 0.2
  %v3118 = vmul.f32 %v2100, 0.2
  %v3119 = vmul.f32 %v2103, 0.2
  %v3120 = vmul.f32 %v2105, 0.2
  %v3121 = vmul.f32 %v2108, 0.2
  %v3122 = vmul.f32 %v2110, 0.2
  %v3123 = vmul.f32 %v2113, 0.2
  %v3124 = vmul.f32 %v2115, 0.2
  %v3125 = vmul.f32 %v2118, 0.2
  %v3126 = vmul.f32 %v2120, 0.2
  %v3127 = vmul.f32 %v2123, 0.2
  %v3128 = vmul.f32 %v2125, 0.2
  %v3129 = vmul.f32 %v2128, 0.2
  %v3130 = vmul.f32 %v2130, 0.2
  %v3131 = vmul.f32 %v2133, 0.2
  %v3132 = vmul.f32 %v2135, 0.2
  %v3133 = vmul.f32 %v2138, 0.2
  %v3134 = vmul.f32 %v2140, 0.2
  %v3135 = vmul.f32 %v2143, 0.2
  %v3136 = vmul.f32 %v2145, 0.2
  %v3137 = vmul.f32 %v2148, 0.2
  %v3138 = vmul.f32 %v2150, 0.2
  %v3139 = vmul.f32 %v2153, 0.2
  %v3140 = vmul.f32 %v2155, 0.2
  %v3141 = vmul.f32 %v2158, 0.2
  %v3142 = vmul.f32 %v2160, 0.2
  %v3143 = vmul.f32 %v2163, 0.2
  %v3144 = vmul.f32 %v2165, 0.2
  %v3145 = vmul.f32 %v2168, 0.2
  %v3146 = vmul.f32 %v2170, 0.2
  %v3147 = vmul.f32 %v2173, 0.2
  %v3148 = vmul.f32 %v2175, 0.2
  %v3149 = vmul.f32 %v2178, 0.2
  %v3150 = vmul.f32 %v2180, 0.2
  %v3151 = vmul.f32 %v2183, 0.2
  %v3152 = vmul.f32 %v2185, 0.2
  %v3153 = vmul.f32 %v2188, 0.2
  %v3154 = vmul.f32 %v2190, 0.2
  %v3155 = vmul.f32 %v2193, 0.2
  %v3156 = vmul.f32 %v2195, 0.2
  %v3157 = vmul.f32 %v2198, 0.2
  %v3158 = vmul.f32 %v2200, 0.2
  %v3159 = vmul.f32 %v2203, 0.2
  %v3160 = vmul.f32 %v2205, 0.2
  %v3161 = vmul.f32 %v2208, 0.2
  %v3162 = vmul.f32 %v2210, 0.2
  %v3163 = vmul.f32 %v2213, 0.2
  %v3164 = vmul.f32 %v2215, 0.2
  %v3165 = vmul.f32 %v2218, 0.2
  %v3166 = vmul.f32 %v2220, 0.2
  %v3167 = vmul.f32 %v2223, 0.2
  %v3168 = vmul.f32 %v2225, 0.2
  %v3169 = vmul.f32 %v2228, 0.2
  %v3170 = vmul.f32 %v2230, 0.2
  %v3171 = vmul.f32 %v2233, 0.2
  %v3172 = vmul.f32 %v2235, 0.2
  %v3173 = vmul.f32 %v2238, 0.2
  %v3174 = vmul.f32 %v2240, 0.2
  %v3175 = vsel %vm3047, %v2083, %v3111
  %v3176 = vsel %vm3048, %v2085, %v3112
  %v3177 = vsel %vm3049, %v2088, %v3113
  %v3178 = vsel %vm3050, %v2090, %v3114
  %v3179 = vsel %vm3051, %v2093, %v3115
  %v3180 = vsel %vm3052, %v2095, %v3116
  %v3181 = vsel %vm3053, %v2098, %v3117
  %v3182 = vsel %vm3054, %v2100, %v3118
  %v3183 = vsel %vm3055, %v2103, %v3119
  %v3184 = vsel %vm3056, %v2105, %v3120
  %v3185 = vsel %vm3057, %v2108, %v3121
  %v3186 = vsel %vm3058, %v2110, %v3122
  %v3187 = vsel %vm3059, %v2113, %v3123
  %v3188 = vsel %vm3060, %v2115, %v3124
  %v3189 = vsel %vm3061, %v2118, %v3125
  %v3190 = vsel %vm3062, %v2120, %v3126
  %v3191 = vsel %vm3063, %v2123, %v3127
  %v3192 = vsel %vm3064, %v2125, %v3128
  %v3193 = vsel %vm3065, %v2128, %v3129
  %v3194 = vsel %vm3066, %v2130, %v3130
  %v3195 = vsel %vm3067, %v2133, %v3131
  %v3196 = vsel %vm3068, %v2135, %v3132
  %v3197 = vsel %vm3069, %v2138, %v3133
  %v3198 = vsel %vm3070, %v2140, %v3134
  %v3199 = vsel %vm3071, %v2143, %v3135
  %v3200 = vsel %vm3072, %v2145, %v3136
  %v3201 = vsel %vm3073, %v2148, %v3137
  %v3202 = vsel %vm3074, %v2150, %v3138
  %v3203 = vsel %vm3075, %v2153, %v3139
  %v3204 = vsel %vm3076, %v2155, %v3140
  %v3205 = vsel %vm3077, %v2158, %v3141
  %v3206 = vsel %vm3078, %v2160, %v3142
  %v3207 = vsel %vm3079, %v2163, %v3143
  %v3208 = vsel %vm3080, %v2165, %v3144
  %v3209 = vsel %vm3081, %v2168, %v3145
  %v3210 = vsel %vm3082, %v2170, %v3146
  %v3211 = vsel %vm3083, %v2173, %v3147
  %v3212 = vsel %vm3084, %v2175, %v3148
  %v3213 = vsel %vm3085, %v2178, %v3149
  %v3214 = vsel %vm3086, %v2180, %v3150
  %v3215 = vsel %vm3087, %v2183, %v3151
  %v3216 = vsel %vm3088, %v2185, %v3152
  %v3217 = vsel %vm3089, %v2188, %v3153
  %v3218 = vsel %vm3090, %v2190, %v3154
  %v3219 = vsel %vm3091, %v2193, %v3155
  %v3220 = vsel %vm3092, %v2195, %v3156
  %v3221 = vsel %vm3093, %v2198, %v3157
  %v3222 = vsel %vm3094, %v2200, %v3158
  %v3223 = vsel %vm3095, %v2203, %v3159
  %v3224 = vsel %vm3096, %v2205, %v3160
  %v3225 = vsel %vm3097, %v2208, %v3161
  %v3226 = vsel %vm3098, %v2210, %v3162
  %v3227 = vsel %vm3099, %v2213, %v3163
  %v3228 = vsel %vm3100, %v2215, %v3164
  %v3229 = vsel %vm3101, %v2218, %v3165
  %v3230 = vsel %vm3102, %v2220, %v3166
  %v3231 = vsel %vm3103, %v2223, %v3167
  %v3232 = vsel %vm3104, %v2225, %v3168
  %v3233 = vsel %vm3105, %v2228, %v3169
  %v3234 = vsel %vm3106, %v2230, %v3170
  %v3235 = vsel %vm3107, %v2233, %v3171
  %v3236 = vsel %vm3108, %v2235, %v3172
  %v3237 = vsel %vm3109, %v2238, %v3173
  %v3238 = vsel %vm3110, %v2240, %v3174
  %vm3239 = vcmask 261120
  %3240 = vst.msk [vmem:[%s4] sm:$0xff] %vm3239, %v3175
  %3241 = vst.msk [vmem:[%s4 + $0x8] sm:$0xff] %vm3239, %v3176
  %3242 = vst.msk [vmem:[%s4 + $0x10] sm:$0xff] %vm3239, %v3177
  %3243 = vst.msk [vmem:[%s4 + $0x18] sm:$0xff] %vm3239, %v3178
  %3244 = vst.msk [vmem:[%s4 + $0x20] sm:$0xff] %vm3239, %v3179
  %3245 = vst.msk [vmem:[%s4 + $0x28] sm:$0xff] %vm3239, %v3180
  %3246 = vst.msk [vmem:[%s4 + $0x30] sm:$0xff] %vm3239, %v3181
  %3247 = vst.msk [vmem:[%s4 + $0x38] sm:$0xff] %vm3239, %v3182
  %3248 = vst.msk [vmem:[%s4 + $0x40] sm:$0xff] %vm3239, %v3183
  %3249 = vst.msk [vmem:[%s4 + $0x48] sm:$0xff] %vm3239, %v3184
  %3250 = vst.msk [vmem:[%s4 + $0x50] sm:$0xff] %vm3239, %v3185
  %3251 = vst.msk [vmem:[%s4 + $0x58] sm:$0xff] %vm3239, %v3186
  %3252 = vst.msk [vmem:[%s4 + $0x60] sm:$0xff] %vm3239, %v3187
  %3253 = vst.msk [vmem:[%s4 + $0x68] sm:$0xff] %vm3239, %v3188
  %3254 = vst.msk [vmem:[%s4 + $0x70] sm:$0xff] %vm3239, %v3189
  %3255 = vst.msk [vmem:[%s4 + $0x78] sm:$0xff] %vm3239, %v3190
  %3256 = vst.msk [vmem:[%s4 + $0x80] sm:$0xff] %vm3239, %v3191
  %3257 = vst.msk [vmem:[%s4 + $0x88] sm:$0xff] %vm3239, %v3192
  %3258 = vst.msk [vmem:[%s4 + $0x90] sm:$0xff] %vm3239, %v3193
  %3259 = vst.msk [vmem:[%s4 + $0x98] sm:$0xff] %vm3239, %v3194
  %3260 = vst.msk [vmem:[%s4 + $0xa0] sm:$0xff] %vm3239, %v3195
  %3261 = vst.msk [vmem:[%s4 + $0xa8] sm:$0xff] %vm3239, %v3196
  %3262 = vst.msk [vmem:[%s4 + $0xb0] sm:$0xff] %vm3239, %v3197
  %3263 = vst.msk [vmem:[%s4 + $0xb8] sm:$0xff] %vm3239, %v3198
  %3264 = vst.msk [vmem:[%s4 + $0xc0] sm:$0xff] %vm3239, %v3199
  %3265 = vst.msk [vmem:[%s4 + $0xc8] sm:$0xff] %vm3239, %v3200
  %3266 = vst.msk [vmem:[%s4 + $0xd0] sm:$0xff] %vm3239, %v3201
  %3267 = vst.msk [vmem:[%s4 + $0xd8] sm:$0xff] %vm3239, %v3202
  %3268 = vst.msk [vmem:[%s4 + $0xe0] sm:$0xff] %vm3239, %v3203
  %3269 = vst.msk [vmem:[%s4 + $0xe8] sm:$0xff] %vm3239, %v3204
  %3270 = vst.msk [vmem:[%s4 + $0xf0] sm:$0xff] %vm3239, %v3205
  %3271 = vst.msk [vmem:[%s4 + $0xf8] sm:$0xff] %vm3239, %v3206
  %3272 = vst.msk [vmem:[%s4 + $0x100] sm:$0xff] %vm3239, %v3207
  %3273 = vst.msk [vmem:[%s4 + $0x108] sm:$0xff] %vm3239, %v3208
  %3274 = vst.msk [vmem:[%s4 + $0x110] sm:$0xff] %vm3239, %v3209
  %3275 = vst.msk [vmem:[%s4 + $0x118] sm:$0xff] %vm3239, %v3210
  %3276 = vst.msk [vmem:[%s4 + $0x120] sm:$0xff] %vm3239, %v3211
  %3277 = vst.msk [vmem:[%s4 + $0x128] sm:$0xff] %vm3239, %v3212
  %3278 = vst.msk [vmem:[%s4 + $0x130] sm:$0xff] %vm3239, %v3213
  %3279 = vst.msk [vmem:[%s4 + $0x138] sm:$0xff] %vm3239, %v3214
  %3280 = vst.msk [vmem:[%s4 + $0x140] sm:$0xff] %vm3239, %v3215
  %3281 = vst.msk [vmem:[%s4 + $0x148] sm:$0xff] %vm3239, %v3216
  %3282 = vst.msk [vmem:[%s4 + $0x150] sm:$0xff] %vm3239, %v3217
  %3283 = vst.msk [vmem:[%s4 + $0x158] sm:$0xff] %vm3239, %v3218
  %3284 = vst.msk [vmem:[%s4 + $0x160] sm:$0xff] %vm3239, %v3219
  %3285 = vst.msk [vmem:[%s4 + $0x168] sm:$0xff] %vm3239, %v3220
  %3286 = vst.msk [vmem:[%s4 + $0x170] sm:$0xff] %vm3239, %v3221
  %3287 = vst.msk [vmem:[%s4 + $0x178] sm:$0xff] %vm3239, %v3222
  %3288 = vst.msk [vmem:[%s4 + $0x180] sm:$0xff] %vm3239, %v3223
  %3289 = vst.msk [vmem:[%s4 + $0x188] sm:$0xff] %vm3239, %v3224
  %3290 = vst.msk [vmem:[%s4 + $0x190] sm:$0xff] %vm3239, %v3225
  %3291 = vst.msk [vmem:[%s4 + $0x198] sm:$0xff] %vm3239, %v3226
  %3292 = vst.msk [vmem:[%s4 + $0x1a0] sm:$0xff] %vm3239, %v3227
  %3293 = vst.msk [vmem:[%s4 + $0x1a8] sm:$0xff] %vm3239, %v3228
  %3294 = vst.msk [vmem:[%s4 + $0x1b0] sm:$0xff] %vm3239, %v3229
  %3295 = vst.msk [vmem:[%s4 + $0x1b8] sm:$0xff] %vm3239, %v3230
  %3296 = vst.msk [vmem:[%s4 + $0x1c0] sm:$0xff] %vm3239, %v3231
  %3297 = vst.msk [vmem:[%s4 + $0x1c8] sm:$0xff] %vm3239, %v3232
  %3298 = vst.msk [vmem:[%s4 + $0x1d0] sm:$0xff] %vm3239, %v3233
  %3299 = vst.msk [vmem:[%s4 + $0x1d8] sm:$0xff] %vm3239, %v3234
  %3300 = vst.msk [vmem:[%s4 + $0x1e0] sm:$0xff] %vm3239, %v3235
  %3301 = vst.msk [vmem:[%s4 + $0x1e8] sm:$0xff] %vm3239, %v3236
  %3302 = vst.msk [vmem:[%s4 + $0x1f0] sm:$0xff] %vm3239, %v3237
  %3303 = vst.msk [vmem:[%s4 + $0x1f8] sm:$0xff] %vm3239, %v3238
  %vm3304 = vcmp.ge.f32.partialorder %v3008, 0.0
  %vm3305 = vcmp.ge.f32.partialorder %v3010, 0.0
  %vm3306 = vcmp.ge.f32.partialorder %v3013, 0.0
  %vm3307 = vcmp.ge.f32.partialorder %v3015, 0.0
  %vm3308 = vcmp.ge.f32.partialorder %v3018, 0.0
  %vm3309 = vcmp.ge.f32.partialorder %v3020, 0.0
  %vm3310 = vcmp.ge.f32.partialorder %v3023, 0.0
  %vm3311 = vcmp.ge.f32.partialorder %v3025, 0.0
  %vm3312 = vcmp.ge.f32.partialorder %v3028, 0.0
  %vm3313 = vcmp.ge.f32.partialorder %v3030, 0.0
  %vm3314 = vcmp.ge.f32.partialorder %v3033, 0.0
  %vm3315 = vcmp.ge.f32.partialorder %v3035, 0.0
  %vm3316 = vcmp.ge.f32.partialorder %v3038, 0.0
  %vm3317 = vcmp.ge.f32.partialorder %v3040, 0.0
  %vm3318 = vcmp.ge.f32.partialorder %v3043, 0.0
  %vm3319 = vcmp.ge.f32.partialorder %v3045, 0.0
  %v3320 = vmul.f32 %v3008, 0.2
  %v3321 = vmul.f32 %v3010, 0.2
  %v3322 = vmul.f32 %v3013, 0.2
  %v3323 = vmul.f32 %v3015, 0.2
  %v3324 = vmul.f32 %v3018, 0.2
  %v3325 = vmul.f32 %v3020, 0.2
  %v3326 = vmul.f32 %v3023, 0.2
  %v3327 = vmul.f32 %v3025, 0.2
  %v3328 = vmul.f32 %v3028, 0.2
  %v3329 = vmul.f32 %v3030, 0.2
  %v3330 = vmul.f32 %v3033, 0.2
  %v3331 = vmul.f32 %v3035, 0.2
  %v3332 = vmul.f32 %v3038, 0.2
  %v3333 = vmul.f32 %v3040, 0.2
  %v3334 = vmul.f32 %v3043, 0.2
  %v3335 = vmul.f32 %v3045, 0.2
  %v3336 = vsel %vm3304, %v3008, %v3320
  %v3337 = vsel %vm3305, %v3010, %v3321
  %v3338 = vsel %vm3306, %v3013, %v3322
  %v3339 = vsel %vm3307, %v3015, %v3323
  %v3340 = vsel %vm3308, %v3018, %v3324
  %v3341 = vsel %vm3309, %v3020, %v3325
  %v3342 = vsel %vm3310, %v3023, %v3326
  %v3343 = vsel %vm3311, %v3025, %v3327
  %v3344 = vsel %vm3312, %v3028, %v3328
  %v3345 = vsel %vm3313, %v3030, %v3329
  %v3346 = vsel %vm3314, %v3033, %v3330
  %v3347 = vsel %vm3315, %v3035, %v3331
  %v3348 = vsel %vm3316, %v3038, %v3332
  %v3349 = vsel %vm3317, %v3040, %v3333
  %v3350 = vsel %vm3318, %v3043, %v3334
  %v3351 = vsel %vm3319, %v3045, %v3335
  %3352 = vst.msk [vmem:[%s5] sm:$0xff] %vm3239, %v3336
  %3353 = vst.msk [vmem:[%s5 + $0x8] sm:$0xff] %vm3239, %v3337
  %3354 = vst.msk [vmem:[%s5 + $0x10] sm:$0xff] %vm3239, %v3338
  %3355 = vst.msk [vmem:[%s5 + $0x18] sm:$0xff] %vm3239, %v3339
  %3356 = vst.msk [vmem:[%s5 + $0x20] sm:$0xff] %vm3239, %v3340
  %3357 = vst.msk [vmem:[%s5 + $0x28] sm:$0xff] %vm3239, %v3341
  %3358 = vst.msk [vmem:[%s5 + $0x30] sm:$0xff] %vm3239, %v3342
  %3359 = vst.msk [vmem:[%s5 + $0x38] sm:$0xff] %vm3239, %v3343
  %3360 = vst.msk [vmem:[%s5 + $0x40] sm:$0xff] %vm3239, %v3344
  %3361 = vst.msk [vmem:[%s5 + $0x48] sm:$0xff] %vm3239, %v3345
  %3362 = vst.msk [vmem:[%s5 + $0x50] sm:$0xff] %vm3239, %v3346
  %3363 = vst.msk [vmem:[%s5 + $0x58] sm:$0xff] %vm3239, %v3347
  %3364 = vst.msk [vmem:[%s5 + $0x60] sm:$0xff] %vm3239, %v3348
  %3365 = vst.msk [vmem:[%s5 + $0x68] sm:$0xff] %vm3239, %v3349
  %3366 = vst.msk [vmem:[%s5 + $0x70] sm:$0xff] %vm3239, %v3350
  %3367 = vst.msk [vmem:[%s5 + $0x78] sm:$0xff] %vm3239, %v3351
  // Predicated region
  $region18: #{encoder_forward.6} parent=0 // pred_check
    _
  $region19: #{encoder_forward.6} parent=0 // pred_check_branch
    %3369 = sbr.rel (0) target = $region21
  $region20: #{encoder_forward.6} parent=0 // pred_region
    _
  $region21: #{encoder_forward.6} parent=0 // pred_fallthru
    _
  // Predicated region
  $region22: #{encoder_forward.6} parent=0 // pred_check
    _
  $region23: #{encoder_forward.6} parent=0 // pred_check_branch
    %3371 = sbr.rel (0) target = $region25
  $region24: #{encoder_forward.6} parent=0 // pred_region
    _
  $region25: #{encoder_forward.6} parent=0 // pred_fallthru
    _
  // Predicated region
  $region26: #{encoder_forward.6} parent=0 // pred_check
    _
  $region27: #{encoder_forward.6} parent=0 // pred_check_branch
    %3373 = sbr.rel (0) target = $region29
  $region28: #{encoder_forward.6} parent=0 // pred_region
    _
  $region29: #{encoder_forward.6} parent=0 // pred_fallthru
    _
  // Predicated region
  $region30: #{encoder_forward.6} parent=0 // pred_check
    _
  $region31: #{encoder_forward.6} parent=0 // pred_check_branch
    %3375 = sbr.rel (0) target = $region33
  $region32: #{encoder_forward.6} parent=0 // pred_region
    _
  $region33: #{encoder_forward.6} parent=0 // pred_fallthru
    _

// kernel: encoder_forward.7
$region0: #{encoder_forward.7}
  #allocation0 [shape = 'u32[]', space=smem, size = 0x4, offset = 0x4, fixed_abs, tag = 'smem constant byte address 0x4 - core index']
  #allocation1 [shape = 'u32[72,128]{1,0:T(1,128)}', space=vmem, size = 0x9000, scoped, tag = 'internal scratch']
  %s0 = inlined_call_operand.vmem [shape: bf16[512,64], index: 0, kind: input, shape index: {}]
  %s1 = inlined_call_operand.vmem [shape: bf16[64,64], index: 1, kind: input, shape index: {}]
  %s2 = inlined_call_operand.vmem [shape: bf16[128,64], index: 2, kind: input, shape index: {}]
  %s3 = inlined_call_operand.vmem [shape: bf16[64,64], index: 3, kind: input, shape index: {}]
  %s4 = inlined_call_operand.vmem [shape: f32[512,64], index: 4, kind: output, shape index: {0}]
  %s5 = inlined_call_operand.vmem [shape: f32[128,64], index: 5, kind: output, shape index: {1}]
  %6 = xla_tuple %s4, %s5
  %s7 = sld [smem:[#allocation0]]
  $region34: #{encoder_forward.7} parent=0
    _
  %s9 = ssub.s32 1, %s7
  %s10 = scalar_select 0, %s9, %s7
  // Predicated region
  $region2: #{encoder_forward.7} parent=0 // pred_check
    _
  $region3: #{encoder_forward.7} parent=0 // pred_check_branch
    %12 = sbr.rel (0) target = $region5
  $region4: #{encoder_forward.7} parent=0 // pred_region
    _
  $region5: #{encoder_forward.7} parent=0 // pred_fallthru
    _
  // Predicated region
  $region6: #{encoder_forward.7} parent=0 // pred_check
    _
  $region7: #{encoder_forward.7} parent=0 // pred_check_branch
    %14 = sbr.rel (0) target = $region9
  $region8: #{encoder_forward.7} parent=0 // pred_region
    _
  $region9: #{encoder_forward.7} parent=0 // pred_fallthru
    _
  // Predicated region
  $region10: #{encoder_forward.7} parent=0 // pred_check
    _
  $region11: #{encoder_forward.7} parent=0 // pred_check_branch
    %16 = sbr.rel (0) target = $region13
  $region12: #{encoder_forward.7} parent=0 // pred_region
    _
  $region13: #{encoder_forward.7} parent=0 // pred_fallthru
    _
  // Predicated region
  $region14: #{encoder_forward.7} parent=0 // pred_check
    _
  $region15: #{encoder_forward.7} parent=0 // pred_check_branch
    %18 = sbr.rel (0) target = $region17
  $region16: #{encoder_forward.7} parent=0 // pred_region
    _
  $region17: #{encoder_forward.7} parent=0 // pred_fallthru
    _
  %v20 = vld [vmem:[%s0] sm:$0xf]
  %v21 = vld [vmem:[%s0 + $0x4] sm:$0xf]
  %v22 = vld [vmem:[%s0 + $0x8] sm:$0xf]
  %v23 = vld [vmem:[%s0 + $0xc] sm:$0xf]
  %v24 = vld [vmem:[%s0 + $0x10] sm:$0xf]
  %v25 = vld [vmem:[%s0 + $0x14] sm:$0xf]
  %v26 = vld [vmem:[%s0 + $0x18] sm:$0xf]
  %v27 = vld [vmem:[%s0 + $0x1c] sm:$0xf]
  %v28 = vld [vmem:[%s0 + $0x20] sm:$0xf]
  %v29 = vld [vmem:[%s0 + $0x24] sm:$0xf]
  %v30 = vld [vmem:[%s0 + $0x28] sm:$0xf]
  %v31 = vld [vmem:[%s0 + $0x2c] sm:$0xf]
  %v32 = vld [vmem:[%s0 + $0x30] sm:$0xf]
  %v33 = vld [vmem:[%s0 + $0x34] sm:$0xf]
  %v34 = vld [vmem:[%s0 + $0x38] sm:$0xf]
  %v35 = vld [vmem:[%s0 + $0x3c] sm:$0xf]
  %v36 = vld [vmem:[%s0 + $0x40] sm:$0xf]
  %v37 = vld [vmem:[%s0 + $0x44] sm:$0xf]
  %v38 = vld [vmem:[%s0 + $0x48] sm:$0xf]
  %v39 = vld [vmem:[%s0 + $0x4c] sm:$0xf]
  %v40 = vld [vmem:[%s0 + $0x50] sm:$0xf]
  %v41 = vld [vmem:[%s0 + $0x54] sm:$0xf]
  %v42 = vld [vmem:[%s0 + $0x58] sm:$0xf]
  %v43 = vld [vmem:[%s0 + $0x5c] sm:$0xf]
  %v44 = vld [vmem:[%s0 + $0x60] sm:$0xf]
  %v45 = vld [vmem:[%s0 + $0x64] sm:$0xf]
  %v46 = vld [vmem:[%s0 + $0x68] sm:$0xf]
  %v47 = vld [vmem:[%s0 + $0x6c] sm:$0xf]
  %v48 = vld [vmem:[%s0 + $0x70] sm:$0xf]
  %v49 = vld [vmem:[%s0 + $0x74] sm:$0xf]
  %v50 = vld [vmem:[%s0 + $0x78] sm:$0xf]
  %v51 = vld [vmem:[%s0 + $0x7c] sm:$0xf]
  %v52 = vld [vmem:[%s0 + $0x80] sm:$0xf]
  %v53 = vld [vmem:[%s0 + $0x84] sm:$0xf]
  %v54 = vld [vmem:[%s0 + $0x88] sm:$0xf]
  %v55 = vld [vmem:[%s0 + $0x8c] sm:$0xf]
  %v56 = vld [vmem:[%s0 + $0x90] sm:$0xf]
  %v57 = vld [vmem:[%s0 + $0x94] sm:$0xf]
  %v58 = vld [vmem:[%s0 + $0x98] sm:$0xf]
  %v59 = vld [vmem:[%s0 + $0x9c] sm:$0xf]
  %v60 = vld [vmem:[%s0 + $0xa0] sm:$0xf]
  %v61 = vld [vmem:[%s0 + $0xa4] sm:$0xf]
  %v62 = vld [vmem:[%s0 + $0xa8] sm:$0xf]
  %v63 = vld [vmem:[%s0 + $0xac] sm:$0xf]
  %v64 = vld [vmem:[%s0 + $0xb0] sm:$0xf]
  %v65 = vld [vmem:[%s0 + $0xb4] sm:$0xf]
  %v66 = vld [vmem:[%s0 + $0xb8] sm:$0xf]
  %v67 = vld [vmem:[%s0 + $0xbc] sm:$0xf]
  %v68 = vld [vmem:[%s0 + $0xc0] sm:$0xf]
  %v69 = vld [vmem:[%s0 + $0xc4] sm:$0xf]
  %v70 = vld [vmem:[%s0 + $0xc8] sm:$0xf]
  %v71 = vld [vmem:[%s0 + $0xcc] sm:$0xf]
  %v72 = vld [vmem:[%s0 + $0xd0] sm:$0xf]
  %v73 = vld [vmem:[%s0 + $0xd4] sm:$0xf]
  %v74 = vld [vmem:[%s0 + $0xd8] sm:$0xf]
  %v75 = vld [vmem:[%s0 + $0xdc] sm:$0xf]
  %v76 = vld [vmem:[%s0 + $0xe0] sm:$0xf]
  %v77 = vld [vmem:[%s0 + $0xe4] sm:$0xf]
  %v78 = vld [vmem:[%s0 + $0xe8] sm:$0xf]
  %v79 = vld [vmem:[%s0 + $0xec] sm:$0xf]
  %v80 = vld [vmem:[%s0 + $0xf0] sm:$0xf]
  %v81 = vld [vmem:[%s0 + $0xf4] sm:$0xf]
  %v82 = vld [vmem:[%s0 + $0xf8] sm:$0xf]
  %v83 = vld [vmem:[%s0 + $0xfc] sm:$0xf]
  %v84 = vld [vmem:[%s1] sm:$0xf]
  %v85 = vld [vmem:[%s1 + $0x4] sm:$0xf]
  %v86 = vld [vmem:[%s1 + $0x8] sm:$0xf]
  %v87 = vld [vmem:[%s1 + $0xc] sm:$0xf]
  %v88 = vld [vmem:[%s1 + $0x10] sm:$0xf]
  %v89 = vld [vmem:[%s1 + $0x14] sm:$0xf]
  %v90 = vld [vmem:[%s1 + $0x18] sm:$0xf]
  %v91 = vld [vmem:[%s1 + $0x1c] sm:$0xf]
  %v156 = vunpack.c.l.b16 %v20
  %v157 = vunpack.c.l.b16 %v21
  %v158 = vunpack.c.l.b16 %v22
  %v159 = vunpack.c.l.b16 %v23
  %v160 = vunpack.c.l.b16 %v24
  %v161 = vunpack.c.l.b16 %v25
  %v162 = vunpack.c.l.b16 %v26
  %v163 = vunpack.c.l.b16 %v27
  %v164 = vunpack.c.l.b16 %v28
  %v165 = vunpack.c.l.b16 %v29
  %v166 = vunpack.c.l.b16 %v30
  %v167 = vunpack.c.l.b16 %v31
  %v168 = vunpack.c.l.b16 %v32
  %v169 = vunpack.c.l.b16 %v33
  %v170 = vunpack.c.l.b16 %v34
  %v171 = vunpack.c.l.b16 %v35
  %v172 = vunpack.c.l.b16 %v36
  %v173 = vunpack.c.l.b16 %v37
  %v174 = vunpack.c.l.b16 %v38
  %v175 = vunpack.c.l.b16 %v39
  %v176 = vunpack.c.l.b16 %v40
  %v177 = vunpack.c.l.b16 %v41
  %v178 = vunpack.c.l.b16 %v42
  %v179 = vunpack.c.l.b16 %v43
  %v180 = vunpack.c.l.b16 %v44
  %v181 = vunpack.c.l.b16 %v45
  %v182 = vunpack.c.l.b16 %v46
  %v183 = vunpack.c.l.b16 %v47
  %v184 = vunpack.c.l.b16 %v48
  %v185 = vunpack.c.l.b16 %v49
  %v186 = vunpack.c.l.b16 %v50
  %v187 = vunpack.c.l.b16 %v51
  %v188 = vunpack.c.l.b16 %v52
  %v189 = vunpack.c.l.b16 %v53
  %v190 = vunpack.c.l.b16 %v54
  %v191 = vunpack.c.l.b16 %v55
  %v192 = vunpack.c.l.b16 %v56
  %v193 = vunpack.c.l.b16 %v57
  %v194 = vunpack.c.l.b16 %v58
  %v195 = vunpack.c.l.b16 %v59
  %v196 = vunpack.c.l.b16 %v60
  %v197 = vunpack.c.l.b16 %v61
  %v198 = vunpack.c.l.b16 %v62
  %v199 = vunpack.c.l.b16 %v63
  %v200 = vunpack.c.l.b16 %v64
  %v201 = vunpack.c.l.b16 %v65
  %v202 = vunpack.c.l.b16 %v66
  %v203 = vunpack.c.l.b16 %v67
  %v204 = vunpack.c.l.b16 %v68
  %v205 = vunpack.c.l.b16 %v69
  %v206 = vunpack.c.l.b16 %v70
  %v207 = vunpack.c.l.b16 %v71
  %v208 = vunpack.c.l.b16 %v72
  %v209 = vunpack.c.l.b16 %v73
  %v210 = vunpack.c.l.b16 %v74
  %v211 = vunpack.c.l.b16 %v75
  %v212 = vunpack.c.l.b16 %v76
  %v213 = vunpack.c.l.b16 %v77
  %v214 = vunpack.c.l.b16 %v78
  %v215 = vunpack.c.l.b16 %v79
  %v216 = vunpack.c.l.b16 %v80
  %v217 = vunpack.c.l.b16 %v81
  %v218 = vunpack.c.l.b16 %v82
  %v219 = vunpack.c.l.b16 %v83
  %v220 = vpack.c.b16 %v157, %v156
  %v221 = vpack.c.b16 %v159, %v158
  %v222 = vpack.c.b16 %v161, %v160
  %v223 = vpack.c.b16 %v163, %v162
  %v224 = vpack.c.b16 %v165, %v164
  %v225 = vpack.c.b16 %v167, %v166
  %v226 = vpack.c.b16 %v169, %v168
  %v227 = vpack.c.b16 %v171, %v170
  %v228 = vpack.c.b16 %v173, %v172
  %v229 = vpack.c.b16 %v175, %v174
  %v230 = vpack.c.b16 %v177, %v176
  %v231 = vpack.c.b16 %v179, %v178
  %v232 = vpack.c.b16 %v181, %v180
  %v233 = vpack.c.b16 %v183, %v182
  %v234 = vpack.c.b16 %v185, %v184
  %v235 = vpack.c.b16 %v187, %v186
  %v236 = vpack.c.b16 %v189, %v188
  %v237 = vpack.c.b16 %v191, %v190
  %v238 = vpack.c.b16 %v193, %v192
  %v239 = vpack.c.b16 %v195, %v194
  %v240 = vpack.c.b16 %v197, %v196
  %v241 = vpack.c.b16 %v199, %v198
  %v242 = vpack.c.b16 %v201, %v200
  %v243 = vpack.c.b16 %v203, %v202
  %v244 = vpack.c.b16 %v205, %v204
  %v245 = vpack.c.b16 %v207, %v206
  %v246 = vpack.c.b16 %v209, %v208
  %v247 = vpack.c.b16 %v211, %v210
  %v248 = vpack.c.b16 %v213, %v212
  %v249 = vpack.c.b16 %v215, %v214
  %v250 = vpack.c.b16 %v217, %v216
  %v251 = vpack.c.b16 %v219, %v218
  %v260 = vunpack.c.l.b16 %v84
  %v261 = vunpack.c.l.b16 %v85
  %v262 = vunpack.c.l.b16 %v86
  %v263 = vunpack.c.l.b16 %v87
  %v264 = vunpack.c.l.b16 %v88
  %v265 = vunpack.c.l.b16 %v89
  %v266 = vunpack.c.l.b16 %v90
  %v267 = vunpack.c.l.b16 %v91
  %v268 = vpack.c.b16 %v261, %v260
  %v269 = vpack.c.b16 %v263, %v262
  %v270 = vpack.c.b16 %v265, %v264
  %v271 = vpack.c.b16 %v267, %v266
  %vm276 = vcmask 523264
  %v278 = vsel %vm276, %v220, 0
  %v281 = vsel %vm276, %v221, 0
  %v284 = vsel %vm276, %v222, 0
  %v287 = vsel %vm276, %v223, 0
  %v290 = vsel %vm276, %v224, 0
  %v293 = vsel %vm276, %v225, 0
  %v296 = vsel %vm276, %v226, 0
  %v299 = vsel %vm276, %v227, 0
  %v302 = vsel %vm276, %v228, 0
  %v305 = vsel %vm276, %v229, 0
  %v308 = vsel %vm276, %v230, 0
  %v311 = vsel %vm276, %v231, 0
  %v314 = vsel %vm276, %v232, 0
  %v317 = vsel %vm276, %v233, 0
  %v320 = vsel %vm276, %v234, 0
  %v323 = vsel %vm276, %v235, 0
  %v326 = vsel %vm276, %v236, 0
  %v329 = vsel %vm276, %v237, 0
  %v332 = vsel %vm276, %v238, 0
  %v335 = vsel %vm276, %v239, 0
  %v338 = vsel %vm276, %v240, 0
  %v341 = vsel %vm276, %v241, 0
  %v344 = vsel %vm276, %v242, 0
  %v347 = vsel %vm276, %v243, 0
  %v350 = vsel %vm276, %v244, 0
  %v353 = vsel %vm276, %v245, 0
  %v356 = vsel %vm276, %v246, 0
  %v359 = vsel %vm276, %v247, 0
  %v362 = vsel %vm276, %v248, 0
  %v365 = vsel %vm276, %v249, 0
  %v368 = vsel %vm276, %v250, 0
  %v371 = vsel %vm276, %v251, 0
  %373 = vmatpush.bf16.msra.mxu0 0
  %374 = vmatpush.bf16.msra.mxu0 0
  %375 = vmatpush.bf16.msra.mxu0 0
  %376 = vmatpush.bf16.msra.mxu0 0
  %377 = vmatpush.bf16.msra.mxu0 %v271
  %378 = vmatpush.bf16.msra.mxu0 %v270
  %379 = vmatpush.bf16.msra.mxu0 %v269
  %380 = vmatpush.bf16.msra.mxu0 %v268
  %381 = vmatmul.bf16.gmra.mxu0 %v278
  %v382 = vpop.f32.mrf.mxu0
  %v383 = vadd.f32 0.0, %v382
  %v384 = vpop.f32.mrf.mxu0
  %v385 = vadd.f32 0.0, %v384
  %386 = vmatmul.bf16.gmra.mxu0 %v281
  %v387 = vpop.f32.mrf.mxu0
  %v388 = vadd.f32 0.0, %v387
  %v389 = vpop.f32.mrf.mxu0
  %v390 = vadd.f32 0.0, %v389
  %391 = vmatmul.bf16.gmra.mxu0 %v284
  %v392 = vpop.f32.mrf.mxu0
  %v393 = vadd.f32 0.0, %v392
  %v394 = vpop.f32.mrf.mxu0
  %v395 = vadd.f32 0.0, %v394
  %396 = vmatmul.bf16.gmra.mxu0 %v287
  %v397 = vpop.f32.mrf.mxu0
  %v398 = vadd.f32 0.0, %v397
  %v399 = vpop.f32.mrf.mxu0
  %v400 = vadd.f32 0.0, %v399
  %401 = vmatmul.bf16.gmra.mxu0 %v290
  %v402 = vpop.f32.mrf.mxu0
  %v403 = vadd.f32 0.0, %v402
  %v404 = vpop.f32.mrf.mxu0
  %v405 = vadd.f32 0.0, %v404
  %406 = vmatmul.bf16.gmra.mxu0 %v293
  %v407 = vpop.f32.mrf.mxu0
  %v408 = vadd.f32 0.0, %v407
  %v409 = vpop.f32.mrf.mxu0
  %v410 = vadd.f32 0.0, %v409
  %411 = vmatmul.bf16.gmra.mxu0 %v296
  %v412 = vpop.f32.mrf.mxu0
  %v413 = vadd.f32 0.0, %v412
  %v414 = vpop.f32.mrf.mxu0
  %v415 = vadd.f32 0.0, %v414
  %416 = vmatmul.bf16.gmra.mxu0 %v299
  %v417 = vpop.f32.mrf.mxu0
  %v418 = vadd.f32 0.0, %v417
  %v419 = vpop.f32.mrf.mxu0
  %v420 = vadd.f32 0.0, %v419
  %421 = vmatmul.bf16.gmra.mxu0 %v302
  %v422 = vpop.f32.mrf.mxu0
  %v423 = vadd.f32 0.0, %v422
  %v424 = vpop.f32.mrf.mxu0
  %v425 = vadd.f32 0.0, %v424
  %426 = vmatmul.bf16.gmra.mxu0 %v305
  %v427 = vpop.f32.mrf.mxu0
  %v428 = vadd.f32 0.0, %v427
  %v429 = vpop.f32.mrf.mxu0
  %v430 = vadd.f32 0.0, %v429
  %431 = vmatmul.bf16.gmra.mxu0 %v308
  %v432 = vpop.f32.mrf.mxu0
  %v433 = vadd.f32 0.0, %v432
  %v434 = vpop.f32.mrf.mxu0
  %v435 = vadd.f32 0.0, %v434
  %436 = vmatmul.bf16.gmra.mxu0 %v311
  %v437 = vpop.f32.mrf.mxu0
  %v438 = vadd.f32 0.0, %v437
  %v439 = vpop.f32.mrf.mxu0
  %v440 = vadd.f32 0.0, %v439
  %441 = vmatmul.bf16.gmra.mxu0 %v314
  %v442 = vpop.f32.mrf.mxu0
  %v443 = vadd.f32 0.0, %v442
  %v444 = vpop.f32.mrf.mxu0
  %v445 = vadd.f32 0.0, %v444
  %446 = vmatmul.bf16.gmra.mxu0 %v317
  %v447 = vpop.f32.mrf.mxu0
  %v448 = vadd.f32 0.0, %v447
  %v449 = vpop.f32.mrf.mxu0
  %v450 = vadd.f32 0.0, %v449
  %451 = vmatmul.bf16.gmra.mxu0 %v320
  %v452 = vpop.f32.mrf.mxu0
  %v453 = vadd.f32 0.0, %v452
  %v454 = vpop.f32.mrf.mxu0
  %v455 = vadd.f32 0.0, %v454
  %456 = vmatmul.bf16.gmra.mxu0 %v323
  %v457 = vpop.f32.mrf.mxu0
  %v458 = vadd.f32 0.0, %v457
  %v459 = vpop.f32.mrf.mxu0
  %v460 = vadd.f32 0.0, %v459
  %461 = vmatmul.bf16.gmra.mxu0 %v326
  %v462 = vpop.f32.mrf.mxu0
  %v463 = vadd.f32 0.0, %v462
  %v464 = vpop.f32.mrf.mxu0
  %v465 = vadd.f32 0.0, %v464
  %466 = vmatmul.bf16.gmra.mxu0 %v329
  %v467 = vpop.f32.mrf.mxu0
  %v468 = vadd.f32 0.0, %v467
  %v469 = vpop.f32.mrf.mxu0
  %v470 = vadd.f32 0.0, %v469
  %471 = vmatmul.bf16.gmra.mxu0 %v332
  %v472 = vpop.f32.mrf.mxu0
  %v473 = vadd.f32 0.0, %v472
  %v474 = vpop.f32.mrf.mxu0
  %v475 = vadd.f32 0.0, %v474
  %476 = vmatmul.bf16.gmra.mxu0 %v335
  %v477 = vpop.f32.mrf.mxu0
  %v478 = vadd.f32 0.0, %v477
  %v479 = vpop.f32.mrf.mxu0
  %v480 = vadd.f32 0.0, %v479
  %481 = vmatmul.bf16.gmra.mxu0 %v338
  %v482 = vpop.f32.mrf.mxu0
  %v483 = vadd.f32 0.0, %v482
  %v484 = vpop.f32.mrf.mxu0
  %v485 = vadd.f32 0.0, %v484
  %486 = vmatmul.bf16.gmra.mxu0 %v341
  %v487 = vpop.f32.mrf.mxu0
  %v488 = vadd.f32 0.0, %v487
  %v489 = vpop.f32.mrf.mxu0
  %v490 = vadd.f32 0.0, %v489
  %491 = vmatmul.bf16.gmra.mxu0 %v344
  %v492 = vpop.f32.mrf.mxu0
  %v493 = vadd.f32 0.0, %v492
  %v494 = vpop.f32.mrf.mxu0
  %v495 = vadd.f32 0.0, %v494
  %496 = vmatmul.bf16.gmra.mxu0 %v347
  %v497 = vpop.f32.mrf.mxu0
  %v498 = vadd.f32 0.0, %v497
  %v499 = vpop.f32.mrf.mxu0
  %v500 = vadd.f32 0.0, %v499
  %501 = vmatmul.bf16.gmra.mxu0 %v350
  %v502 = vpop.f32.mrf.mxu0
  %v503 = vadd.f32 0.0, %v502
  %v504 = vpop.f32.mrf.mxu0
  %v505 = vadd.f32 0.0, %v504
  %506 = vmatmul.bf16.gmra.mxu0 %v353
  %v507 = vpop.f32.mrf.mxu0
  %v508 = vadd.f32 0.0, %v507
  %v509 = vpop.f32.mrf.mxu0
  %v510 = vadd.f32 0.0, %v509
  %511 = vmatmul.bf16.gmra.mxu0 %v356
  %v512 = vpop.f32.mrf.mxu0
  %v513 = vadd.f32 0.0, %v512
  %v514 = vpop.f32.mrf.mxu0
  %v515 = vadd.f32 0.0, %v514
  %516 = vmatmul.bf16.gmra.mxu0 %v359
  %v517 = vpop.f32.mrf.mxu0
  %v518 = vadd.f32 0.0, %v517
  %v519 = vpop.f32.mrf.mxu0
  %v520 = vadd.f32 0.0, %v519
  %521 = vmatmul.bf16.gmra.mxu0 %v362
  %v522 = vpop.f32.mrf.mxu0
  %v523 = vadd.f32 0.0, %v522
  %v524 = vpop.f32.mrf.mxu0
  %v525 = vadd.f32 0.0, %v524
  %526 = vmatmul.bf16.gmra.mxu0 %v365
  %v527 = vpop.f32.mrf.mxu0
  %v528 = vadd.f32 0.0, %v527
  %v529 = vpop.f32.mrf.mxu0
  %v530 = vadd.f32 0.0, %v529
  %531 = vmatmul.bf16.gmra.mxu0 %v368
  %v532 = vpop.f32.mrf.mxu0
  %v533 = vadd.f32 0.0, %v532
  %v534 = vpop.f32.mrf.mxu0
  %v535 = vadd.f32 0.0, %v534
  %536 = vmatmul.bf16.gmra.mxu0 %v371
  %v537 = vpop.f32.mrf.mxu0
  %v538 = vadd.f32 0.0, %v537
  %v539 = vpop.f32.mrf.mxu0
  %v540 = vadd.f32 0.0, %v539
  %541 = vdwg.mxu0
  %v542 = vld [vmem:[%s2] sm:$0xf]
  %v543 = vld [vmem:[%s2 + $0x4] sm:$0xf]
  %v544 = vld [vmem:[%s2 + $0x8] sm:$0xf]
  %v545 = vld [vmem:[%s2 + $0xc] sm:$0xf]
  %v546 = vld [vmem:[%s2 + $0x10] sm:$0xf]
  %v547 = vld [vmem:[%s2 + $0x14] sm:$0xf]
  %v548 = vld [vmem:[%s2 + $0x18] sm:$0xf]
  %v549 = vld [vmem:[%s2 + $0x1c] sm:$0xf]
  %v550 = vld [vmem:[%s2 + $0x20] sm:$0xf]
  %v551 = vld [vmem:[%s2 + $0x24] sm:$0xf]
  %v552 = vld [vmem:[%s2 + $0x28] sm:$0xf]
  %v553 = vld [vmem:[%s2 + $0x2c] sm:$0xf]
  %v554 = vld [vmem:[%s2 + $0x30] sm:$0xf]
  %v555 = vld [vmem:[%s2 + $0x34] sm:$0xf]
  %v556 = vld [vmem:[%s2 + $0x38] sm:$0xf]
  %v557 = vld [vmem:[%s2 + $0x3c] sm:$0xf]
  %v558 = vld [vmem:[%s3] sm:$0xf]
  %v559 = vld [vmem:[%s3 + $0x4] sm:$0xf]
  %v560 = vld [vmem:[%s3 + $0x8] sm:$0xf]
  %v561 = vld [vmem:[%s3 + $0xc] sm:$0xf]
  %v562 = vld [vmem:[%s3 + $0x10] sm:$0xf]
  %v563 = vld [vmem:[%s3 + $0x14] sm:$0xf]
  %v564 = vld [vmem:[%s3 + $0x18] sm:$0xf]
  %v565 = vld [vmem:[%s3 + $0x1c] sm:$0xf]
  %v582 = vunpack.c.l.b16 %v542
  %v583 = vunpack.c.l.b16 %v543
  %v584 = vunpack.c.l.b16 %v544
  %v585 = vunpack.c.l.b16 %v545
  %v586 = vunpack.c.l.b16 %v546
  %v587 = vunpack.c.l.b16 %v547
  %v588 = vunpack.c.l.b16 %v548
  %v589 = vunpack.c.l.b16 %v549
  %v590 = vunpack.c.l.b16 %v550
  %v591 = vunpack.c.l.b16 %v551
  %v592 = vunpack.c.l.b16 %v552
  %v593 = vunpack.c.l.b16 %v553
  %v594 = vunpack.c.l.b16 %v554
  %v595 = vunpack.c.l.b16 %v555
  %v596 = vunpack.c.l.b16 %v556
  %v597 = vunpack.c.l.b16 %v557
  %v598 = vpack.c.b16 %v583, %v582
  %v599 = vpack.c.b16 %v585, %v584
  %v600 = vpack.c.b16 %v587, %v586
  %v601 = vpack.c.b16 %v589, %v588
  %v602 = vpack.c.b16 %v591, %v590
  %v603 = vpack.c.b16 %v593, %v592
  %v604 = vpack.c.b16 %v595, %v594
  %v605 = vpack.c.b16 %v597, %v596
  %v614 = vunpack.c.l.b16 %v558
  %v615 = vunpack.c.l.b16 %v559
  %v616 = vunpack.c.l.b16 %v560
  %v617 = vunpack.c.l.b16 %v561
  %v618 = vunpack.c.l.b16 %v562
  %v619 = vunpack.c.l.b16 %v563
  %v620 = vunpack.c.l.b16 %v564
  %v621 = vunpack.c.l.b16 %v565
  %v622 = vpack.c.b16 %v615, %v614
  %v623 = vpack.c.b16 %v617, %v616
  %v624 = vpack.c.b16 %v619, %v618
  %v625 = vpack.c.b16 %v621, %v620
  %v631 = vsel %vm276, %v598, 0
  %v634 = vsel %vm276, %v599, 0
  %v637 = vsel %vm276, %v600, 0
  %v640 = vsel %vm276, %v601, 0
  %v643 = vsel %vm276, %v602, 0
  %v646 = vsel %vm276, %v603, 0
  %v649 = vsel %vm276, %v604, 0
  %v652 = vsel %vm276, %v605, 0
  %654 = vmatpush.bf16.msra.mxu0 0
  %655 = vmatpush.bf16.msra.mxu0 0
  %656 = vmatpush.bf16.msra.mxu0 0
  %657 = vmatpush.bf16.msra.mxu0 0
  %658 = vmatpush.bf16.msra.mxu0 %v625
  %659 = vmatpush.bf16.msra.mxu0 %v624
  %660 = vmatpush.bf16.msra.mxu0 %v623
  %661 = vmatpush.bf16.msra.mxu0 %v622
  %662 = vmatmul.bf16.gmra.mxu0 %v631
  %v663 = vpop.f32.mrf.mxu0
  %v664 = vadd.f32 0.0, %v663
  %v665 = vpop.f32.mrf.mxu0
  %v666 = vadd.f32 0.0, %v665
  %667 = vmatmul.bf16.gmra.mxu0 %v634
  %v668 = vpop.f32.mrf.mxu0
  %v669 = vadd.f32 0.0, %v668
  %v670 = vpop.f32.mrf.mxu0
  %v671 = vadd.f32 0.0, %v670
  %672 = vmatmul.bf16.gmra.mxu0 %v637
  %v673 = vpop.f32.mrf.mxu0
  %v674 = vadd.f32 0.0, %v673
  %v675 = vpop.f32.mrf.mxu0
  %v676 = vadd.f32 0.0, %v675
  %677 = vmatmul.bf16.gmra.mxu0 %v640
  %v678 = vpop.f32.mrf.mxu0
  %v679 = vadd.f32 0.0, %v678
  %v680 = vpop.f32.mrf.mxu0
  %v681 = vadd.f32 0.0, %v680
  %682 = vmatmul.bf16.gmra.mxu0 %v643
  %v683 = vpop.f32.mrf.mxu0
  %v684 = vadd.f32 0.0, %v683
  %v685 = vpop.f32.mrf.mxu0
  %v686 = vadd.f32 0.0, %v685
  %687 = vmatmul.bf16.gmra.mxu0 %v646
  %v688 = vpop.f32.mrf.mxu0
  %v689 = vadd.f32 0.0, %v688
  %v690 = vpop.f32.mrf.mxu0
  %v691 = vadd.f32 0.0, %v690
  %692 = vmatmul.bf16.gmra.mxu0 %v649
  %v693 = vpop.f32.mrf.mxu0
  %v694 = vadd.f32 0.0, %v693
  %v695 = vpop.f32.mrf.mxu0
  %v696 = vadd.f32 0.0, %v695
  %697 = vmatmul.bf16.gmra.mxu0 %v652
  %v698 = vpop.f32.mrf.mxu0
  %v699 = vadd.f32 0.0, %v698
  %v700 = vpop.f32.mrf.mxu0
  %v701 = vadd.f32 0.0, %v700
  %702 = vdwg.mxu0
  %vm703 = vcmp.ge.f32.partialorder %v383, 0.0
  %vm704 = vcmp.ge.f32.partialorder %v385, 0.0
  %vm705 = vcmp.ge.f32.partialorder %v388, 0.0
  %vm706 = vcmp.ge.f32.partialorder %v390, 0.0
  %vm707 = vcmp.ge.f32.partialorder %v393, 0.0
  %vm708 = vcmp.ge.f32.partialorder %v395, 0.0
  %vm709 = vcmp.ge.f32.partialorder %v398, 0.0
  %vm710 = vcmp.ge.f32.partialorder %v400, 0.0
  %vm711 = vcmp.ge.f32.partialorder %v403, 0.0
  %vm712 = vcmp.ge.f32.partialorder %v405, 0.0
  %vm713 = vcmp.ge.f32.partialorder %v408, 0.0
  %vm714 = vcmp.ge.f32.partialorder %v410, 0.0
  %vm715 = vcmp.ge.f32.partialorder %v413, 0.0
  %vm716 = vcmp.ge.f32.partialorder %v415, 0.0
  %vm717 = vcmp.ge.f32.partialorder %v418, 0.0
  %vm718 = vcmp.ge.f32.partialorder %v420, 0.0
  %vm719 = vcmp.ge.f32.partialorder %v423, 0.0
  %vm720 = vcmp.ge.f32.partialorder %v425, 0.0
  %vm721 = vcmp.ge.f32.partialorder %v428, 0.0
  %vm722 = vcmp.ge.f32.partialorder %v430, 0.0
  %vm723 = vcmp.ge.f32.partialorder %v433, 0.0
  %vm724 = vcmp.ge.f32.partialorder %v435, 0.0
  %vm725 = vcmp.ge.f32.partialorder %v438, 0.0
  %vm726 = vcmp.ge.f32.partialorder %v440, 0.0
  %vm727 = vcmp.ge.f32.partialorder %v443, 0.0
  %vm728 = vcmp.ge.f32.partialorder %v445, 0.0
  %vm729 = vcmp.ge.f32.partialorder %v448, 0.0
  %vm730 = vcmp.ge.f32.partialorder %v450, 0.0
  %vm731 = vcmp.ge.f32.partialorder %v453, 0.0
  %vm732 = vcmp.ge.f32.partialorder %v455, 0.0
  %vm733 = vcmp.ge.f32.partialorder %v458, 0.0
  %vm734 = vcmp.ge.f32.partialorder %v460, 0.0
  %vm735 = vcmp.ge.f32.partialorder %v463, 0.0
  %vm736 = vcmp.ge.f32.partialorder %v465, 0.0
  %vm737 = vcmp.ge.f32.partialorder %v468, 0.0
  %vm738 = vcmp.ge.f32.partialorder %v470, 0.0
  %vm739 = vcmp.ge.f32.partialorder %v473, 0.0
  %vm740 = vcmp.ge.f32.partialorder %v475, 0.0
  %vm741 = vcmp.ge.f32.partialorder %v478, 0.0
  %vm742 = vcmp.ge.f32.partialorder %v480, 0.0
  %vm743 = vcmp.ge.f32.partialorder %v483, 0.0
  %vm744 = vcmp.ge.f32.partialorder %v485, 0.0
  %vm745 = vcmp.ge.f32.partialorder %v488, 0.0
  %vm746 = vcmp.ge.f32.partialorder %v490, 0.0
  %vm747 = vcmp.ge.f32.partialorder %v493, 0.0
  %vm748 = vcmp.ge.f32.partialorder %v495, 0.0
  %vm749 = vcmp.ge.f32.partialorder %v498, 0.0
  %vm750 = vcmp.ge.f32.partialorder %v500, 0.0
  %vm751 = vcmp.ge.f32.partialorder %v503, 0.0
  %vm752 = vcmp.ge.f32.partialorder %v505, 0.0
  %vm753 = vcmp.ge.f32.partialorder %v508, 0.0
  %vm754 = vcmp.ge.f32.partialorder %v510, 0.0
  %vm755 = vcmp.ge.f32.partialorder %v513, 0.0
  %vm756 = vcmp.ge.f32.partialorder %v515, 0.0
  %vm757 = vcmp.ge.f32.partialorder %v518, 0.0
  %vm758 = vcmp.ge.f32.partialorder %v520, 0.0
  %vm759 = vcmp.ge.f32.partialorder %v523, 0.0
  %vm760 = vcmp.ge.f32.partialorder %v525, 0.0
  %vm761 = vcmp.ge.f32.partialorder %v528, 0.0
  %vm762 = vcmp.ge.f32.partialorder %v530, 0.0
  %vm763 = vcmp.ge.f32.partialorder %v533, 0.0
  %vm764 = vcmp.ge.f32.partialorder %v535, 0.0
  %vm765 = vcmp.ge.f32.partialorder %v538, 0.0
  %vm766 = vcmp.ge.f32.partialorder %v540, 0.0
  %v767 = vmul.f32 %v383, 0.2
  %v768 = vmul.f32 %v385, 0.2
  %v769 = vmul.f32 %v388, 0.2
  %v770 = vmul.f32 %v390, 0.2
  %v771 = vmul.f32 %v393, 0.2
  %v772 = vmul.f32 %v395, 0.2
  %v773 = vmul.f32 %v398, 0.2
  %v774 = vmul.f32 %v400, 0.2
  %v775 = vmul.f32 %v403, 0.2
  %v776 = vmul.f32 %v405, 0.2
  %v777 = vmul.f32 %v408, 0.2
  %v778 = vmul.f32 %v410, 0.2
  %v779 = vmul.f32 %v413, 0.2
  %v780 = vmul.f32 %v415, 0.2
  %v781 = vmul.f32 %v418, 0.2
  %v782 = vmul.f32 %v420, 0.2
  %v783 = vmul.f32 %v423, 0.2
  %v784 = vmul.f32 %v425, 0.2
  %v785 = vmul.f32 %v428, 0.2
  %v786 = vmul.f32 %v430, 0.2
  %v787 = vmul.f32 %v433, 0.2
  %v788 = vmul.f32 %v435, 0.2
  %v789 = vmul.f32 %v438, 0.2
  %v790 = vmul.f32 %v440, 0.2
  %v791 = vmul.f32 %v443, 0.2
  %v792 = vmul.f32 %v445, 0.2
  %v793 = vmul.f32 %v448, 0.2
  %v794 = vmul.f32 %v450, 0.2
  %v795 = vmul.f32 %v453, 0.2
  %v796 = vmul.f32 %v455, 0.2
  %v797 = vmul.f32 %v458, 0.2
  %v798 = vmul.f32 %v460, 0.2
  %v799 = vmul.f32 %v463, 0.2
  %v800 = vmul.f32 %v465, 0.2
  %v801 = vmul.f32 %v468, 0.2
  %v802 = vmul.f32 %v470, 0.2
  %v803 = vmul.f32 %v473, 0.2
  %v804 = vmul.f32 %v475, 0.2
  %v805 = vmul.f32 %v478, 0.2
  %v806 = vmul.f32 %v480, 0.2
  %v807 = vmul.f32 %v483, 0.2
  %v808 = vmul.f32 %v485, 0.2
  %v809 = vmul.f32 %v488, 0.2
  %v810 = vmul.f32 %v490, 0.2
  %v811 = vmul.f32 %v493, 0.2
  %v812 = vmul.f32 %v495, 0.2
  %v813 = vmul.f32 %v498, 0.2
  %v814 = vmul.f32 %v500, 0.2
  %v815 = vmul.f32 %v503, 0.2
  %v816 = vmul.f32 %v505, 0.2
  %v817 = vmul.f32 %v508, 0.2
  %v818 = vmul.f32 %v510, 0.2
  %v819 = vmul.f32 %v513, 0.2
  %v820 = vmul.f32 %v515, 0.2
  %v821 = vmul.f32 %v518, 0.2
  %v822 = vmul.f32 %v520, 0.2
  %v823 = vmul.f32 %v523, 0.2
  %v824 = vmul.f32 %v525, 0.2
  %v825 = vmul.f32 %v528, 0.2
  %v826 = vmul.f32 %v530, 0.2
  %v827 = vmul.f32 %v533, 0.2
  %v828 = vmul.f32 %v535, 0.2
  %v829 = vmul.f32 %v538, 0.2
  %v830 = vmul.f32 %v540, 0.2
  %v831 = vsel %vm703, %v383, %v767
  %v832 = vsel %vm704, %v385, %v768
  %v833 = vsel %vm705, %v388, %v769
  %v834 = vsel %vm706, %v390, %v770
  %v835 = vsel %vm707, %v393, %v771
  %v836 = vsel %vm708, %v395, %v772
  %v837 = vsel %vm709, %v398, %v773
  %v838 = vsel %vm710, %v400, %v774
  %v839 = vsel %vm711, %v403, %v775
  %v840 = vsel %vm712, %v405, %v776
  %v841 = vsel %vm713, %v408, %v777
  %v842 = vsel %vm714, %v410, %v778
  %v843 = vsel %vm715, %v413, %v779
  %v844 = vsel %vm716, %v415, %v780
  %v845 = vsel %vm717, %v418, %v781
  %v846 = vsel %vm718, %v420, %v782
  %v847 = vsel %vm719, %v423, %v783
  %v848 = vsel %vm720, %v425, %v784
  %v849 = vsel %vm721, %v428, %v785
  %v850 = vsel %vm722, %v430, %v786
  %v851 = vsel %vm723, %v433, %v787
  %v852 = vsel %vm724, %v435, %v788
  %v853 = vsel %vm725, %v438, %v789
  %v854 = vsel %vm726, %v440, %v790
  %v855 = vsel %vm727, %v443, %v791
  %v856 = vsel %vm728, %v445, %v792
  %v857 = vsel %vm729, %v448, %v793
  %v858 = vsel %vm730, %v450, %v794
  %v859 = vsel %vm731, %v453, %v795
  %v860 = vsel %vm732, %v455, %v796
  %v861 = vsel %vm733, %v458, %v797
  %v862 = vsel %vm734, %v460, %v798
  %v863 = vsel %vm735, %v463, %v799
  %v864 = vsel %vm736, %v465, %v800
  %v865 = vsel %vm737, %v468, %v801
  %v866 = vsel %vm738, %v470, %v802
  %v867 = vsel %vm739, %v473, %v803
  %v868 = vsel %vm740, %v475, %v804
  %v869 = vsel %vm741, %v478, %v805
  %v870 = vsel %vm742, %v480, %v806
  %v871 = vsel %vm743, %v483, %v807
  %v872 = vsel %vm744, %v485, %v808
  %v873 = vsel %vm745, %v488, %v809
  %v874 = vsel %vm746, %v490, %v810
  %v875 = vsel %vm747, %v493, %v811
  %v876 = vsel %vm748, %v495, %v812
  %v877 = vsel %vm749, %v498, %v813
  %v878 = vsel %vm750, %v500, %v814
  %v879 = vsel %vm751, %v503, %v815
  %v880 = vsel %vm752, %v505, %v816
  %v881 = vsel %vm753, %v508, %v817
  %v882 = vsel %vm754, %v510, %v818
  %v883 = vsel %vm755, %v513, %v819
  %v884 = vsel %vm756, %v515, %v820
  %v885 = vsel %vm757, %v518, %v821
  %v886 = vsel %vm758, %v520, %v822
  %v887 = vsel %vm759, %v523, %v823
  %v888 = vsel %vm760, %v525, %v824
  %v889 = vsel %vm761, %v528, %v825
  %v890 = vsel %vm762, %v530, %v826
  %v891 = vsel %vm763, %v533, %v827
  %v892 = vsel %vm764, %v535, %v828
  %v893 = vsel %vm765, %v538, %v829
  %v894 = vsel %vm766, %v540, %v830
  %895 = vst.msk [vmem:[%s4] sm:$0xff] %vm276, %v831
  %896 = vst.msk [vmem:[%s4 + $0x8] sm:$0xff] %vm276, %v832
  %897 = vst.msk [vmem:[%s4 + $0x10] sm:$0xff] %vm276, %v833
  %898 = vst.msk [vmem:[%s4 + $0x18] sm:$0xff] %vm276, %v834
  %899 = vst.msk [vmem:[%s4 + $0x20] sm:$0xff] %vm276, %v835
  %900 = vst.msk [vmem:[%s4 + $0x28] sm:$0xff] %vm276, %v836
  %901 = vst.msk [vmem:[%s4 + $0x30] sm:$0xff] %vm276, %v837
  %902 = vst.msk [vmem:[%s4 + $0x38] sm:$0xff] %vm276, %v838
  %903 = vst.msk [vmem:[%s4 + $0x40] sm:$0xff] %vm276, %v839
  %904 = vst.msk [vmem:[%s4 + $0x48] sm:$0xff] %vm276, %v840
  %905 = vst.msk [vmem:[%s4 + $0x50] sm:$0xff] %vm276, %v841
  %906 = vst.msk [vmem:[%s4 + $0x58] sm:$0xff] %vm276, %v842
  %907 = vst.msk [vmem:[%s4 + $0x60] sm:$0xff] %vm276, %v843
  %908 = vst.msk [vmem:[%s4 + $0x68] sm:$0xff] %vm276, %v844
  %909 = vst.msk [vmem:[%s4 + $0x70] sm:$0xff] %vm276, %v845
  %910 = vst.msk [vmem:[%s4 + $0x78] sm:$0xff] %vm276, %v846
  %911 = vst.msk [vmem:[%s4 + $0x80] sm:$0xff] %vm276, %v847
  %912 = vst.msk [vmem:[%s4 + $0x88] sm:$0xff] %vm276, %v848
  %913 = vst.msk [vmem:[%s4 + $0x90] sm:$0xff] %vm276, %v849
  %914 = vst.msk [vmem:[%s4 + $0x98] sm:$0xff] %vm276, %v850
  %915 = vst.msk [vmem:[%s4 + $0xa0] sm:$0xff] %vm276, %v851
  %916 = vst.msk [vmem:[%s4 + $0xa8] sm:$0xff] %vm276, %v852
  %917 = vst.msk [vmem:[%s4 + $0xb0] sm:$0xff] %vm276, %v853
  %918 = vst.msk [vmem:[%s4 + $0xb8] sm:$0xff] %vm276, %v854
  %919 = vst.msk [vmem:[%s4 + $0xc0] sm:$0xff] %vm276, %v855
  %920 = vst.msk [vmem:[%s4 + $0xc8] sm:$0xff] %vm276, %v856
  %921 = vst.msk [vmem:[%s4 + $0xd0] sm:$0xff] %vm276, %v857
  %922 = vst.msk [vmem:[%s4 + $0xd8] sm:$0xff] %vm276, %v858
  %923 = vst.msk [vmem:[%s4 + $0xe0] sm:$0xff] %vm276, %v859
  %924 = vst.msk [vmem:[%s4 + $0xe8] sm:$0xff] %vm276, %v860
  %925 = vst.msk [vmem:[%s4 + $0xf0] sm:$0xff] %vm276, %v861
  %926 = vst.msk [vmem:[%s4 + $0xf8] sm:$0xff] %vm276, %v862
  %927 = vst.msk [vmem:[%s4 + $0x100] sm:$0xff] %vm276, %v863
  %928 = vst.msk [vmem:[%s4 + $0x108] sm:$0xff] %vm276, %v864
  %929 = vst.msk [vmem:[%s4 + $0x110] sm:$0xff] %vm276, %v865
  %930 = vst.msk [vmem:[%s4 + $0x118] sm:$0xff] %vm276, %v866
  %931 = vst.msk [vmem:[%s4 + $0x120] sm:$0xff] %vm276, %v867
  %932 = vst.msk [vmem:[%s4 + $0x128] sm:$0xff] %vm276, %v868
  %933 = vst.msk [vmem:[%s4 + $0x130] sm:$0xff] %vm276, %v869
  %934 = vst.msk [vmem:[%s4 + $0x138] sm:$0xff] %vm276, %v870
  %935 = vst.msk [vmem:[%s4 + $0x140] sm:$0xff] %vm276, %v871
  %936 = vst.msk [vmem:[%s4 + $0x148] sm:$0xff] %vm276, %v872
  %937 = vst.msk [vmem:[%s4 + $0x150] sm:$0xff] %vm276, %v873
  %938 = vst.msk [vmem:[%s4 + $0x158] sm:$0xff] %vm276, %v874
  %939 = vst.msk [vmem:[%s4 + $0x160] sm:$0xff] %vm276, %v875
  %940 = vst.msk [vmem:[%s4 + $0x168] sm:$0xff] %vm276, %v876
  %941 = vst.msk [vmem:[%s4 + $0x170] sm:$0xff] %vm276, %v877
  %942 = vst.msk [vmem:[%s4 + $0x178] sm:$0xff] %vm276, %v878
  %943 = vst.msk [vmem:[%s4 + $0x180] sm:$0xff] %vm276, %v879
  %944 = vst.msk [vmem:[%s4 + $0x188] sm:$0xff] %vm276, %v880
  %945 = vst.msk [vmem:[%s4 + $0x190] sm:$0xff] %vm276, %v881
  %946 = vst.msk [vmem:[%s4 + $0x198] sm:$0xff] %vm276, %v882
  %947 = vst.msk [vmem:[%s4 + $0x1a0] sm:$0xff] %vm276, %v883
  %948 = vst.msk [vmem:[%s4 + $0x1a8] sm:$0xff] %vm276, %v884
  %949 = vst.msk [vmem:[%s4 + $0x1b0] sm:$0xff] %vm276, %v885
  %950 = vst.msk [vmem:[%s4 + $0x1b8] sm:$0xff] %vm276, %v886
  %951 = vst.msk [vmem:[%s4 + $0x1c0] sm:$0xff] %vm276, %v887
  %952 = vst.msk [vmem:[%s4 + $0x1c8] sm:$0xff] %vm276, %v888
  %953 = vst.msk [vmem:[%s4 + $0x1d0] sm:$0xff] %vm276, %v889
  %954 = vst.msk [vmem:[%s4 + $0x1d8] sm:$0xff] %vm276, %v890
  %955 = vst.msk [vmem:[%s4 + $0x1e0] sm:$0xff] %vm276, %v891
  %956 = vst.msk [vmem:[%s4 + $0x1e8] sm:$0xff] %vm276, %v892
  %957 = vst.msk [vmem:[%s4 + $0x1f0] sm:$0xff] %vm276, %v893
  %958 = vst.msk [vmem:[%s4 + $0x1f8] sm:$0xff] %vm276, %v894
  %vm959 = vcmp.ge.f32.partialorder %v664, 0.0
  %vm960 = vcmp.ge.f32.partialorder %v666, 0.0
  %vm961 = vcmp.ge.f32.partialorder %v669, 0.0
  %vm962 = vcmp.ge.f32.partialorder %v671, 0.0
  %vm963 = vcmp.ge.f32.partialorder %v674, 0.0
  %vm964 = vcmp.ge.f32.partialorder %v676, 0.0
  %vm965 = vcmp.ge.f32.partialorder %v679, 0.0
  %vm966 = vcmp.ge.f32.partialorder %v681, 0.0
  %vm967 = vcmp.ge.f32.partialorder %v684, 0.0
  %vm968 = vcmp.ge.f32.partialorder %v686, 0.0
  %vm969 = vcmp.ge.f32.partialorder %v689, 0.0
  %vm970 = vcmp.ge.f32.partialorder %v691, 0.0
  %vm971 = vcmp.ge.f32.partialorder %v694, 0.0
  %vm972 = vcmp.ge.f32.partialorder %v696, 0.0
  %vm973 = vcmp.ge.f32.partialorder %v699, 0.0
  %vm974 = vcmp.ge.f32.partialorder %v701, 0.0
  %v975 = vmul.f32 %v664, 0.2
  %v976 = vmul.f32 %v666, 0.2
  %v977 = vmul.f32 %v669, 0.2
  %v978 = vmul.f32 %v671, 0.2
  %v979 = vmul.f32 %v674, 0.2
  %v980 = vmul.f32 %v676, 0.2
  %v981 = vmul.f32 %v679, 0.2
  %v982 = vmul.f32 %v681, 0.2
  %v983 = vmul.f32 %v684, 0.2
  %v984 = vmul.f32 %v686, 0.2
  %v985 = vmul.f32 %v689, 0.2
  %v986 = vmul.f32 %v691, 0.2
  %v987 = vmul.f32 %v694, 0.2
  %v988 = vmul.f32 %v696, 0.2
  %v989 = vmul.f32 %v699, 0.2
  %v990 = vmul.f32 %v701, 0.2
  %v991 = vsel %vm959, %v664, %v975
  %v992 = vsel %vm960, %v666, %v976
  %v993 = vsel %vm961, %v669, %v977
  %v994 = vsel %vm962, %v671, %v978
  %v995 = vsel %vm963, %v674, %v979
  %v996 = vsel %vm964, %v676, %v980
  %v997 = vsel %vm965, %v679, %v981
  %v998 = vsel %vm966, %v681, %v982
  %v999 = vsel %vm967, %v684, %v983
  %v1000 = vsel %vm968, %v686, %v984
  %v1001 = vsel %vm969, %v689, %v985
  %v1002 = vsel %vm970, %v691, %v986
  %v1003 = vsel %vm971, %v694, %v987
  %v1004 = vsel %vm972, %v696, %v988
  %v1005 = vsel %vm973, %v699, %v989
  %v1006 = vsel %vm974, %v701, %v990
  %1007 = vst.msk [vmem:[%s5] sm:$0xff] %vm276, %v991
  %1008 = vst.msk [vmem:[%s5 + $0x8] sm:$0xff] %vm276, %v992
  %1009 = vst.msk [vmem:[%s5 + $0x10] sm:$0xff] %vm276, %v993
  %1010 = vst.msk [vmem:[%s5 + $0x18] sm:$0xff] %vm276, %v994
  %1011 = vst.msk [vmem:[%s5 + $0x20] sm:$0xff] %vm276, %v995
  %1012 = vst.msk [vmem:[%s5 + $0x28] sm:$0xff] %vm276, %v996
  %1013 = vst.msk [vmem:[%s5 + $0x30] sm:$0xff] %vm276, %v997
  %1014 = vst.msk [vmem:[%s5 + $0x38] sm:$0xff] %vm276, %v998
  %1015 = vst.msk [vmem:[%s5 + $0x40] sm:$0xff] %vm276, %v999
  %1016 = vst.msk [vmem:[%s5 + $0x48] sm:$0xff] %vm276, %v1000
  %1017 = vst.msk [vmem:[%s5 + $0x50] sm:$0xff] %vm276, %v1001
  %1018 = vst.msk [vmem:[%s5 + $0x58] sm:$0xff] %vm276, %v1002
  %1019 = vst.msk [vmem:[%s5 + $0x60] sm:$0xff] %vm276, %v1003
  %1020 = vst.msk [vmem:[%s5 + $0x68] sm:$0xff] %vm276, %v1004
  %1021 = vst.msk [vmem:[%s5 + $0x70] sm:$0xff] %vm276, %v1005
  %1022 = vst.msk [vmem:[%s5 + $0x78] sm:$0xff] %vm276, %v1006
  // Predicated region
  $region18: #{encoder_forward.7} parent=0 // pred_check
    _
  $region19: #{encoder_forward.7} parent=0 // pred_check_branch
    %1024 = sbr.rel (0) target = $region21
  $region20: #{encoder_forward.7} parent=0 // pred_region
    _
  $region21: #{encoder_forward.7} parent=0 // pred_fallthru
    _
  // Predicated region
  $region22: #{encoder_forward.7} parent=0 // pred_check
    _
  $region23: #{encoder_forward.7} parent=0 // pred_check_branch
    %1026 = sbr.rel (0) target = $region25
  $region24: #{encoder_forward.7} parent=0 // pred_region
    _
  $region25: #{encoder_forward.7} parent=0 // pred_fallthru
    _
  // Predicated region
  $region26: #{encoder_forward.7} parent=0 // pred_check
    _
  $region27: #{encoder_forward.7} parent=0 // pred_check_branch
    %1028 = sbr.rel (0) target = $region29
  $region28: #{encoder_forward.7} parent=0 // pred_region
    _
  $region29: #{encoder_forward.7} parent=0 // pred_fallthru
    _
  // Predicated region
  $region30: #{encoder_forward.7} parent=0 // pred_check
    _
  $region31: #{encoder_forward.7} parent=0 // pred_check_branch
    %1030 = sbr.rel (0) target = $region33
  $region32: #{encoder_forward.7} parent=0 // pred_region
    _
  $region33: #{encoder_forward.7} parent=0 // pred_fallthru
    _

// kernel: encoder_forward.8
$region0: #{encoder_forward.8}
  #allocation0 [shape = 'u32[]', space=smem, size = 0x4, offset = 0x4, fixed_abs, tag = 'smem constant byte address 0x4 - core index']
  #allocation1 [shape = 'u32[72,128]{1,0:T(1,128)}', space=vmem, size = 0x9000, scoped, tag = 'internal scratch']
  %s0 = inlined_call_operand.vmem [shape: bf16[9,128,128], index: 0, kind: input, shape index: {}]
  %s1 = inlined_call_operand.vmem [shape: f32[9,128], index: 1, kind: input, shape index: {}]
  %s2 = inlined_call_operand.vmem [shape: f32[128,128], index: 2, kind: output, shape index: {}]
  %s3 = sld [smem:[#allocation0]]
  $region18: #{encoder_forward.8} parent=0
    _
  %s5 = ssub.s32 1, %s3
  %s6 = scalar_select 0, %s5, %s3
  // Predicated region
  $region2: #{encoder_forward.8} parent=0 // pred_check
    _
  $region3: #{encoder_forward.8} parent=0 // pred_check_branch
    %8 = sbr.rel (0) target = $region5
  $region4: #{encoder_forward.8} parent=0 // pred_region
    _
  $region5: #{encoder_forward.8} parent=0 // pred_fallthru
    _
  // Predicated region
  $region6: #{encoder_forward.8} parent=0 // pred_check
    _
  $region7: #{encoder_forward.8} parent=0 // pred_check_branch
    %10 = sbr.rel (0) target = $region9
  $region8: #{encoder_forward.8} parent=0 // pred_region
    _
  $region9: #{encoder_forward.8} parent=0 // pred_fallthru
    _
  %v11 = vld [vmem:[%s0] sm:$0xf]
  %v12 = vld [vmem:[%s0 + $0x4] sm:$0xf]
  %v13 = vld [vmem:[%s0 + $0x8] sm:$0xf]
  %v14 = vld [vmem:[%s0 + $0xc] sm:$0xf]
  %v15 = vld [vmem:[%s0 + $0x10] sm:$0xf]
  %v16 = vld [vmem:[%s0 + $0x14] sm:$0xf]
  %v17 = vld [vmem:[%s0 + $0x18] sm:$0xf]
  %v18 = vld [vmem:[%s0 + $0x1c] sm:$0xf]
  %v19 = vld [vmem:[%s0 + $0x20] sm:$0xf]
  %v20 = vld [vmem:[%s0 + $0x24] sm:$0xf]
  %v21 = vld [vmem:[%s0 + $0x28] sm:$0xf]
  %v22 = vld [vmem:[%s0 + $0x2c] sm:$0xf]
  %v23 = vld [vmem:[%s0 + $0x30] sm:$0xf]
  %v24 = vld [vmem:[%s0 + $0x34] sm:$0xf]
  %v25 = vld [vmem:[%s0 + $0x38] sm:$0xf]
  %v26 = vld [vmem:[%s0 + $0x3c] sm:$0xf]
  %v27 = vunpack.c.l.bf16 %v11
  %v28 = vunpack.c.l.bf16 %v12
  %v29 = vunpack.c.l.bf16 %v13
  %v30 = vunpack.c.l.bf16 %v14
  %v31 = vunpack.c.l.bf16 %v15
  %v32 = vunpack.c.l.bf16 %v16
  %v33 = vunpack.c.l.bf16 %v17
  %v34 = vunpack.c.l.bf16 %v18
  %v35 = vunpack.c.l.bf16 %v19
  %v36 = vunpack.c.l.bf16 %v20
  %v37 = vunpack.c.l.bf16 %v21
  %v38 = vunpack.c.l.bf16 %v22
  %v39 = vunpack.c.l.bf16 %v23
  %v40 = vunpack.c.l.bf16 %v24
  %v41 = vunpack.c.l.bf16 %v25
  %v42 = vunpack.c.l.bf16 %v26
  %v43 = vld [vmem:[%s1] sm:$0x1]
  %v44 = vperm.slane %v43, 0
  %v45 = vmul.f32 %v27, %v44
  %v46 = vmul.f32 %v28, %v44
  %v47 = vmul.f32 %v29, %v44
  %v48 = vmul.f32 %v30, %v44
  %v49 = vmul.f32 %v31, %v44
  %v50 = vmul.f32 %v32, %v44
  %v51 = vmul.f32 %v33, %v44
  %v52 = vmul.f32 %v34, %v44
  %v53 = vmul.f32 %v35, %v44
  %v54 = vmul.f32 %v36, %v44
  %v55 = vmul.f32 %v37, %v44
  %v56 = vmul.f32 %v38, %v44
  %v57 = vmul.f32 %v39, %v44
  %v58 = vmul.f32 %v40, %v44
  %v59 = vmul.f32 %v41, %v44
  %v60 = vmul.f32 %v42, %v44
  %v61 = vadd.f32 %v45, 0.0
  %v62 = vadd.f32 %v46, 0.0
  %v63 = vadd.f32 %v47, 0.0
  %v64 = vadd.f32 %v48, 0.0
  %v65 = vadd.f32 %v49, 0.0
  %v66 = vadd.f32 %v50, 0.0
  %v67 = vadd.f32 %v51, 0.0
  %v68 = vadd.f32 %v52, 0.0
  %v69 = vadd.f32 %v53, 0.0
  %v70 = vadd.f32 %v54, 0.0
  %v71 = vadd.f32 %v55, 0.0
  %v72 = vadd.f32 %v56, 0.0
  %v73 = vadd.f32 %v57, 0.0
  %v74 = vadd.f32 %v58, 0.0
  %v75 = vadd.f32 %v59, 0.0
  %v76 = vadd.f32 %v60, 0.0
  %s77 = scalar_lea.vmem %s0, 64
  %v78 = vld [vmem:[%s77] sm:$0xf]
  %v79 = vld [vmem:[%s77 + $0x4] sm:$0xf]
  %v80 = vld [vmem:[%s77 + $0x8] sm:$0xf]
  %v81 = vld [vmem:[%s77 + $0xc] sm:$0xf]
  %v82 = vld [vmem:[%s77 + $0x10] sm:$0xf]
  %v83 = vld [vmem:[%s77 + $0x14] sm:$0xf]
  %v84 = vld [vmem:[%s77 + $0x18] sm:$0xf]
  %v85 = vld [vmem:[%s77 + $0x1c] sm:$0xf]
  %v86 = vld [vmem:[%s77 + $0x20] sm:$0xf]
  %v87 = vld [vmem:[%s77 + $0x24] sm:$0xf]
  %v88 = vld [vmem:[%s77 + $0x28] sm:$0xf]
  %v89 = vld [vmem:[%s77 + $0x2c] sm:$0xf]
  %v90 = vld [vmem:[%s77 + $0x30] sm:$0xf]
  %v91 = vld [vmem:[%s77 + $0x34] sm:$0xf]
  %v92 = vld [vmem:[%s77 + $0x38] sm:$0xf]
  %v93 = vld [vmem:[%s77 + $0x3c] sm:$0xf]
  %v94 = vunpack.c.l.bf16 %v78
  %v95 = vunpack.c.l.bf16 %v79
  %v96 = vunpack.c.l.bf16 %v80
  %v97 = vunpack.c.l.bf16 %v81
  %v98 = vunpack.c.l.bf16 %v82
  %v99 = vunpack.c.l.bf16 %v83
  %v100 = vunpack.c.l.bf16 %v84
  %v101 = vunpack.c.l.bf16 %v85
  %v102 = vunpack.c.l.bf16 %v86
  %v103 = vunpack.c.l.bf16 %v87
  %v104 = vunpack.c.l.bf16 %v88
  %v105 = vunpack.c.l.bf16 %v89
  %v106 = vunpack.c.l.bf16 %v90
  %v107 = vunpack.c.l.bf16 %v91
  %v108 = vunpack.c.l.bf16 %v92
  %v109 = vunpack.c.l.bf16 %v93
  %v110 = vld [vmem:[%s1 + $0x1] sm:$0x1]
  %v111 = vperm.slane %v110, 0
  %v112 = vmul.f32 %v94, %v111
  %v113 = vmul.f32 %v95, %v111
  %v114 = vmul.f32 %v96, %v111
  %v115 = vmul.f32 %v97, %v111
  %v116 = vmul.f32 %v98, %v111
  %v117 = vmul.f32 %v99, %v111
  %v118 = vmul.f32 %v100, %v111
  %v119 = vmul.f32 %v101, %v111
  %v120 = vmul.f32 %v102, %v111
  %v121 = vmul.f32 %v103, %v111
  %v122 = vmul.f32 %v104, %v111
  %v123 = vmul.f32 %v105, %v111
  %v124 = vmul.f32 %v106, %v111
  %v125 = vmul.f32 %v107, %v111
  %v126 = vmul.f32 %v108, %v111
  %v127 = vmul.f32 %v109, %v111
  %v128 = vadd.f32 %v61, %v112
  %v129 = vadd.f32 %v62, %v113
  %v130 = vadd.f32 %v63, %v114
  %v131 = vadd.f32 %v64, %v115
  %v132 = vadd.f32 %v65, %v116
  %v133 = vadd.f32 %v66, %v117
  %v134 = vadd.f32 %v67, %v118
  %v135 = vadd.f32 %v68, %v119
  %v136 = vadd.f32 %v69, %v120
  %v137 = vadd.f32 %v70, %v121
  %v138 = vadd.f32 %v71, %v122
  %v139 = vadd.f32 %v72, %v123
  %v140 = vadd.f32 %v73, %v124
  %v141 = vadd.f32 %v74, %v125
  %v142 = vadd.f32 %v75, %v126
  %v143 = vadd.f32 %v76, %v127
  %s144 = scalar_lea.vmem %s0, 128
  %v145 = vld [vmem:[%s144] sm:$0xf]
  %v146 = vld [vmem:[%s144 + $0x4] sm:$0xf]
  %v147 = vld [vmem:[%s144 + $0x8] sm:$0xf]
  %v148 = vld [vmem:[%s144 + $0xc] sm:$0xf]
  %v149 = vld [vmem:[%s144 + $0x10] sm:$0xf]
  %v150 = vld [vmem:[%s144 + $0x14] sm:$0xf]
  %v151 = vld [vmem:[%s144 + $0x18] sm:$0xf]
  %v152 = vld [vmem:[%s144 + $0x1c] sm:$0xf]
  %v153 = vld [vmem:[%s144 + $0x20] sm:$0xf]
  %v154 = vld [vmem:[%s144 + $0x24] sm:$0xf]
  %v155 = vld [vmem:[%s144 + $0x28] sm:$0xf]
  %v156 = vld [vmem:[%s144 + $0x2c] sm:$0xf]
  %v157 = vld [vmem:[%s144 + $0x30] sm:$0xf]
  %v158 = vld [vmem:[%s144 + $0x34] sm:$0xf]
  %v159 = vld [vmem:[%s144 + $0x38] sm:$0xf]
  %v160 = vld [vmem:[%s144 + $0x3c] sm:$0xf]
  %v161 = vunpack.c.l.bf16 %v145
  %v162 = vunpack.c.l.bf16 %v146
  %v163 = vunpack.c.l.bf16 %v147
  %v164 = vunpack.c.l.bf16 %v148
  %v165 = vunpack.c.l.bf16 %v149
  %v166 = vunpack.c.l.bf16 %v150
  %v167 = vunpack.c.l.bf16 %v151
  %v168 = vunpack.c.l.bf16 %v152
  %v169 = vunpack.c.l.bf16 %v153
  %v170 = vunpack.c.l.bf16 %v154
  %v171 = vunpack.c.l.bf16 %v155
  %v172 = vunpack.c.l.bf16 %v156
  %v173 = vunpack.c.l.bf16 %v157
  %v174 = vunpack.c.l.bf16 %v158
  %v175 = vunpack.c.l.bf16 %v159
  %v176 = vunpack.c.l.bf16 %v160
  %v177 = vld [vmem:[%s1 + $0x2] sm:$0x1]
  %v178 = vperm.slane %v177, 0
  %v179 = vmul.f32 %v161, %v178
  %v180 = vmul.f32 %v162, %v178
  %v181 = vmul.f32 %v163, %v178
  %v182 = vmul.f32 %v164, %v178
  %v183 = vmul.f32 %v165, %v178
  %v184 = vmul.f32 %v166, %v178
  %v185 = vmul.f32 %v167, %v178
  %v186 = vmul.f32 %v168, %v178
  %v187 = vmul.f32 %v169, %v178
  %v188 = vmul.f32 %v170, %v178
  %v189 = vmul.f32 %v171, %v178
  %v190 = vmul.f32 %v172, %v178
  %v191 = vmul.f32 %v173, %v178
  %v192 = vmul.f32 %v174, %v178
  %v193 = vmul.f32 %v175, %v178
  %v194 = vmul.f32 %v176, %v178
  %v195 = vadd.f32 %v128, %v179
  %v196 = vadd.f32 %v129, %v180
  %v197 = vadd.f32 %v130, %v181
  %v198 = vadd.f32 %v131, %v182
  %v199 = vadd.f32 %v132, %v183
  %v200 = vadd.f32 %v133, %v184
  %v201 = vadd.f32 %v134, %v185
  %v202 = vadd.f32 %v135, %v186
  %v203 = vadd.f32 %v136, %v187
  %v204 = vadd.f32 %v137, %v188
  %v205 = vadd.f32 %v138, %v189
  %v206 = vadd.f32 %v139, %v190
  %v207 = vadd.f32 %v140, %v191
  %v208 = vadd.f32 %v141, %v192
  %v209 = vadd.f32 %v142, %v193
  %v210 = vadd.f32 %v143, %v194
  %s211 = scalar_lea.vmem %s0, 192
  %v212 = vld [vmem:[%s211] sm:$0xf]
  %v213 = vld [vmem:[%s211 + $0x4] sm:$0xf]
  %v214 = vld [vmem:[%s211 + $0x8] sm:$0xf]
  %v215 = vld [vmem:[%s211 + $0xc] sm:$0xf]
  %v216 = vld [vmem:[%s211 + $0x10] sm:$0xf]
  %v217 = vld [vmem:[%s211 + $0x14] sm:$0xf]
  %v218 = vld [vmem:[%s211 + $0x18] sm:$0xf]
  %v219 = vld [vmem:[%s211 + $0x1c] sm:$0xf]
  %v220 = vld [vmem:[%s211 + $0x20] sm:$0xf]
  %v221 = vld [vmem:[%s211 + $0x24] sm:$0xf]
  %v222 = vld [vmem:[%s211 + $0x28] sm:$0xf]
  %v223 = vld [vmem:[%s211 + $0x2c] sm:$0xf]
  %v224 = vld [vmem:[%s211 + $0x30] sm:$0xf]
  %v225 = vld [vmem:[%s211 + $0x34] sm:$0xf]
  %v226 = vld [vmem:[%s211 + $0x38] sm:$0xf]
  %v227 = vld [vmem:[%s211 + $0x3c] sm:$0xf]
  %v228 = vunpack.c.l.bf16 %v212
  %v229 = vunpack.c.l.bf16 %v213
  %v230 = vunpack.c.l.bf16 %v214
  %v231 = vunpack.c.l.bf16 %v215
  %v232 = vunpack.c.l.bf16 %v216
  %v233 = vunpack.c.l.bf16 %v217
  %v234 = vunpack.c.l.bf16 %v218
  %v235 = vunpack.c.l.bf16 %v219
  %v236 = vunpack.c.l.bf16 %v220
  %v237 = vunpack.c.l.bf16 %v221
  %v238 = vunpack.c.l.bf16 %v222
  %v239 = vunpack.c.l.bf16 %v223
  %v240 = vunpack.c.l.bf16 %v224
  %v241 = vunpack.c.l.bf16 %v225
  %v242 = vunpack.c.l.bf16 %v226
  %v243 = vunpack.c.l.bf16 %v227
  %v244 = vld [vmem:[%s1 + $0x3] sm:$0x1]
  %v245 = vperm.slane %v244, 0
  %v246 = vmul.f32 %v228, %v245
  %v247 = vmul.f32 %v229, %v245
  %v248 = vmul.f32 %v230, %v245
  %v249 = vmul.f32 %v231, %v245
  %v250 = vmul.f32 %v232, %v245
  %v251 = vmul.f32 %v233, %v245
  %v252 = vmul.f32 %v234, %v245
  %v253 = vmul.f32 %v235, %v245
  %v254 = vmul.f32 %v236, %v245
  %v255 = vmul.f32 %v237, %v245
  %v256 = vmul.f32 %v238, %v245
  %v257 = vmul.f32 %v239, %v245
  %v258 = vmul.f32 %v240, %v245
  %v259 = vmul.f32 %v241, %v245
  %v260 = vmul.f32 %v242, %v245
  %v261 = vmul.f32 %v243, %v245
  %v262 = vadd.f32 %v195, %v246
  %v263 = vadd.f32 %v196, %v247
  %v264 = vadd.f32 %v197, %v248
  %v265 = vadd.f32 %v198, %v249
  %v266 = vadd.f32 %v199, %v250
  %v267 = vadd.f32 %v200, %v251
  %v268 = vadd.f32 %v201, %v252
  %v269 = vadd.f32 %v202, %v253
  %v270 = vadd.f32 %v203, %v254
  %v271 = vadd.f32 %v204, %v255
  %v272 = vadd.f32 %v205, %v256
  %v273 = vadd.f32 %v206, %v257
  %v274 = vadd.f32 %v207, %v258
  %v275 = vadd.f32 %v208, %v259
  %v276 = vadd.f32 %v209, %v260
  %v277 = vadd.f32 %v210, %v261
  %s278 = scalar_lea.vmem %s0, 256
  %v279 = vld [vmem:[%s278] sm:$0xf]
  %v280 = vld [vmem:[%s278 + $0x4] sm:$0xf]
  %v281 = vld [vmem:[%s278 + $0x8] sm:$0xf]
  %v282 = vld [vmem:[%s278 + $0xc] sm:$0xf]
  %v283 = vld [vmem:[%s278 + $0x10] sm:$0xf]
  %v284 = vld [vmem:[%s278 + $0x14] sm:$0xf]
  %v285 = vld [vmem:[%s278 + $0x18] sm:$0xf]
  %v286 = vld [vmem:[%s278 + $0x1c] sm:$0xf]
  %v287 = vld [vmem:[%s278 + $0x20] sm:$0xf]
  %v288 = vld [vmem:[%s278 + $0x24] sm:$0xf]
  %v289 = vld [vmem:[%s278 + $0x28] sm:$0xf]
  %v290 = vld [vmem:[%s278 + $0x2c] sm:$0xf]
  %v291 = vld [vmem:[%s278 + $0x30] sm:$0xf]
  %v292 = vld [vmem:[%s278 + $0x34] sm:$0xf]
  %v293 = vld [vmem:[%s278 + $0x38] sm:$0xf]
  %v294 = vld [vmem:[%s278 + $0x3c] sm:$0xf]
  %v295 = vunpack.c.l.bf16 %v279
  %v296 = vunpack.c.l.bf16 %v280
  %v297 = vunpack.c.l.bf16 %v281
  %v298 = vunpack.c.l.bf16 %v282
  %v299 = vunpack.c.l.bf16 %v283
  %v300 = vunpack.c.l.bf16 %v284
  %v301 = vunpack.c.l.bf16 %v285
  %v302 = vunpack.c.l.bf16 %v286
  %v303 = vunpack.c.l.bf16 %v287
  %v304 = vunpack.c.l.bf16 %v288
  %v305 = vunpack.c.l.bf16 %v289
  %v306 = vunpack.c.l.bf16 %v290
  %v307 = vunpack.c.l.bf16 %v291
  %v308 = vunpack.c.l.bf16 %v292
  %v309 = vunpack.c.l.bf16 %v293
  %v310 = vunpack.c.l.bf16 %v294
  %v311 = vld [vmem:[%s1 + $0x4] sm:$0x1]
  %v312 = vperm.slane %v311, 0
  %v313 = vmul.f32 %v295, %v312
  %v314 = vmul.f32 %v296, %v312
  %v315 = vmul.f32 %v297, %v312
  %v316 = vmul.f32 %v298, %v312
  %v317 = vmul.f32 %v299, %v312
  %v318 = vmul.f32 %v300, %v312
  %v319 = vmul.f32 %v301, %v312
  %v320 = vmul.f32 %v302, %v312
  %v321 = vmul.f32 %v303, %v312
  %v322 = vmul.f32 %v304, %v312
  %v323 = vmul.f32 %v305, %v312
  %v324 = vmul.f32 %v306, %v312
  %v325 = vmul.f32 %v307, %v312
  %v326 = vmul.f32 %v308, %v312
  %v327 = vmul.f32 %v309, %v312
  %v328 = vmul.f32 %v310, %v312
  %v329 = vadd.f32 %v262, %v313
  %v330 = vadd.f32 %v263, %v314
  %v331 = vadd.f32 %v264, %v315
  %v332 = vadd.f32 %v265, %v316
  %v333 = vadd.f32 %v266, %v317
  %v334 = vadd.f32 %v267, %v318
  %v335 = vadd.f32 %v268, %v319
  %v336 = vadd.f32 %v269, %v320
  %v337 = vadd.f32 %v270, %v321
  %v338 = vadd.f32 %v271, %v322
  %v339 = vadd.f32 %v272, %v323
  %v340 = vadd.f32 %v273, %v324
  %v341 = vadd.f32 %v274, %v325
  %v342 = vadd.f32 %v275, %v326
  %v343 = vadd.f32 %v276, %v327
  %v344 = vadd.f32 %v277, %v328
  %s345 = scalar_lea.vmem %s0, 320
  %v346 = vld [vmem:[%s345] sm:$0xf]
  %v347 = vld [vmem:[%s345 + $0x4] sm:$0xf]
  %v348 = vld [vmem:[%s345 + $0x8] sm:$0xf]
  %v349 = vld [vmem:[%s345 + $0xc] sm:$0xf]
  %v350 = vld [vmem:[%s345 + $0x10] sm:$0xf]
  %v351 = vld [vmem:[%s345 + $0x14] sm:$0xf]
  %v352 = vld [vmem:[%s345 + $0x18] sm:$0xf]
  %v353 = vld [vmem:[%s345 + $0x1c] sm:$0xf]
  %v354 = vld [vmem:[%s345 + $0x20] sm:$0xf]
  %v355 = vld [vmem:[%s345 + $0x24] sm:$0xf]
  %v356 = vld [vmem:[%s345 + $0x28] sm:$0xf]
  %v357 = vld [vmem:[%s345 + $0x2c] sm:$0xf]
  %v358 = vld [vmem:[%s345 + $0x30] sm:$0xf]
  %v359 = vld [vmem:[%s345 + $0x34] sm:$0xf]
  %v360 = vld [vmem:[%s345 + $0x38] sm:$0xf]
  %v361 = vld [vmem:[%s345 + $0x3c] sm:$0xf]
  %v362 = vunpack.c.l.bf16 %v346
  %v363 = vunpack.c.l.bf16 %v347
  %v364 = vunpack.c.l.bf16 %v348
  %v365 = vunpack.c.l.bf16 %v349
  %v366 = vunpack.c.l.bf16 %v350
  %v367 = vunpack.c.l.bf16 %v351
  %v368 = vunpack.c.l.bf16 %v352
  %v369 = vunpack.c.l.bf16 %v353
  %v370 = vunpack.c.l.bf16 %v354
  %v371 = vunpack.c.l.bf16 %v355
  %v372 = vunpack.c.l.bf16 %v356
  %v373 = vunpack.c.l.bf16 %v357
  %v374 = vunpack.c.l.bf16 %v358
  %v375 = vunpack.c.l.bf16 %v359
  %v376 = vunpack.c.l.bf16 %v360
  %v377 = vunpack.c.l.bf16 %v361
  %v378 = vld [vmem:[%s1 + $0x5] sm:$0x1]
  %v379 = vperm.slane %v378, 0
  %v380 = vmul.f32 %v362, %v379
  %v381 = vmul.f32 %v363, %v379
  %v382 = vmul.f32 %v364, %v379
  %v383 = vmul.f32 %v365, %v379
  %v384 = vmul.f32 %v366, %v379
  %v385 = vmul.f32 %v367, %v379
  %v386 = vmul.f32 %v368, %v379
  %v387 = vmul.f32 %v369, %v379
  %v388 = vmul.f32 %v370, %v379
  %v389 = vmul.f32 %v371, %v379
  %v390 = vmul.f32 %v372, %v379
  %v391 = vmul.f32 %v373, %v379
  %v392 = vmul.f32 %v374, %v379
  %v393 = vmul.f32 %v375, %v379
  %v394 = vmul.f32 %v376, %v379
  %v395 = vmul.f32 %v377, %v379
  %v396 = vadd.f32 %v329, %v380
  %v397 = vadd.f32 %v330, %v381
  %v398 = vadd.f32 %v331, %v382
  %v399 = vadd.f32 %v332, %v383
  %v400 = vadd.f32 %v333, %v384
  %v401 = vadd.f32 %v334, %v385
  %v402 = vadd.f32 %v335, %v386
  %v403 = vadd.f32 %v336, %v387
  %v404 = vadd.f32 %v337, %v388
  %v405 = vadd.f32 %v338, %v389
  %v406 = vadd.f32 %v339, %v390
  %v407 = vadd.f32 %v340, %v391
  %v408 = vadd.f32 %v341, %v392
  %v409 = vadd.f32 %v342, %v393
  %v410 = vadd.f32 %v343, %v394
  %v411 = vadd.f32 %v344, %v395
  %s412 = scalar_lea.vmem %s0, 384
  %v413 = vld [vmem:[%s412] sm:$0xf]
  %v414 = vld [vmem:[%s412 + $0x4] sm:$0xf]
  %v415 = vld [vmem:[%s412 + $0x8] sm:$0xf]
  %v416 = vld [vmem:[%s412 + $0xc] sm:$0xf]
  %v417 = vld [vmem:[%s412 + $0x10] sm:$0xf]
  %v418 = vld [vmem:[%s412 + $0x14] sm:$0xf]
  %v419 = vld [vmem:[%s412 + $0x18] sm:$0xf]
  %v420 = vld [vmem:[%s412 + $0x1c] sm:$0xf]
  %v421 = vld [vmem:[%s412 + $0x20] sm:$0xf]
  %v422 = vld [vmem:[%s412 + $0x24] sm:$0xf]
  %v423 = vld [vmem:[%s412 + $0x28] sm:$0xf]
  %v424 = vld [vmem:[%s412 + $0x2c] sm:$0xf]
  %v425 = vld [vmem:[%s412 + $0x30] sm:$0xf]
  %v426 = vld [vmem:[%s412 + $0x34] sm:$0xf]
  %v427 = vld [vmem:[%s412 + $0x38] sm:$0xf]
  %v428 = vld [vmem:[%s412 + $0x3c] sm:$0xf]
  %v429 = vunpack.c.l.bf16 %v413
  %v430 = vunpack.c.l.bf16 %v414
  %v431 = vunpack.c.l.bf16 %v415
  %v432 = vunpack.c.l.bf16 %v416
  %v433 = vunpack.c.l.bf16 %v417
  %v434 = vunpack.c.l.bf16 %v418
  %v435 = vunpack.c.l.bf16 %v419
  %v436 = vunpack.c.l.bf16 %v420
  %v437 = vunpack.c.l.bf16 %v421
  %v438 = vunpack.c.l.bf16 %v422
  %v439 = vunpack.c.l.bf16 %v423
  %v440 = vunpack.c.l.bf16 %v424
  %v441 = vunpack.c.l.bf16 %v425
  %v442 = vunpack.c.l.bf16 %v426
  %v443 = vunpack.c.l.bf16 %v427
  %v444 = vunpack.c.l.bf16 %v428
  %v445 = vld [vmem:[%s1 + $0x6] sm:$0x1]
  %v446 = vperm.slane %v445, 0
  %v447 = vmul.f32 %v429, %v446
  %v448 = vmul.f32 %v430, %v446
  %v449 = vmul.f32 %v431, %v446
  %v450 = vmul.f32 %v432, %v446
  %v451 = vmul.f32 %v433, %v446
  %v452 = vmul.f32 %v434, %v446
  %v453 = vmul.f32 %v435, %v446
  %v454 = vmul.f32 %v436, %v446
  %v455 = vmul.f32 %v437, %v446
  %v456 = vmul.f32 %v438, %v446
  %v457 = vmul.f32 %v439, %v446
  %v458 = vmul.f32 %v440, %v446
  %v459 = vmul.f32 %v441, %v446
  %v460 = vmul.f32 %v442, %v446
  %v461 = vmul.f32 %v443, %v446
  %v462 = vmul.f32 %v444, %v446
  %v463 = vadd.f32 %v396, %v447
  %v464 = vadd.f32 %v397, %v448
  %v465 = vadd.f32 %v398, %v449
  %v466 = vadd.f32 %v399, %v450
  %v467 = vadd.f32 %v400, %v451
  %v468 = vadd.f32 %v401, %v452
  %v469 = vadd.f32 %v402, %v453
  %v470 = vadd.f32 %v403, %v454
  %v471 = vadd.f32 %v404, %v455
  %v472 = vadd.f32 %v405, %v456
  %v473 = vadd.f32 %v406, %v457
  %v474 = vadd.f32 %v407, %v458
  %v475 = vadd.f32 %v408, %v459
  %v476 = vadd.f32 %v409, %v460
  %v477 = vadd.f32 %v410, %v461
  %v478 = vadd.f32 %v411, %v462
  %s479 = scalar_lea.vmem %s0, 448
  %v480 = vld [vmem:[%s479] sm:$0xf]
  %v481 = vld [vmem:[%s479 + $0x4] sm:$0xf]
  %v482 = vld [vmem:[%s479 + $0x8] sm:$0xf]
  %v483 = vld [vmem:[%s479 + $0xc] sm:$0xf]
  %v484 = vld [vmem:[%s479 + $0x10] sm:$0xf]
  %v485 = vld [vmem:[%s479 + $0x14] sm:$0xf]
  %v486 = vld [vmem:[%s479 + $0x18] sm:$0xf]
  %v487 = vld [vmem:[%s479 + $0x1c] sm:$0xf]
  %v488 = vld [vmem:[%s479 + $0x20] sm:$0xf]
  %v489 = vld [vmem:[%s479 + $0x24] sm:$0xf]
  %v490 = vld [vmem:[%s479 + $0x28] sm:$0xf]
  %v491 = vld [vmem:[%s479 + $0x2c] sm:$0xf]
  %v492 = vld [vmem:[%s479 + $0x30] sm:$0xf]
  %v493 = vld [vmem:[%s479 + $0x34] sm:$0xf]
  %v494 = vld [vmem:[%s479 + $0x38] sm:$0xf]
  %v495 = vld [vmem:[%s479 + $0x3c] sm:$0xf]
  %v496 = vunpack.c.l.bf16 %v480
  %v497 = vunpack.c.l.bf16 %v481
  %v498 = vunpack.c.l.bf16 %v482
  %v499 = vunpack.c.l.bf16 %v483
  %v500 = vunpack.c.l.bf16 %v484
  %v501 = vunpack.c.l.bf16 %v485
  %v502 = vunpack.c.l.bf16 %v486
  %v503 = vunpack.c.l.bf16 %v487
  %v504 = vunpack.c.l.bf16 %v488
  %v505 = vunpack.c.l.bf16 %v489
  %v506 = vunpack.c.l.bf16 %v490
  %v507 = vunpack.c.l.bf16 %v491
  %v508 = vunpack.c.l.bf16 %v492
  %v509 = vunpack.c.l.bf16 %v493
  %v510 = vunpack.c.l.bf16 %v494
  %v511 = vunpack.c.l.bf16 %v495
  %v512 = vld [vmem:[%s1 + $0x7] sm:$0x1]
  %v513 = vperm.slane %v512, 0
  %v514 = vmul.f32 %v496, %v513
  %v515 = vmul.f32 %v497, %v513
  %v516 = vmul.f32 %v498, %v513
  %v517 = vmul.f32 %v499, %v513
  %v518 = vmul.f32 %v500, %v513
  %v519 = vmul.f32 %v501, %v513
  %v520 = vmul.f32 %v502, %v513
  %v521 = vmul.f32 %v503, %v513
  %v522 = vmul.f32 %v504, %v513
  %v523 = vmul.f32 %v505, %v513
  %v524 = vmul.f32 %v506, %v513
  %v525 = vmul.f32 %v507, %v513
  %v526 = vmul.f32 %v508, %v513
  %v527 = vmul.f32 %v509, %v513
  %v528 = vmul.f32 %v510, %v513
  %v529 = vmul.f32 %v511, %v513
  %v530 = vadd.f32 %v463, %v514
  %v531 = vadd.f32 %v464, %v515
  %v532 = vadd.f32 %v465, %v516
  %v533 = vadd.f32 %v466, %v517
  %v534 = vadd.f32 %v467, %v518
  %v535 = vadd.f32 %v468, %v519
  %v536 = vadd.f32 %v469, %v520
  %v537 = vadd.f32 %v470, %v521
  %v538 = vadd.f32 %v471, %v522
  %v539 = vadd.f32 %v472, %v523
  %v540 = vadd.f32 %v473, %v524
  %v541 = vadd.f32 %v474, %v525
  %v542 = vadd.f32 %v475, %v526
  %v543 = vadd.f32 %v476, %v527
  %v544 = vadd.f32 %v477, %v528
  %v545 = vadd.f32 %v478, %v529
  %s546 = scalar_lea.vmem %s0, 512
  %v547 = vld [vmem:[%s546] sm:$0xf]
  %v548 = vld [vmem:[%s546 + $0x4] sm:$0xf]
  %v549 = vld [vmem:[%s546 + $0x8] sm:$0xf]
  %v550 = vld [vmem:[%s546 + $0xc] sm:$0xf]
  %v551 = vld [vmem:[%s546 + $0x10] sm:$0xf]
  %v552 = vld [vmem:[%s546 + $0x14] sm:$0xf]
  %v553 = vld [vmem:[%s546 + $0x18] sm:$0xf]
  %v554 = vld [vmem:[%s546 + $0x1c] sm:$0xf]
  %v555 = vld [vmem:[%s546 + $0x20] sm:$0xf]
  %v556 = vld [vmem:[%s546 + $0x24] sm:$0xf]
  %v557 = vld [vmem:[%s546 + $0x28] sm:$0xf]
  %v558 = vld [vmem:[%s546 + $0x2c] sm:$0xf]
  %v559 = vld [vmem:[%s546 + $0x30] sm:$0xf]
  %v560 = vld [vmem:[%s546 + $0x34] sm:$0xf]
  %v561 = vld [vmem:[%s546 + $0x38] sm:$0xf]
  %v562 = vld [vmem:[%s546 + $0x3c] sm:$0xf]
  %v563 = vunpack.c.l.bf16 %v547
  %v564 = vunpack.c.l.bf16 %v548
  %v565 = vunpack.c.l.bf16 %v549
  %v566 = vunpack.c.l.bf16 %v550
  %v567 = vunpack.c.l.bf16 %v551
  %v568 = vunpack.c.l.bf16 %v552
  %v569 = vunpack.c.l.bf16 %v553
  %v570 = vunpack.c.l.bf16 %v554
  %v571 = vunpack.c.l.bf16 %v555
  %v572 = vunpack.c.l.bf16 %v556
  %v573 = vunpack.c.l.bf16 %v557
  %v574 = vunpack.c.l.bf16 %v558
  %v575 = vunpack.c.l.bf16 %v559
  %v576 = vunpack.c.l.bf16 %v560
  %v577 = vunpack.c.l.bf16 %v561
  %v578 = vunpack.c.l.bf16 %v562
  %v579 = vld [vmem:[%s1 + $0x8] sm:$0x1]
  %v580 = vperm.slane %v579, 0
  %v581 = vmul.f32 %v563, %v580
  %v582 = vmul.f32 %v564, %v580
  %v583 = vmul.f32 %v565, %v580
  %v584 = vmul.f32 %v566, %v580
  %v585 = vmul.f32 %v567, %v580
  %v586 = vmul.f32 %v568, %v580
  %v587 = vmul.f32 %v569, %v580
  %v588 = vmul.f32 %v570, %v580
  %v589 = vmul.f32 %v571, %v580
  %v590 = vmul.f32 %v572, %v580
  %v591 = vmul.f32 %v573, %v580
  %v592 = vmul.f32 %v574, %v580
  %v593 = vmul.f32 %v575, %v580
  %v594 = vmul.f32 %v576, %v580
  %v595 = vmul.f32 %v577, %v580
  %v596 = vmul.f32 %v578, %v580
  %v597 = vadd.f32 %v530, %v581
  %v598 = vadd.f32 %v531, %v582
  %v599 = vadd.f32 %v532, %v583
  %v600 = vadd.f32 %v533, %v584
  %v601 = vadd.f32 %v534, %v585
  %v602 = vadd.f32 %v535, %v586
  %v603 = vadd.f32 %v536, %v587
  %v604 = vadd.f32 %v537, %v588
  %v605 = vadd.f32 %v538, %v589
  %v606 = vadd.f32 %v539, %v590
  %v607 = vadd.f32 %v540, %v591
  %v608 = vadd.f32 %v541, %v592
  %v609 = vadd.f32 %v542, %v593
  %v610 = vadd.f32 %v543, %v594
  %v611 = vadd.f32 %v544, %v595
  %v612 = vadd.f32 %v545, %v596
  %vm613 = vcmp.ge.f32.partialorder %v597, 0.0
  %vm614 = vcmp.ge.f32.partialorder %v598, 0.0
  %vm615 = vcmp.ge.f32.partialorder %v599, 0.0
  %vm616 = vcmp.ge.f32.partialorder %v600, 0.0
  %vm617 = vcmp.ge.f32.partialorder %v601, 0.0
  %vm618 = vcmp.ge.f32.partialorder %v602, 0.0
  %vm619 = vcmp.ge.f32.partialorder %v603, 0.0
  %vm620 = vcmp.ge.f32.partialorder %v604, 0.0
  %vm621 = vcmp.ge.f32.partialorder %v605, 0.0
  %vm622 = vcmp.ge.f32.partialorder %v606, 0.0
  %vm623 = vcmp.ge.f32.partialorder %v607, 0.0
  %vm624 = vcmp.ge.f32.partialorder %v608, 0.0
  %vm625 = vcmp.ge.f32.partialorder %v609, 0.0
  %vm626 = vcmp.ge.f32.partialorder %v610, 0.0
  %vm627 = vcmp.ge.f32.partialorder %v611, 0.0
  %vm628 = vcmp.ge.f32.partialorder %v612, 0.0
  %v629 = vmul.f32 %v597, 0.2
  %v630 = vmul.f32 %v598, 0.2
  %v631 = vmul.f32 %v599, 0.2
  %v632 = vmul.f32 %v600, 0.2
  %v633 = vmul.f32 %v601, 0.2
  %v634 = vmul.f32 %v602, 0.2
  %v635 = vmul.f32 %v603, 0.2
  %v636 = vmul.f32 %v604, 0.2
  %v637 = vmul.f32 %v605, 0.2
  %v638 = vmul.f32 %v606, 0.2
  %v639 = vmul.f32 %v607, 0.2
  %v640 = vmul.f32 %v608, 0.2
  %v641 = vmul.f32 %v609, 0.2
  %v642 = vmul.f32 %v610, 0.2
  %v643 = vmul.f32 %v611, 0.2
  %v644 = vmul.f32 %v612, 0.2
  %v645 = vsel %vm613, %v597, %v629
  %v646 = vsel %vm614, %v598, %v630
  %v647 = vsel %vm615, %v599, %v631
  %v648 = vsel %vm616, %v600, %v632
  %v649 = vsel %vm617, %v601, %v633
  %v650 = vsel %vm618, %v602, %v634
  %v651 = vsel %vm619, %v603, %v635
  %v652 = vsel %vm620, %v604, %v636
  %v653 = vsel %vm621, %v605, %v637
  %v654 = vsel %vm622, %v606, %v638
  %v655 = vsel %vm623, %v607, %v639
  %v656 = vsel %vm624, %v608, %v640
  %v657 = vsel %vm625, %v609, %v641
  %v658 = vsel %vm626, %v610, %v642
  %v659 = vsel %vm627, %v611, %v643
  %v660 = vsel %vm628, %v612, %v644
  %661 = vst [vmem:[%s2] sm:$0xff] %v645
  %662 = vst [vmem:[%s2 + $0x8] sm:$0xff] %v646
  %663 = vst [vmem:[%s2 + $0x10] sm:$0xff] %v647
  %664 = vst [vmem:[%s2 + $0x18] sm:$0xff] %v648
  %665 = vst [vmem:[%s2 + $0x20] sm:$0xff] %v649
  %666 = vst [vmem:[%s2 + $0x28] sm:$0xff] %v650
  %667 = vst [vmem:[%s2 + $0x30] sm:$0xff] %v651
  %668 = vst [vmem:[%s2 + $0x38] sm:$0xff] %v652
  %669 = vst [vmem:[%s2 + $0x40] sm:$0xff] %v653
  %670 = vst [vmem:[%s2 + $0x48] sm:$0xff] %v654
  %671 = vst [vmem:[%s2 + $0x50] sm:$0xff] %v655
  %672 = vst [vmem:[%s2 + $0x58] sm:$0xff] %v656
  %673 = vst [vmem:[%s2 + $0x60] sm:$0xff] %v657
  %674 = vst [vmem:[%s2 + $0x68] sm:$0xff] %v658
  %675 = vst [vmem:[%s2 + $0x70] sm:$0xff] %v659
  %676 = vst [vmem:[%s2 + $0x78] sm:$0xff] %v660
  // Predicated region
  $region10: #{encoder_forward.8} parent=0 // pred_check
    _
  $region11: #{encoder_forward.8} parent=0 // pred_check_branch
    %678 = sbr.rel (0) target = $region13
  $region12: #{encoder_forward.8} parent=0 // pred_region
    _
  $region13: #{encoder_forward.8} parent=0 // pred_fallthru
    _
  // Predicated region
  $region14: #{encoder_forward.8} parent=0 // pred_check
    _
  $region15: #{encoder_forward.8} parent=0 // pred_check_branch
    %680 = sbr.rel (0) target = $region17
  $region16: #{encoder_forward.8} parent=0 // pred_region
    _
  $region17: #{encoder_forward.8} parent=0 // pred_fallthru
    _

// kernel: encoder_forward.9
$region0: #{encoder_forward.9}
  #allocation0 [shape = 'u32[]', space=smem, size = 0x4, offset = 0x4, fixed_abs, tag = 'smem constant byte address 0x4 - core index']
  #allocation1 [shape = 'u32[72,128]{1,0:T(1,128)}', space=vmem, size = 0x9000, scoped, tag = 'internal scratch']
  %s0 = inlined_call_operand.vmem [shape: bf16[128,128], index: 0, kind: input, shape index: {}]
  %s1 = inlined_call_operand.vmem [shape: bf16[128,128], index: 1, kind: input, shape index: {}]
  %s2 = inlined_call_operand.vmem [shape: bf16[32,128], index: 2, kind: input, shape index: {}]
  %s3 = inlined_call_operand.vmem [shape: bf16[128,128], index: 3, kind: input, shape index: {}]
  %s4 = inlined_call_operand.hbm [shape: f32[128,128], index: 4, kind: output, shape index: {0}]
  %s5 = inlined_call_operand.hbm [shape: f32[32,128], index: 5, kind: output, shape index: {1}]
  %6 = xla_tuple %s4, %s5
  %s7 = sld [smem:[#allocation0]]
  $region34: #{encoder_forward.9} parent=0
    _
  %s9 = ssub.s32 1, %s7
  %s10 = scalar_select 0, %s9, %s7
  $region1: #{encoder_forward.9} parent=0
    #allocation2 [shape = 'u8[65536]{0}', space=vmem, size = 0x10000, scoped, tag = 'output window, operand 0, single buffered']
    #allocation3 [shape = 's32[1]{0}', space=sflag, size = 0x4, scoped, tag = 'scoped memory for encoder_forward.9']
    #allocation4 [shape = 'u8[16384]{0}', space=vmem, size = 0x4000, scoped, tag = 'output window, operand 1, single buffered']
    #allocation5 [shape = 's32[1]{0}', space=sflag, size = 0x4, scoped, tag = 'scoped memory for encoder_forward.9']
    %11 = vsyncpa [#allocation3], 0
    %12 = vsyncpa [#allocation5], 0
    // Predicated region
    $region2: #{encoder_forward.9} parent=1 // pred_check
      _
    $region3: #{encoder_forward.9} parent=1 // pred_check_branch
      %14 = sbr.rel (0) target = $region5
    $region4: #{encoder_forward.9} parent=1 // pred_region
      _
    $region5: #{encoder_forward.9} parent=1 // pred_fallthru
      _
    // Predicated region
    $region6: #{encoder_forward.9} parent=1 // pred_check
      _
    $region7: #{encoder_forward.9} parent=1 // pred_check_branch
      %16 = sbr.rel (0) target = $region9
    $region8: #{encoder_forward.9} parent=1 // pred_region
      _
    $region9: #{encoder_forward.9} parent=1 // pred_fallthru
      _
    // Predicated region
    $region10: #{encoder_forward.9} parent=1 // pred_check
      _
    $region11: #{encoder_forward.9} parent=1 // pred_check_branch
      %18 = sbr.rel (0) target = $region13
    $region12: #{encoder_forward.9} parent=1 // pred_region
      _
    $region13: #{encoder_forward.9} parent=1 // pred_fallthru
      _
    // Predicated region
    $region14: #{encoder_forward.9} parent=1 // pred_check
      _
    $region15: #{encoder_forward.9} parent=1 // pred_check_branch
      %20 = sbr.rel (0) target = $region17
    $region16: #{encoder_forward.9} parent=1 // pred_region
      _
    $region17: #{encoder_forward.9} parent=1 // pred_fallthru
      _
    %v21 = vld [vmem:[%s0] sm:$0xf]
    %v22 = vld [vmem:[%s0 + $0x4] sm:$0xf]
    %v23 = vld [vmem:[%s0 + $0x8] sm:$0xf]
    %v24 = vld [vmem:[%s0 + $0xc] sm:$0xf]
    %v25 = vld [vmem:[%s0 + $0x10] sm:$0xf]
    %v26 = vld [vmem:[%s0 + $0x14] sm:$0xf]
    %v27 = vld [vmem:[%s0 + $0x18] sm:$0xf]
    %v28 = vld [vmem:[%s0 + $0x1c] sm:$0xf]
    %v29 = vld [vmem:[%s0 + $0x20] sm:$0xf]
    %v30 = vld [vmem:[%s0 + $0x24] sm:$0xf]
    %v31 = vld [vmem:[%s0 + $0x28] sm:$0xf]
    %v32 = vld [vmem:[%s0 + $0x2c] sm:$0xf]
    %v33 = vld [vmem:[%s0 + $0x30] sm:$0xf]
    %v34 = vld [vmem:[%s0 + $0x34] sm:$0xf]
    %v35 = vld [vmem:[%s0 + $0x38] sm:$0xf]
    %v36 = vld [vmem:[%s0 + $0x3c] sm:$0xf]
    %v37 = vld [vmem:[%s1] sm:$0xf]
    %v38 = vld [vmem:[%s1 + $0x4] sm:$0xf]
    %v39 = vld [vmem:[%s1 + $0x8] sm:$0xf]
    %v40 = vld [vmem:[%s1 + $0xc] sm:$0xf]
    %v41 = vld [vmem:[%s1 + $0x10] sm:$0xf]
    %v42 = vld [vmem:[%s1 + $0x14] sm:$0xf]
    %v43 = vld [vmem:[%s1 + $0x18] sm:$0xf]
    %v44 = vld [vmem:[%s1 + $0x1c] sm:$0xf]
    %v45 = vld [vmem:[%s1 + $0x20] sm:$0xf]
    %v46 = vld [vmem:[%s1 + $0x24] sm:$0xf]
    %v47 = vld [vmem:[%s1 + $0x28] sm:$0xf]
    %v48 = vld [vmem:[%s1 + $0x2c] sm:$0xf]
    %v49 = vld [vmem:[%s1 + $0x30] sm:$0xf]
    %v50 = vld [vmem:[%s1 + $0x34] sm:$0xf]
    %v51 = vld [vmem:[%s1 + $0x38] sm:$0xf]
    %v52 = vld [vmem:[%s1 + $0x3c] sm:$0xf]
    %v69 = vunpack.c.l.b16 %v21
    %v70 = vunpack.c.l.b16 %v22
    %v71 = vunpack.c.l.b16 %v23
    %v72 = vunpack.c.l.b16 %v24
    %v73 = vunpack.c.l.b16 %v25
    %v74 = vunpack.c.l.b16 %v26
    %v75 = vunpack.c.l.b16 %v27
    %v76 = vunpack.c.l.b16 %v28
    %v77 = vunpack.c.l.b16 %v29
    %v78 = vunpack.c.l.b16 %v30
    %v79 = vunpack.c.l.b16 %v31
    %v80 = vunpack.c.l.b16 %v32
    %v81 = vunpack.c.l.b16 %v33
    %v82 = vunpack.c.l.b16 %v34
    %v83 = vunpack.c.l.b16 %v35
    %v84 = vunpack.c.l.b16 %v36
    %v85 = vpack.c.b16 %v70, %v69
    %v86 = vpack.c.b16 %v72, %v71
    %v87 = vpack.c.b16 %v74, %v73
    %v88 = vpack.c.b16 %v76, %v75
    %v89 = vpack.c.b16 %v78, %v77
    %v90 = vpack.c.b16 %v80, %v79
    %v91 = vpack.c.b16 %v82, %v81
    %v92 = vpack.c.b16 %v84, %v83
    %v117 = vunpack.c.l.b16 %v37
    %v118 = vunpack.c.l.b16 %v38
    %v119 = vunpack.c.l.b16 %v39
    %v120 = vunpack.c.l.b16 %v40
    %v121 = vunpack.c.l.b16 %v41
    %v122 = vunpack.c.l.b16 %v42
    %v123 = vunpack.c.l.b16 %v43
    %v124 = vunpack.c.l.b16 %v44
    %v125 = vunpack.c.l.b16 %v45
    %v126 = vunpack.c.l.b16 %v46
    %v127 = vunpack.c.l.b16 %v47
    %v128 = vunpack.c.l.b16 %v48
    %v129 = vunpack.c.l.b16 %v49
    %v130 = vunpack.c.l.b16 %v50
    %v131 = vunpack.c.l.b16 %v51
    %v132 = vunpack.c.l.b16 %v52
    %v133 = vpack.c.b16 %v118, %v117
    %v134 = vpack.c.b16 %v120, %v119
    %v135 = vpack.c.b16 %v122, %v121
    %v136 = vpack.c.b16 %v124, %v123
    %v137 = vpack.c.b16 %v126, %v125
    %v138 = vpack.c.b16 %v128, %v127
    %v139 = vpack.c.b16 %v130, %v129
    %v140 = vpack.c.b16 %v132, %v131
    %149 = vmatpush.bf16.msra.mxu0 %v140
    %150 = vmatpush.bf16.msra.mxu0 %v139
    %151 = vmatpush.bf16.msra.mxu0 %v138
    %152 = vmatpush.bf16.msra.mxu0 %v137
    %153 = vmatpush.bf16.msra.mxu0 %v136
    %154 = vmatpush.bf16.msra.mxu0 %v135
    %155 = vmatpush.bf16.msra.mxu0 %v134
    %156 = vmatpush.bf16.msra.mxu0 %v133
    %157 = vmatmul.bf16.gmra.mxu0 %v85
    %v158 = vpop.f32.mrf.mxu0
    %v159 = vadd.f32 0.0, %v158
    %v160 = vpop.f32.mrf.mxu0
    %v161 = vadd.f32 0.0, %v160
    %162 = vmatmul.bf16.gmra.mxu0 %v86
    %v163 = vpop.f32.mrf.mxu0
    %v164 = vadd.f32 0.0, %v163
    %v165 = vpop.f32.mrf.mxu0
    %v166 = vadd.f32 0.0, %v165
    %167 = vmatmul.bf16.gmra.mxu0 %v87
    %v168 = vpop.f32.mrf.mxu0
    %v169 = vadd.f32 0.0, %v168
    %v170 = vpop.f32.mrf.mxu0
    %v171 = vadd.f32 0.0, %v170
    %172 = vmatmul.bf16.gmra.mxu0 %v88
    %v173 = vpop.f32.mrf.mxu0
    %v174 = vadd.f32 0.0, %v173
    %v175 = vpop.f32.mrf.mxu0
    %v176 = vadd.f32 0.0, %v175
    %177 = vmatmul.bf16.gmra.mxu0 %v89
    %v178 = vpop.f32.mrf.mxu0
    %v179 = vadd.f32 0.0, %v178
    %v180 = vpop.f32.mrf.mxu0
    %v181 = vadd.f32 0.0, %v180
    %182 = vmatmul.bf16.gmra.mxu0 %v90
    %v183 = vpop.f32.mrf.mxu0
    %v184 = vadd.f32 0.0, %v183
    %v185 = vpop.f32.mrf.mxu0
    %v186 = vadd.f32 0.0, %v185
    %187 = vmatmul.bf16.gmra.mxu0 %v91
    %v188 = vpop.f32.mrf.mxu0
    %v189 = vadd.f32 0.0, %v188
    %v190 = vpop.f32.mrf.mxu0
    %v191 = vadd.f32 0.0, %v190
    %192 = vmatmul.bf16.gmra.mxu0 %v92
    %v193 = vpop.f32.mrf.mxu0
    %v194 = vadd.f32 0.0, %v193
    %v195 = vpop.f32.mrf.mxu0
    %v196 = vadd.f32 0.0, %v195
    %197 = vdwg.mxu0
    %v198 = vld [vmem:[%s2] sm:$0xf]
    %v199 = vld [vmem:[%s2 + $0x4] sm:$0xf]
    %v200 = vld [vmem:[%s2 + $0x8] sm:$0xf]
    %v201 = vld [vmem:[%s2 + $0xc] sm:$0xf]
    %v202 = vld [vmem:[%s3] sm:$0xf]
    %v203 = vld [vmem:[%s3 + $0x4] sm:$0xf]
    %v204 = vld [vmem:[%s3 + $0x8] sm:$0xf]
    %v205 = vld [vmem:[%s3 + $0xc] sm:$0xf]
    %v206 = vld [vmem:[%s3 + $0x10] sm:$0xf]
    %v207 = vld [vmem:[%s3 + $0x14] sm:$0xf]
    %v208 = vld [vmem:[%s3 + $0x18] sm:$0xf]
    %v209 = vld [vmem:[%s3 + $0x1c] sm:$0xf]
    %v210 = vld [vmem:[%s3 + $0x20] sm:$0xf]
    %v211 = vld [vmem:[%s3 + $0x24] sm:$0xf]
    %v212 = vld [vmem:[%s3 + $0x28] sm:$0xf]
    %v213 = vld [vmem:[%s3 + $0x2c] sm:$0xf]
    %v214 = vld [vmem:[%s3 + $0x30] sm:$0xf]
    %v215 = vld [vmem:[%s3 + $0x34] sm:$0xf]
    %v216 = vld [vmem:[%s3 + $0x38] sm:$0xf]
    %v217 = vld [vmem:[%s3 + $0x3c] sm:$0xf]
    %v222 = vunpack.c.l.b16 %v198
    %v223 = vunpack.c.l.b16 %v199
    %v224 = vunpack.c.l.b16 %v200
    %v225 = vunpack.c.l.b16 %v201
    %v226 = vpack.c.b16 %v223, %v222
    %v227 = vpack.c.b16 %v225, %v224
    %v246 = vunpack.c.l.b16 %v202
    %v247 = vunpack.c.l.b16 %v203
    %v248 = vunpack.c.l.b16 %v204
    %v249 = vunpack.c.l.b16 %v205
    %v250 = vunpack.c.l.b16 %v206
    %v251 = vunpack.c.l.b16 %v207
    %v252 = vunpack.c.l.b16 %v208
    %v253 = vunpack.c.l.b16 %v209
    %v254 = vunpack.c.l.b16 %v210
    %v255 = vunpack.c.l.b16 %v211
    %v256 = vunpack.c.l.b16 %v212
    %v257 = vunpack.c.l.b16 %v213
    %v258 = vunpack.c.l.b16 %v214
    %v259 = vunpack.c.l.b16 %v215
    %v260 = vunpack.c.l.b16 %v216
    %v261 = vunpack.c.l.b16 %v217
    %v262 = vpack.c.b16 %v247, %v246
    %v263 = vpack.c.b16 %v249, %v248
    %v264 = vpack.c.b16 %v251, %v250
    %v265 = vpack.c.b16 %v253, %v252
    %v266 = vpack.c.b16 %v255, %v254
    %v267 = vpack.c.b16 %v257, %v256
    %v268 = vpack.c.b16 %v259, %v258
    %v269 = vpack.c.b16 %v261, %v260
    %278 = vmatpush.bf16.msra.mxu0 %v269
    %279 = vmatpush.bf16.msra.mxu0 %v268
    %280 = vmatpush.bf16.msra.mxu0 %v267
    %281 = vmatpush.bf16.msra.mxu0 %v266
    %282 = vmatpush.bf16.msra.mxu0 %v265
    %283 = vmatpush.bf16.msra.mxu0 %v264
    %284 = vmatpush.bf16.msra.mxu0 %v263
    %285 = vmatpush.bf16.msra.mxu0 %v262
    %286 = vmatmul.bf16.gmra.mxu0 %v226
    %v287 = vpop.f32.mrf.mxu0
    %v288 = vadd.f32 0.0, %v287
    %v289 = vpop.f32.mrf.mxu0
    %v290 = vadd.f32 0.0, %v289
    %291 = vmatmul.bf16.gmra.mxu0 %v227
    %v292 = vpop.f32.mrf.mxu0
    %v293 = vadd.f32 0.0, %v292
    %v294 = vpop.f32.mrf.mxu0
    %v295 = vadd.f32 0.0, %v294
    %296 = vdwg.mxu0
    %vm297 = vcmp.ge.f32.partialorder %v159, 0.0
    %vm298 = vcmp.ge.f32.partialorder %v161, 0.0
    %vm299 = vcmp.ge.f32.partialorder %v164, 0.0
    %vm300 = vcmp.ge.f32.partialorder %v166, 0.0
    %vm301 = vcmp.ge.f32.partialorder %v169, 0.0
    %vm302 = vcmp.ge.f32.partialorder %v171, 0.0
    %vm303 = vcmp.ge.f32.partialorder %v174, 0.0
    %vm304 = vcmp.ge.f32.partialorder %v176, 0.0
    %vm305 = vcmp.ge.f32.partialorder %v179, 0.0
    %vm306 = vcmp.ge.f32.partialorder %v181, 0.0
    %vm307 = vcmp.ge.f32.partialorder %v184, 0.0
    %vm308 = vcmp.ge.f32.partialorder %v186, 0.0
    %vm309 = vcmp.ge.f32.partialorder %v189, 0.0
    %vm310 = vcmp.ge.f32.partialorder %v191, 0.0
    %vm311 = vcmp.ge.f32.partialorder %v194, 0.0
    %vm312 = vcmp.ge.f32.partialorder %v196, 0.0
    %v313 = vmul.f32 %v159, 0.2
    %v314 = vmul.f32 %v161, 0.2
    %v315 = vmul.f32 %v164, 0.2
    %v316 = vmul.f32 %v166, 0.2
    %v317 = vmul.f32 %v169, 0.2
    %v318 = vmul.f32 %v171, 0.2
    %v319 = vmul.f32 %v174, 0.2
    %v320 = vmul.f32 %v176, 0.2
    %v321 = vmul.f32 %v179, 0.2
    %v322 = vmul.f32 %v181, 0.2
    %v323 = vmul.f32 %v184, 0.2
    %v324 = vmul.f32 %v186, 0.2
    %v325 = vmul.f32 %v189, 0.2
    %v326 = vmul.f32 %v191, 0.2
    %v327 = vmul.f32 %v194, 0.2
    %v328 = vmul.f32 %v196, 0.2
    %v329 = vsel %vm297, %v159, %v313
    %v330 = vsel %vm298, %v161, %v314
    %v331 = vsel %vm299, %v164, %v315
    %v332 = vsel %vm300, %v166, %v316
    %v333 = vsel %vm301, %v169, %v317
    %v334 = vsel %vm302, %v171, %v318
    %v335 = vsel %vm303, %v174, %v319
    %v336 = vsel %vm304, %v176, %v320
    %v337 = vsel %vm305, %v179, %v321
    %v338 = vsel %vm306, %v181, %v322
    %v339 = vsel %vm307, %v184, %v323
    %v340 = vsel %vm308, %v186, %v324
    %v341 = vsel %vm309, %v189, %v325
    %v342 = vsel %vm310, %v191, %v326
    %v343 = vsel %vm311, %v194, %v327
    %v344 = vsel %vm312, %v196, %v328
    %345 = vst [vmem:[#allocation2] sm:$0xff] %v329
    %346 = vst [vmem:[#allocation2 + $0x8] sm:$0xff] %v330
    %347 = vst [vmem:[#allocation2 + $0x10] sm:$0xff] %v331
    %348 = vst [vmem:[#allocation2 + $0x18] sm:$0xff] %v332
    %349 = vst [vmem:[#allocation2 + $0x20] sm:$0xff] %v333
    %350 = vst [vmem:[#allocation2 + $0x28] sm:$0xff] %v334
    %351 = vst [vmem:[#allocation2 + $0x30] sm:$0xff] %v335
    %352 = vst [vmem:[#allocation2 + $0x38] sm:$0xff] %v336
    %353 = vst [vmem:[#allocation2 + $0x40] sm:$0xff] %v337
    %354 = vst [vmem:[#allocation2 + $0x48] sm:$0xff] %v338
    %355 = vst [vmem:[#allocation2 + $0x50] sm:$0xff] %v339
    %356 = vst [vmem:[#allocation2 + $0x58] sm:$0xff] %v340
    %357 = vst [vmem:[#allocation2 + $0x60] sm:$0xff] %v341
    %358 = vst [vmem:[#allocation2 + $0x68] sm:$0xff] %v342
    %359 = vst [vmem:[#allocation2 + $0x70] sm:$0xff] %v343
    %360 = vst [vmem:[#allocation2 + $0x78] sm:$0xff] %v344
    %vm361 = vcmp.ge.f32.partialorder %v288, 0.0
    %vm362 = vcmp.ge.f32.partialorder %v290, 0.0
    %vm363 = vcmp.ge.f32.partialorder %v293, 0.0
    %vm364 = vcmp.ge.f32.partialorder %v295, 0.0
    %v365 = vmul.f32 %v288, 0.2
    %v366 = vmul.f32 %v290, 0.2
    %v367 = vmul.f32 %v293, 0.2
    %v368 = vmul.f32 %v295, 0.2
    %v369 = vsel %vm361, %v288, %v365
    %v370 = vsel %vm362, %v290, %v366
    %v371 = vsel %vm363, %v293, %v367
    %v372 = vsel %vm364, %v295, %v368
    %373 = vst [vmem:[#allocation4] sm:$0xff] %v369
    %374 = vst [vmem:[#allocation4 + $0x8] sm:$0xff] %v370
    %375 = vst [vmem:[#allocation4 + $0x10] sm:$0xff] %v371
    %376 = vst [vmem:[#allocation4 + $0x18] sm:$0xff] %v372
    // Predicated region
    $region18: #{encoder_forward.9} parent=1 // pred_check
      _
    $region19: #{encoder_forward.9} parent=1 // pred_check_branch
      %378 = sbr.rel (0) target = $region21
    $region20: #{encoder_forward.9} parent=1 // pred_region
      %380 = vsyncadd [#allocation3], 0
      %s381 = sshll.u32 [#allocation2], 4
      %s382 = int_to_ptr.vmem [resolvable:$true] %s381
      %s383 = sshll.u32 %s4, 4
      %s384 = int_to_ptr.hbm [resolvable:$true] %s383
      %389 = dma.vmem_to_hbm [thread:$0]  %s382, 2048, %s384, [#allocation3], 128, 128, 8
    $region21: #{encoder_forward.9} parent=1 // pred_fallthru
      _
    // Predicated region
    $region22: #{encoder_forward.9} parent=1 // pred_check
      _
    $region23: #{encoder_forward.9} parent=1 // pred_check_branch
      %391 = sbr.rel (0) target = $region25
    $region24: #{encoder_forward.9} parent=1 // pred_region
      %393 = vsyncadd [#allocation5], 0
      %s394 = sshll.u32 [#allocation4], 4
      %s395 = int_to_ptr.vmem [resolvable:$true] %s394
      %s396 = sshll.u32 %s5, 4
      %s397 = int_to_ptr.hbm [resolvable:$true] %s396
      %402 = dma.vmem_to_hbm [thread:$0]  %s395, 512, %s397, [#allocation5], 128, 128, 8
    $region25: #{encoder_forward.9} parent=1 // pred_fallthru
      _
    // Predicated region
    $region26: #{encoder_forward.9} parent=1 // pred_check
      _
    $region27: #{encoder_forward.9} parent=1 // pred_check_branch
      %404 = sbr.rel (0) target = $region29
    $region28: #{encoder_forward.9} parent=1 // pred_region
      %406 = dma.done [#allocation3], 2048
    $region29: #{encoder_forward.9} parent=1 // pred_fallthru
      _
    // Predicated region
    $region30: #{encoder_forward.9} parent=1 // pred_check
      _
    $region31: #{encoder_forward.9} parent=1 // pred_check_branch
      %408 = sbr.rel (0) target = $region33
    $region32: #{encoder_forward.9} parent=1 // pred_region
      %410 = dma.done [#allocation5], 512
    $region33: #{encoder_forward.9} parent=1 // pred_fallthru
      _
    %411 = vsyncpa [#allocation3], 1
    %412 = vsyncpa [#allocation5], 1

</llo_original>
